<compile_context>
chip_gen: v7x
topology: tpu7x:2x2x1
jax: 0.10.0
libtpu: 0.0.40
codegen_flags: <defaults>
</compile_context>

<pallas_src>
import functools
import math

import jax
import jax.numpy as jnp
from jax import lax
from jax.experimental import pallas as pl
from jax.experimental.pallas import tpu as pltpu

NUM_HEADS = 8
NUM_CLASSES = 2
LANE = 128  # lane width for the padded logits store


def _erf(z):
    # Abramowitz & Stegun 7.1.26 (|err| < 1.5e-7): exp/mul/add only -> VPU/EUP.
    a1, a2, a3, a4, a5 = 0.254829592, -0.284496736, 1.421413741, -1.453152027, 1.061405429
    p = 0.3275911
    sign = jnp.where(z >= 0.0, 1.0, -1.0)
    za = jnp.abs(z)
    t = 1.0 / (1.0 + p * za)
    poly = ((((a5 * t + a4) * t + a3) * t + a2) * t + a1) * t
    return sign * (1.0 - poly * jnp.exp(-za * za))


def _gelu(x):  # nn.GELU() default = exact erf formulation
    return 0.5 * x * (1.0 + _erf(x * (1.0 / math.sqrt(2.0))))


def _layernorm(x, g, b, eps=1e-5):
    mu = jnp.mean(x, axis=-1, keepdims=True)
    var = jnp.mean(jnp.square(x - mu), axis=-1, keepdims=True)
    return (x - mu) * lax.rsqrt(var + eps) * g + b


def _classifier_kernel(x_ref, mask_ref,
                       wq_ref, wk_ref, wv_ref, bq_ref, bk_ref, bv_ref,
                       wo_ref, bo_ref, g1_ref, be1_ref,
                       wc1a_ref, wc1m_ref, bc1_ref, gc_ref, bec_ref,
                       wc2_ref, bc2_ref,
                       o_ref, *, nb, seq):
    f32 = jnp.float32
    bf16 = jnp.bfloat16
    m, d = x_ref.shape                      # m = nb * seq (flattened batch block)
    hd = d // NUM_HEADS

    x = x_ref[...].astype(f32)
    xb = x.astype(bf16)
    mask = mask_ref[...]                    # (m, m) f32, 0 on block-diag / -1e30 off

    # ---- fused QKV projections at full M (Wq / bq pre-scaled by 1/sqrt(hd)) ----
    q = jnp.dot(xb, wq_ref[...], preferred_element_type=f32) + bq_ref[...]
    k = jnp.dot(xb, wk_ref[...], preferred_element_type=f32) + bk_ref[...]
    v = jnp.dot(xb, wv_ref[...], preferred_element_type=f32) + bv_ref[...]
    qb, kb, vb = q.astype(bf16), k.astype(bf16), v.astype(bf16)

    # ---- self-attention: one masked (m,m) softmax per head, dropout = identity ----
    o_heads = []
    for h in range(NUM_HEADS):
        c0 = h * hd
        qh = qb[:, c0:c0 + hd]
        kh = kb[:, c0:c0 + hd]
        vh = vb[:, c0:c0 + hd]
        s = lax.dot_general(qh, kh, (((1,), (1,)), ((), ())),
                            preferred_element_type=f32)             # (m, m)
        s = s + mask                                                 # block-diagonal
        s = s - jnp.max(s, axis=-1, keepdims=True)
        p = jnp.exp(s)
        p = p * pl.reciprocal(jnp.sum(p, axis=-1, keepdims=True), approx=True)
        o_heads.append(jnp.dot(p.astype(bf16), vh, preferred_element_type=f32))
    oh = jnp.concatenate(o_heads, axis=-1)                           # (m, d), head order
    # single full-width output projection: (m, d) @ (d, d)
    attn = jnp.dot(oh.astype(bf16), wo_ref[...], preferred_element_type=f32) + bo_ref[...]

    h1 = _layernorm(x + attn, g1_ref[...], be1_ref[...])             # (m, d) f32

    # ---- global avg / max pooling over the sequence (sublane) axis ----
    h3 = h1.reshape(nb, seq, d)
    avg = jnp.mean(h3, axis=1)                                       # (nb, d)
    mx = jnp.max(h3, axis=1)                                         # (nb, d)

    # ---- classifier head: Linear -> LayerNorm -> GELU -> (Dropout=id) -> Linear ----
    # cat([avg, max]) @ Wc1^T decomposed into two lane-dense (nb, D) dots.
    c = (jnp.dot(avg.astype(bf16), wc1a_ref[...], preferred_element_type=f32)
         + jnp.dot(mx.astype(bf16), wc1m_ref[...], preferred_element_type=f32)
         + bc1_ref[...])
    c = _layernorm(c, gc_ref[...], bec_ref[...])
    c = _gelu(c)
    # lane-dense logits: wc2 zero-padded to 128 output lanes
    logits = jnp.dot(c.astype(bf16), wc2_ref[...], preferred_element_type=f32) + bc2_ref[...]
    o_ref[...] = logits.astype(o_ref.dtype)


def _pick_nb(B, S, D):
    """Batch elements per grid step: a divisor of B whose block footprint fits VMEM."""
    budget = 16 << 20   # conservative vs the 32 MiB scoped default (and v7x's 64 MiB)

    def fits(nb):
        m = nb * S
        return (10 * m * D * 4 + 3 * m * m * 4) <= budget

    num_tc = 1
    try:
        kind = (getattr(jax.devices()[0], "device_kind", "") or "").lower()
        if "v7" in kind or "7x" in kind:
            num_tc = 2
    except Exception:
        pass

    # v7x: >= 2 grid steps so dimension_semantics=("parallel",) shards across both TCs.
    if num_tc >= 2 and B % 16 == 0 and fits(B // 2):
        return B // 2
    # single-TC (v5e/v6e): one fat block -> no per-step overhead, max M on the MXU.
    if fits(B):
        return B
    # otherwise: largest multiple-of-8 divisor that fits (keeps (8,128) tiling legal).
    for cand in range(B - 1, 0, -1):
        if B % cand == 0 and cand % 8 == 0 and fits(cand):
            return cand
    return B  # fall back: grid=1 (block == full array always satisfies tiling rules)


def lightweight_classifier(x, params):
    """Pallas forward of LightweightClassifier for 3-D input x: (B, S, D) float32."""
    if x.ndim != 3:
        # TODO(synk): 2-D single_classifier branch (Linear->LN->GELU->Linear) not wired up here.
        raise NotImplementedError("only the 3-D (batch, seq, feature) branch is implemented")

    B, S, D = x.shape
    assert D % NUM_HEADS == 0
    Hc = params["wc1"].shape[0]
    hd = D // NUM_HEADS

    NB = _pick_nb(B, S, D)
    grid = (B // NB,)
    m = NB * S

    f32, bf16 = jnp.float32, jnp.bfloat16

    def row(v):
        return v.reshape(1, -1).astype(f32)

    wq, wk, wv = jnp.split(params["in_proj_w"], 3, axis=0)            # (D, D) each, (out,in)
    bq, bk, bv = jnp.split(params["in_proj_b"], 3)
    scale = 1.0 / math.sqrt(hd)

    wc1_t = params["wc1"].T.astype(f32)                               # (2D, Hc)
    wc2_pad = jnp.zeros((Hc, LANE), f32).at[:, :NUM_CLASSES].set(params["wc2"].T)
    bc2_pad = jnp.zeros((1, LANE), f32).at[0, :NUM_CLASSES].set(params["bc2"])

    # Block-diagonal attention mask over the flattened NB*S rows (host-precomputed;
    # same for every grid step, all-zeros when NB == 1).
    blk_id = jnp.arange(m, dtype=jnp.int32) // S
    mask = jnp.where(blk_id[:, None] == blk_id[None, :], 0.0, -1e30).astype(f32)

    args = (
        x.reshape(B * S, D),                                          # free reshape (no transpose)
        mask,
        (wq.T * scale).astype(bf16), wk.T.astype(bf16), wv.T.astype(bf16),
        row(bq) * scale, row(bk), row(bv),
        params["wo"].T.astype(bf16), row(params["bo"]),
        row(params["g_ln"]), row(params["b_ln"]),
        wc1_t[:D].astype(bf16), wc1_t[D:].astype(bf16), row(params["bc1"]),
        row(params["gc"]), row(params["bec"]),
        wc2_pad.astype(bf16), bc2_pad,
    )

    in_specs = [pl.BlockSpec((m, D), lambda i: (i, 0))]
    in_specs += [pl.BlockSpec(a.shape, lambda i: (0, 0)) for a in args[1:]]

    nblk = B // NB
    flops = nblk * (8 * m * D * D            # QKV + full-width output projection
                    + 4 * m * m * D          # scores + PV across all heads
                    + 4 * NB * D * Hc + 2 * NB * Hc * LANE)
    transcendentals = nblk * (NUM_HEADS * m * m + NB * Hc)
    bytes_accessed = sum(int(a.size) * a.dtype.itemsize for a in args) + B * LANE * 4

    kernel = functools.partial(_classifier_kernel, nb=NB, seq=S)
    out = pl.pallas_call(
        kernel,
        out_shape=jax.ShapeDtypeStruct((B, LANE), x.dtype),
        grid=grid,
        in_specs=in_specs,
        out_specs=pl.BlockSpec((NB, LANE), lambda i: (i, 0)),
        compiler_params=pltpu.CompilerParams(dimension_semantics=("parallel",)),
        cost_estimate=pl.CostEstimate(flops=flops,
                                      transcendentals=transcendentals,
                                      bytes_accessed=bytes_accessed),
    )(*args)
    return out[:, :NUM_CLASSES]


def init_params(key, feature_dim=256, hidden_dim=128):
    """Torch-layout parameters (weights stored as (out, in), like the PyTorch module)."""
    D, Hc = feature_dim, hidden_dim
    ks = jax.random.split(key, 10)

    def unif(k, shape, bound):
        return jax.random.uniform(k, shape, jnp.float32, -bound, bound)

    return dict(
        # nn.MultiheadAttention (biases randomized here to exercise the kernel path;
        # torch initializes them to zero)
        in_proj_w=unif(ks[0], (3 * D, D), math.sqrt(6.0 / (4 * D))),
        in_proj_b=unif(ks[1], (3 * D,), 0.02),
        wo=unif(ks[2], (D, D), 1.0 / math.sqrt(D)),
        bo=unif(ks[3], (D,), 0.02),
        # nn.LayerNorm(feature_dim)
        g_ln=jnp.ones((D,), jnp.float32), b_ln=jnp.zeros((D,), jnp.float32),
        # classifier: Linear(2D, Hc) -> LayerNorm(Hc) -> GELU -> Dropout -> Linear(Hc, 2)
        wc1=unif(ks[4], (Hc, 2 * D), 1.0 / math.sqrt(2 * D)),
        bc1=unif(ks[5], (Hc,), 1.0 / math.sqrt(2 * D)),
        gc=jnp.ones((Hc,), jnp.float32), bec=jnp.zeros((Hc,), jnp.float32),
        wc2=unif(ks[6], (NUM_CLASSES, Hc), 1.0 / math.sqrt(Hc)),
        bc2=unif(ks[7], (NUM_CLASSES,), 1.0 / math.sqrt(Hc)),
    )


def reference(x, params):
    """Pure-JAX (f32) replica of the PyTorch eval forward (3-D branch) for checking."""
    B, S, D = x.shape
    hd = D // NUM_HEADS

    def ln(v, g, b):
        mu = v.mean(-1, keepdims=True)
        var = ((v - mu) ** 2).mean(-1, keepdims=True)
        return (v - mu) / jnp.sqrt(var + 1e-5) * g + b

    wq, wk, wv = jnp.split(params["in_proj_w"], 3, axis=0)
    bq, bk, bv = jnp.split(params["in_proj_b"], 3)
    q = x @ wq.T + bq
    k = x @ wk.T + bk
    v = x @ wv.T + bv

    def split(t):  # (B, S, D) -> (B, H, S, hd)
        return t.reshape(B, S, NUM_HEADS, hd).transpose(0, 2, 1, 3)

    qh, kh, vh = split(q), split(k), split(v)
    s = jnp.einsum("bhqd,bhkd->bhqk", qh, kh) / math.sqrt(hd)
    p = jax.nn.softmax(s, axis=-1)
    o = jnp.einsum("bhqk,bhkd->bhqd", p, vh).transpose(0, 2, 1, 3).reshape(B, S, D)
    o = o @ params["wo"].T + params["bo"]
    h = ln(x + o, params["g_ln"], params["b_ln"])

    pooled = jnp.concatenate([h.mean(axis=1), h.max(axis=1)], axis=1)   # (B, 2D)
    c = pooled @ params["wc1"].T + params["bc1"]
    c = ln(c, params["gc"], params["bec"])
    c = jax.nn.gelu(c, approximate=False)
    return c @ params["wc2"].T + params["bc2"]


if __name__ == "__main__":
    feature_dim, hidden_dim, B, S = 256, 128, 2, 8     # module defaults, small batch/seq
    key = jax.random.PRNGKey(0)
    kx, kp = jax.random.split(key)

    x = jax.random.normal(kx, (B, S, feature_dim), jnp.float32)
    params = init_params(kp, feature_dim, hidden_dim)

    out = jax.block_until_ready(lightweight_classifier(x, params))
    assert out.shape == (B, NUM_CLASSES)

    ref = reference(x, params)
    err = float(jnp.max(jnp.abs(out - ref)))
    # bf16 MXU operands vs. the pure-f32 reference -> tolerance looser than pure-f32.
    assert jnp.allclose(out, ref, atol=5e-2, rtol=5e-2), f"max abs err {err}"

    print("KERNEL_OK")
</pallas_src>

<mosaic_0001>
module attributes {stable_mosaic.version = 11 : i64} {
  func.func @_classifier_kernel(%arg0: i32, %arg1: memref<16x256xf32, #tpu.memory_space<vmem>>, %arg2: memref<16x16xf32, #tpu.memory_space<vmem>>, %arg3: memref<256x256xbf16, #tpu.memory_space<vmem>>, %arg4: memref<256x256xbf16, #tpu.memory_space<vmem>>, %arg5: memref<256x256xbf16, #tpu.memory_space<vmem>>, %arg6: memref<1x256xf32, #tpu.memory_space<vmem>>, %arg7: memref<1x256xf32, #tpu.memory_space<vmem>>, %arg8: memref<1x256xf32, #tpu.memory_space<vmem>>, %arg9: memref<256x256xbf16, #tpu.memory_space<vmem>>, %arg10: memref<1x256xf32, #tpu.memory_space<vmem>>, %arg11: memref<1x256xf32, #tpu.memory_space<vmem>>, %arg12: memref<1x256xf32, #tpu.memory_space<vmem>>, %arg13: memref<256x128xbf16, #tpu.memory_space<vmem>>, %arg14: memref<256x128xbf16, #tpu.memory_space<vmem>>, %arg15: memref<1x128xf32, #tpu.memory_space<vmem>>, %arg16: memref<1x128xf32, #tpu.memory_space<vmem>>, %arg17: memref<1x128xf32, #tpu.memory_space<vmem>>, %arg18: memref<128x128xbf16, #tpu.memory_space<vmem>>, %arg19: memref<1x128xf32, #tpu.memory_space<vmem>>, %arg20: memref<2x128xf32, #tpu.memory_space<vmem>>) attributes {dimension_semantics = [#tpu.dimension_semantics<parallel>], iteration_bounds = array<i64: 1>, scalar_prefetch = 0 : i64, scratch_operands = 0 : i64, tpu.core_type = #tpu.core_type<tc>, window_params = [{transform_indices = @transform_0, window_bounds = array<i64: 16, 256>}, {pipeline_mode = #tpu.pipeline_mode<synchronous>, transform_indices = @transform_1, window_bounds = array<i64: 16, 16>}, {pipeline_mode = #tpu.pipeline_mode<synchronous>, transform_indices = @transform_2, window_bounds = array<i64: 256, 256>}, {pipeline_mode = #tpu.pipeline_mode<synchronous>, transform_indices = @transform_3, window_bounds = array<i64: 256, 256>}, {pipeline_mode = #tpu.pipeline_mode<synchronous>, transform_indices = @transform_4, window_bounds = array<i64: 256, 256>}, {pipeline_mode = #tpu.pipeline_mode<synchronous>, transform_indices = @transform_5, window_bounds = array<i64: 1, 256>}, {pipeline_mode = #tpu.pipeline_mode<synchronous>, transform_indices = @transform_6, window_bounds = array<i64: 1, 256>}, {pipeline_mode = #tpu.pipeline_mode<synchronous>, transform_indices = @transform_7, window_bounds = array<i64: 1, 256>}, {pipeline_mode = #tpu.pipeline_mode<synchronous>, transform_indices = @transform_8, window_bounds = array<i64: 256, 256>}, {pipeline_mode = #tpu.pipeline_mode<synchronous>, transform_indices = @transform_9, window_bounds = array<i64: 1, 256>}, {pipeline_mode = #tpu.pipeline_mode<synchronous>, transform_indices = @transform_10, window_bounds = array<i64: 1, 256>}, {pipeline_mode = #tpu.pipeline_mode<synchronous>, transform_indices = @transform_11, window_bounds = array<i64: 1, 256>}, {pipeline_mode = #tpu.pipeline_mode<synchronous>, transform_indices = @transform_12, window_bounds = array<i64: 256, 128>}, {pipeline_mode = #tpu.pipeline_mode<synchronous>, transform_indices = @transform_13, window_bounds = array<i64: 256, 128>}, {pipeline_mode = #tpu.pipeline_mode<synchronous>, transform_indices = @transform_14, window_bounds = array<i64: 1, 128>}, {pipeline_mode = #tpu.pipeline_mode<synchronous>, transform_indices = @transform_15, window_bounds = array<i64: 1, 128>}, {pipeline_mode = #tpu.pipeline_mode<synchronous>, transform_indices = @transform_16, window_bounds = array<i64: 1, 128>}, {pipeline_mode = #tpu.pipeline_mode<synchronous>, transform_indices = @transform_17, window_bounds = array<i64: 128, 128>}, {pipeline_mode = #tpu.pipeline_mode<synchronous>, transform_indices = @transform_18, window_bounds = array<i64: 1, 128>}, {transform_indices = @transform_19, window_bounds = array<i64: 2, 128>}]} {
    %c0 = arith.constant 0 : index
    %c0_0 = arith.constant 0 : index
    %0 = vector.load %arg1[%c0, %c0_0] : memref<16x256xf32, #tpu.memory_space<vmem>>, vector<16x256xf32>
    %1 = arith.truncf %0 : vector<16x256xf32> to vector<16x256xbf16>
    %c0_1 = arith.constant 0 : index
    %c0_2 = arith.constant 0 : index
    %2 = vector.load %arg2[%c0_1, %c0_2] : memref<16x16xf32, #tpu.memory_space<vmem>>, vector<16x16xf32>
    %c0_3 = arith.constant 0 : index
    %c0_4 = arith.constant 0 : index
    %3 = vector.load %arg3[%c0_3, %c0_4] : memref<256x256xbf16, #tpu.memory_space<vmem>>, vector<256x256xbf16>
    %cst = arith.constant dense<0.000000e+00> : vector<16x256xf32>
    %4 = tpu.matmul %1, %3, %cst {dimension_numbers = #tpu.dot_dimension_numbers<[1], [0], [0], [1], [0, 0, 1, 1], [], []>} : vector<16x256xbf16>, vector<256x256xbf16>, vector<16x256xf32> -> vector<16x256xf32>
    %c0_5 = arith.constant 0 : index
    %c0_6 = arith.constant 0 : index
    %5 = vector.load %arg6[%c0_5, %c0_6] : memref<1x256xf32, #tpu.memory_space<vmem>>, vector<1x256xf32>
    %6 = vector.broadcast %5 : vector<1x256xf32> to vector<16x256xf32>
    %7 = arith.addf %4, %6 : vector<16x256xf32>
    %c0_7 = arith.constant 0 : index
    %c0_8 = arith.constant 0 : index
    %8 = vector.load %arg4[%c0_7, %c0_8] : memref<256x256xbf16, #tpu.memory_space<vmem>>, vector<256x256xbf16>
    %cst_9 = arith.constant dense<0.000000e+00> : vector<16x256xf32>
    %9 = tpu.matmul %1, %8, %cst_9 {dimension_numbers = #tpu.dot_dimension_numbers<[1], [0], [0], [1], [0, 0, 1, 1], [], []>} : vector<16x256xbf16>, vector<256x256xbf16>, vector<16x256xf32> -> vector<16x256xf32>
    %c0_10 = arith.constant 0 : index
    %c0_11 = arith.constant 0 : index
    %10 = vector.load %arg7[%c0_10, %c0_11] : memref<1x256xf32, #tpu.memory_space<vmem>>, vector<1x256xf32>
    %11 = vector.broadcast %10 : vector<1x256xf32> to vector<16x256xf32>
    %12 = arith.addf %9, %11 : vector<16x256xf32>
    %c0_12 = arith.constant 0 : index
    %c0_13 = arith.constant 0 : index
    %13 = vector.load %arg5[%c0_12, %c0_13] : memref<256x256xbf16, #tpu.memory_space<vmem>>, vector<256x256xbf16>
    %cst_14 = arith.constant dense<0.000000e+00> : vector<16x256xf32>
    %14 = tpu.matmul %1, %13, %cst_14 {dimension_numbers = #tpu.dot_dimension_numbers<[1], [0], [0], [1], [0, 0, 1, 1], [], []>} : vector<16x256xbf16>, vector<256x256xbf16>, vector<16x256xf32> -> vector<16x256xf32>
    %c0_15 = arith.constant 0 : index
    %c0_16 = arith.constant 0 : index
    %15 = vector.load %arg8[%c0_15, %c0_16] : memref<1x256xf32, #tpu.memory_space<vmem>>, vector<1x256xf32>
    %16 = vector.broadcast %15 : vector<1x256xf32> to vector<16x256xf32>
    %17 = arith.addf %14, %16 : vector<16x256xf32>
    %18 = arith.truncf %7 : vector<16x256xf32> to vector<16x256xbf16>
    %19 = arith.truncf %12 : vector<16x256xf32> to vector<16x256xbf16>
    %20 = arith.truncf %17 : vector<16x256xf32> to vector<16x256xbf16>
    %21 = vector.extract_strided_slice %18 {offsets = [0, 0], sizes = [16, 32], strides = [1, 1]} : vector<16x256xbf16> to vector<16x32xbf16>
    %22 = vector.extract_strided_slice %19 {offsets = [0, 0], sizes = [16, 32], strides = [1, 1]} : vector<16x256xbf16> to vector<16x32xbf16>
    %23 = vector.extract_strided_slice %20 {offsets = [0, 0], sizes = [16, 32], strides = [1, 1]} : vector<16x256xbf16> to vector<16x32xbf16>
    %cst_17 = arith.constant dense<0.000000e+00> : vector<16x16xf32>
    %24 = tpu.matmul %21, %22, %cst_17 {dimension_numbers = #tpu.dot_dimension_numbers<[1], [1], [0], [0], [0, 0, 1, 0], [], []>} : vector<16x32xbf16>, vector<16x32xbf16>, vector<16x16xf32> -> vector<16x16xf32>
    %25 = arith.addf %24, %2 : vector<16x16xf32>
    %cst_18 = arith.constant dense<0xFF800000> : vector<16xf32>
    %26 = vector.multi_reduction <maximumf>, %25, %cst_18 [1] : vector<16x16xf32> to vector<16xf32>
    %27 = vector.shape_cast %26 : vector<16xf32> to vector<16x1xf32>
    %28 = vector.broadcast %27 : vector<16x1xf32> to vector<16x16xf32>
    %29 = arith.subf %25, %28 : vector<16x16xf32>
    %30 = math.exp %29 : vector<16x16xf32>
    %cst_19 = arith.constant dense<0.000000e+00> : vector<16xf32>
    %31 = vector.multi_reduction <add>, %30, %cst_19 [1] : vector<16x16xf32> to vector<16xf32>
    %32 = vector.shape_cast %31 : vector<16xf32> to vector<16x1xf32>
    %33 = tpu.reciprocal %32 {approx = true} : vector<16x1xf32> -> vector<16x1xf32>
    %34 = vector.broadcast %33 : vector<16x1xf32> to vector<16x16xf32>
    %35 = arith.mulf %30, %34 : vector<16x16xf32>
    %36 = arith.truncf %35 : vector<16x16xf32> to vector<16x16xbf16>
    %cst_20 = arith.constant dense<0.000000e+00> : vector<16x32xf32>
    %37 = tpu.matmul %36, %23, %cst_20 {dimension_numbers = #tpu.dot_dimension_numbers<[1], [0], [0], [1], [0, 0, 1, 1], [], []>} : vector<16x16xbf16>, vector<16x32xbf16>, vector<16x32xf32> -> vector<16x32xf32>
    %38 = vector.extract_strided_slice %18 {offsets = [0, 32], sizes = [16, 32], strides = [1, 1]} : vector<16x256xbf16> to vector<16x32xbf16>
    %39 = vector.extract_strided_slice %19 {offsets = [0, 32], sizes = [16, 32], strides = [1, 1]} : vector<16x256xbf16> to vector<16x32xbf16>
    %40 = vector.extract_strided_slice %20 {offsets = [0, 32], sizes = [16, 32], strides = [1, 1]} : vector<16x256xbf16> to vector<16x32xbf16>
    %cst_21 = arith.constant dense<0.000000e+00> : vector<16x16xf32>
    %41 = tpu.matmul %38, %39, %cst_21 {dimension_numbers = #tpu.dot_dimension_numbers<[1], [1], [0], [0], [0, 0, 1, 0], [], []>} : vector<16x32xbf16>, vector<16x32xbf16>, vector<16x16xf32> -> vector<16x16xf32>
    %42 = arith.addf %41, %2 : vector<16x16xf32>
    %cst_22 = arith.constant dense<0xFF800000> : vector<16xf32>
    %43 = vector.multi_reduction <maximumf>, %42, %cst_22 [1] : vector<16x16xf32> to vector<16xf32>
    %44 = vector.shape_cast %43 : vector<16xf32> to vector<16x1xf32>
    %45 = vector.broadcast %44 : vector<16x1xf32> to vector<16x16xf32>
    %46 = arith.subf %42, %45 : vector<16x16xf32>
    %47 = math.exp %46 : vector<16x16xf32>
    %cst_23 = arith.constant dense<0.000000e+00> : vector<16xf32>
    %48 = vector.multi_reduction <add>, %47, %cst_23 [1] : vector<16x16xf32> to vector<16xf32>
    %49 = vector.shape_cast %48 : vector<16xf32> to vector<16x1xf32>
    %50 = tpu.reciprocal %49 {approx = true} : vector<16x1xf32> -> vector<16x1xf32>
    %51 = vector.broadcast %50 : vector<16x1xf32> to vector<16x16xf32>
    %52 = arith.mulf %47, %51 : vector<16x16xf32>
    %53 = arith.truncf %52 : vector<16x16xf32> to vector<16x16xbf16>
    %cst_24 = arith.constant dense<0.000000e+00> : vector<16x32xf32>
    %54 = tpu.matmul %53, %40, %cst_24 {dimension_numbers = #tpu.dot_dimension_numbers<[1], [0], [0], [1], [0, 0, 1, 1], [], []>} : vector<16x16xbf16>, vector<16x32xbf16>, vector<16x32xf32> -> vector<16x32xf32>
    %55 = vector.extract_strided_slice %18 {offsets = [0, 64], sizes = [16, 32], strides = [1, 1]} : vector<16x256xbf16> to vector<16x32xbf16>
    %56 = vector.extract_strided_slice %19 {offsets = [0, 64], sizes = [16, 32], strides = [1, 1]} : vector<16x256xbf16> to vector<16x32xbf16>
    %57 = vector.extract_strided_slice %20 {offsets = [0, 64], sizes = [16, 32], strides = [1, 1]} : vector<16x256xbf16> to vector<16x32xbf16>
    %cst_25 = arith.constant dense<0.000000e+00> : vector<16x16xf32>
    %58 = tpu.matmul %55, %56, %cst_25 {dimension_numbers = #tpu.dot_dimension_numbers<[1], [1], [0], [0], [0, 0, 1, 0], [], []>} : vector<16x32xbf16>, vector<16x32xbf16>, vector<16x16xf32> -> vector<16x16xf32>
    %59 = arith.addf %58, %2 : vector<16x16xf32>
    %cst_26 = arith.constant dense<0xFF800000> : vector<16xf32>
    %60 = vector.multi_reduction <maximumf>, %59, %cst_26 [1] : vector<16x16xf32> to vector<16xf32>
    %61 = vector.shape_cast %60 : vector<16xf32> to vector<16x1xf32>
    %62 = vector.broadcast %61 : vector<16x1xf32> to vector<16x16xf32>
    %63 = arith.subf %59, %62 : vector<16x16xf32>
    %64 = math.exp %63 : vector<16x16xf32>
    %cst_27 = arith.constant dense<0.000000e+00> : vector<16xf32>
    %65 = vector.multi_reduction <add>, %64, %cst_27 [1] : vector<16x16xf32> to vector<16xf32>
    %66 = vector.shape_cast %65 : vector<16xf32> to vector<16x1xf32>
    %67 = tpu.reciprocal %66 {approx = true} : vector<16x1xf32> -> vector<16x1xf32>
    %68 = vector.broadcast %67 : vector<16x1xf32> to vector<16x16xf32>
    %69 = arith.mulf %64, %68 : vector<16x16xf32>
    %70 = arith.truncf %69 : vector<16x16xf32> to vector<16x16xbf16>
    %cst_28 = arith.constant dense<0.000000e+00> : vector<16x32xf32>
    %71 = tpu.matmul %70, %57, %cst_28 {dimension_numbers = #tpu.dot_dimension_numbers<[1], [0], [0], [1], [0, 0, 1, 1], [], []>} : vector<16x16xbf16>, vector<16x32xbf16>, vector<16x32xf32> -> vector<16x32xf32>
    %72 = vector.extract_strided_slice %18 {offsets = [0, 96], sizes = [16, 32], strides = [1, 1]} : vector<16x256xbf16> to vector<16x32xbf16>
    %73 = vector.extract_strided_slice %19 {offsets = [0, 96], sizes = [16, 32], strides = [1, 1]} : vector<16x256xbf16> to vector<16x32xbf16>
    %74 = vector.extract_strided_slice %20 {offsets = [0, 96], sizes = [16, 32], strides = [1, 1]} : vector<16x256xbf16> to vector<16x32xbf16>
    %cst_29 = arith.constant dense<0.000000e+00> : vector<16x16xf32>
    %75 = tpu.matmul %72, %73, %cst_29 {dimension_numbers = #tpu.dot_dimension_numbers<[1], [1], [0], [0], [0, 0, 1, 0], [], []>} : vector<16x32xbf16>, vector<16x32xbf16>, vector<16x16xf32> -> vector<16x16xf32>
    %76 = arith.addf %75, %2 : vector<16x16xf32>
    %cst_30 = arith.constant dense<0xFF800000> : vector<16xf32>
    %77 = vector.multi_reduction <maximumf>, %76, %cst_30 [1] : vector<16x16xf32> to vector<16xf32>
    %78 = vector.shape_cast %77 : vector<16xf32> to vector<16x1xf32>
    %79 = vector.broadcast %78 : vector<16x1xf32> to vector<16x16xf32>
    %80 = arith.subf %76, %79 : vector<16x16xf32>
    %81 = math.exp %80 : vector<16x16xf32>
    %cst_31 = arith.constant dense<0.000000e+00> : vector<16xf32>
    %82 = vector.multi_reduction <add>, %81, %cst_31 [1] : vector<16x16xf32> to vector<16xf32>
    %83 = vector.shape_cast %82 : vector<16xf32> to vector<16x1xf32>
    %84 = tpu.reciprocal %83 {approx = true} : vector<16x1xf32> -> vector<16x1xf32>
    %85 = vector.broadcast %84 : vector<16x1xf32> to vector<16x16xf32>
    %86 = arith.mulf %81, %85 : vector<16x16xf32>
    %87 = arith.truncf %86 : vector<16x16xf32> to vector<16x16xbf16>
    %cst_32 = arith.constant dense<0.000000e+00> : vector<16x32xf32>
    %88 = tpu.matmul %87, %74, %cst_32 {dimension_numbers = #tpu.dot_dimension_numbers<[1], [0], [0], [1], [0, 0, 1, 1], [], []>} : vector<16x16xbf16>, vector<16x32xbf16>, vector<16x32xf32> -> vector<16x32xf32>
    %89 = vector.extract_strided_slice %18 {offsets = [0, 128], sizes = [16, 32], strides = [1, 1]} : vector<16x256xbf16> to vector<16x32xbf16>
    %90 = vector.extract_strided_slice %19 {offsets = [0, 128], sizes = [16, 32], strides = [1, 1]} : vector<16x256xbf16> to vector<16x32xbf16>
    %91 = vector.extract_strided_slice %20 {offsets = [0, 128], sizes = [16, 32], strides = [1, 1]} : vector<16x256xbf16> to vector<16x32xbf16>
    %cst_33 = arith.constant dense<0.000000e+00> : vector<16x16xf32>
    %92 = tpu.matmul %89, %90, %cst_33 {dimension_numbers = #tpu.dot_dimension_numbers<[1], [1], [0], [0], [0, 0, 1, 0], [], []>} : vector<16x32xbf16>, vector<16x32xbf16>, vector<16x16xf32> -> vector<16x16xf32>
    %93 = arith.addf %92, %2 : vector<16x16xf32>
    %cst_34 = arith.constant dense<0xFF800000> : vector<16xf32>
    %94 = vector.multi_reduction <maximumf>, %93, %cst_34 [1] : vector<16x16xf32> to vector<16xf32>
    %95 = vector.shape_cast %94 : vector<16xf32> to vector<16x1xf32>
    %96 = vector.broadcast %95 : vector<16x1xf32> to vector<16x16xf32>
    %97 = arith.subf %93, %96 : vector<16x16xf32>
    %98 = math.exp %97 : vector<16x16xf32>
    %cst_35 = arith.constant dense<0.000000e+00> : vector<16xf32>
    %99 = vector.multi_reduction <add>, %98, %cst_35 [1] : vector<16x16xf32> to vector<16xf32>
    %100 = vector.shape_cast %99 : vector<16xf32> to vector<16x1xf32>
    %101 = tpu.reciprocal %100 {approx = true} : vector<16x1xf32> -> vector<16x1xf32>
    %102 = vector.broadcast %101 : vector<16x1xf32> to vector<16x16xf32>
    %103 = arith.mulf %98, %102 : vector<16x16xf32>
    %104 = arith.truncf %103 : vector<16x16xf32> to vector<16x16xbf16>
    %cst_36 = arith.constant dense<0.000000e+00> : vector<16x32xf32>
    %105 = tpu.matmul %104, %91, %cst_36 {dimension_numbers = #tpu.dot_dimension_numbers<[1], [0], [0], [1], [0, 0, 1, 1], [], []>} : vector<16x16xbf16>, vector<16x32xbf16>, vector<16x32xf32> -> vector<16x32xf32>
    %106 = vector.extract_strided_slice %18 {offsets = [0, 160], sizes = [16, 32], strides = [1, 1]} : vector<16x256xbf16> to vector<16x32xbf16>
    %107 = vector.extract_strided_slice %19 {offsets = [0, 160], sizes = [16, 32], strides = [1, 1]} : vector<16x256xbf16> to vector<16x32xbf16>
    %108 = vector.extract_strided_slice %20 {offsets = [0, 160], sizes = [16, 32], strides = [1, 1]} : vector<16x256xbf16> to vector<16x32xbf16>
    %cst_37 = arith.constant dense<0.000000e+00> : vector<16x16xf32>
    %109 = tpu.matmul %106, %107, %cst_37 {dimension_numbers = #tpu.dot_dimension_numbers<[1], [1], [0], [0], [0, 0, 1, 0], [], []>} : vector<16x32xbf16>, vector<16x32xbf16>, vector<16x16xf32> -> vector<16x16xf32>
    %110 = arith.addf %109, %2 : vector<16x16xf32>
    %cst_38 = arith.constant dense<0xFF800000> : vector<16xf32>
    %111 = vector.multi_reduction <maximumf>, %110, %cst_38 [1] : vector<16x16xf32> to vector<16xf32>
    %112 = vector.shape_cast %111 : vector<16xf32> to vector<16x1xf32>
    %113 = vector.broadcast %112 : vector<16x1xf32> to vector<16x16xf32>
    %114 = arith.subf %110, %113 : vector<16x16xf32>
    %115 = math.exp %114 : vector<16x16xf32>
    %cst_39 = arith.constant dense<0.000000e+00> : vector<16xf32>
    %116 = vector.multi_reduction <add>, %115, %cst_39 [1] : vector<16x16xf32> to vector<16xf32>
    %117 = vector.shape_cast %116 : vector<16xf32> to vector<16x1xf32>
    %118 = tpu.reciprocal %117 {approx = true} : vector<16x1xf32> -> vector<16x1xf32>
    %119 = vector.broadcast %118 : vector<16x1xf32> to vector<16x16xf32>
    %120 = arith.mulf %115, %119 : vector<16x16xf32>
    %121 = arith.truncf %120 : vector<16x16xf32> to vector<16x16xbf16>
    %cst_40 = arith.constant dense<0.000000e+00> : vector<16x32xf32>
    %122 = tpu.matmul %121, %108, %cst_40 {dimension_numbers = #tpu.dot_dimension_numbers<[1], [0], [0], [1], [0, 0, 1, 1], [], []>} : vector<16x16xbf16>, vector<16x32xbf16>, vector<16x32xf32> -> vector<16x32xf32>
    %123 = vector.extract_strided_slice %18 {offsets = [0, 192], sizes = [16, 32], strides = [1, 1]} : vector<16x256xbf16> to vector<16x32xbf16>
    %124 = vector.extract_strided_slice %19 {offsets = [0, 192], sizes = [16, 32], strides = [1, 1]} : vector<16x256xbf16> to vector<16x32xbf16>
    %125 = vector.extract_strided_slice %20 {offsets = [0, 192], sizes = [16, 32], strides = [1, 1]} : vector<16x256xbf16> to vector<16x32xbf16>
    %cst_41 = arith.constant dense<0.000000e+00> : vector<16x16xf32>
    %126 = tpu.matmul %123, %124, %cst_41 {dimension_numbers = #tpu.dot_dimension_numbers<[1], [1], [0], [0], [0, 0, 1, 0], [], []>} : vector<16x32xbf16>, vector<16x32xbf16>, vector<16x16xf32> -> vector<16x16xf32>
    %127 = arith.addf %126, %2 : vector<16x16xf32>
    %cst_42 = arith.constant dense<0xFF800000> : vector<16xf32>
    %128 = vector.multi_reduction <maximumf>, %127, %cst_42 [1] : vector<16x16xf32> to vector<16xf32>
    %129 = vector.shape_cast %128 : vector<16xf32> to vector<16x1xf32>
    %130 = vector.broadcast %129 : vector<16x1xf32> to vector<16x16xf32>
    %131 = arith.subf %127, %130 : vector<16x16xf32>
    %132 = math.exp %131 : vector<16x16xf32>
    %cst_43 = arith.constant dense<0.000000e+00> : vector<16xf32>
    %133 = vector.multi_reduction <add>, %132, %cst_43 [1] : vector<16x16xf32> to vector<16xf32>
    %134 = vector.shape_cast %133 : vector<16xf32> to vector<16x1xf32>
    %135 = tpu.reciprocal %134 {approx = true} : vector<16x1xf32> -> vector<16x1xf32>
    %136 = vector.broadcast %135 : vector<16x1xf32> to vector<16x16xf32>
    %137 = arith.mulf %132, %136 : vector<16x16xf32>
    %138 = arith.truncf %137 : vector<16x16xf32> to vector<16x16xbf16>
    %cst_44 = arith.constant dense<0.000000e+00> : vector<16x32xf32>
    %139 = tpu.matmul %138, %125, %cst_44 {dimension_numbers = #tpu.dot_dimension_numbers<[1], [0], [0], [1], [0, 0, 1, 1], [], []>} : vector<16x16xbf16>, vector<16x32xbf16>, vector<16x32xf32> -> vector<16x32xf32>
    %140 = vector.extract_strided_slice %18 {offsets = [0, 224], sizes = [16, 32], strides = [1, 1]} : vector<16x256xbf16> to vector<16x32xbf16>
    %141 = vector.extract_strided_slice %19 {offsets = [0, 224], sizes = [16, 32], strides = [1, 1]} : vector<16x256xbf16> to vector<16x32xbf16>
    %142 = vector.extract_strided_slice %20 {offsets = [0, 224], sizes = [16, 32], strides = [1, 1]} : vector<16x256xbf16> to vector<16x32xbf16>
    %cst_45 = arith.constant dense<0.000000e+00> : vector<16x16xf32>
    %143 = tpu.matmul %140, %141, %cst_45 {dimension_numbers = #tpu.dot_dimension_numbers<[1], [1], [0], [0], [0, 0, 1, 0], [], []>} : vector<16x32xbf16>, vector<16x32xbf16>, vector<16x16xf32> -> vector<16x16xf32>
    %144 = arith.addf %143, %2 : vector<16x16xf32>
    %cst_46 = arith.constant dense<0xFF800000> : vector<16xf32>
    %145 = vector.multi_reduction <maximumf>, %144, %cst_46 [1] : vector<16x16xf32> to vector<16xf32>
    %146 = vector.shape_cast %145 : vector<16xf32> to vector<16x1xf32>
    %147 = vector.broadcast %146 : vector<16x1xf32> to vector<16x16xf32>
    %148 = arith.subf %144, %147 : vector<16x16xf32>
    %149 = math.exp %148 : vector<16x16xf32>
    %cst_47 = arith.constant dense<0.000000e+00> : vector<16xf32>
    %150 = vector.multi_reduction <add>, %149, %cst_47 [1] : vector<16x16xf32> to vector<16xf32>
    %151 = vector.shape_cast %150 : vector<16xf32> to vector<16x1xf32>
    %152 = tpu.reciprocal %151 {approx = true} : vector<16x1xf32> -> vector<16x1xf32>
    %153 = vector.broadcast %152 : vector<16x1xf32> to vector<16x16xf32>
    %154 = arith.mulf %149, %153 : vector<16x16xf32>
    %155 = arith.truncf %154 : vector<16x16xf32> to vector<16x16xbf16>
    %cst_48 = arith.constant dense<0.000000e+00> : vector<16x32xf32>
    %156 = tpu.matmul %155, %142, %cst_48 {dimension_numbers = #tpu.dot_dimension_numbers<[1], [0], [0], [1], [0, 0, 1, 1], [], []>} : vector<16x16xbf16>, vector<16x32xbf16>, vector<16x32xf32> -> vector<16x32xf32>
    %157 = tpu.concatenate %37, %54, %71, %88, %105, %122, %139, %156 in 1 : vector<16x32xf32>, vector<16x32xf32>, vector<16x32xf32>, vector<16x32xf32>, vector<16x32xf32>, vector<16x32xf32>, vector<16x32xf32>, vector<16x32xf32> -> vector<16x256xf32>
    %158 = arith.truncf %157 : vector<16x256xf32> to vector<16x256xbf16>
    %c0_49 = arith.constant 0 : index
    %c0_50 = arith.constant 0 : index
    %159 = vector.load %arg9[%c0_49, %c0_50] : memref<256x256xbf16, #tpu.memory_space<vmem>>, vector<256x256xbf16>
    %cst_51 = arith.constant dense<0.000000e+00> : vector<16x256xf32>
    %160 = tpu.matmul %158, %159, %cst_51 {dimension_numbers = #tpu.dot_dimension_numbers<[1], [0], [0], [1], [0, 0, 1, 1], [], []>} : vector<16x256xbf16>, vector<256x256xbf16>, vector<16x256xf32> -> vector<16x256xf32>
    %c0_52 = arith.constant 0 : index
    %c0_53 = arith.constant 0 : index
    %161 = vector.load %arg10[%c0_52, %c0_53] : memref<1x256xf32, #tpu.memory_space<vmem>>, vector<1x256xf32>
    %162 = vector.broadcast %161 : vector<1x256xf32> to vector<16x256xf32>
    %163 = arith.addf %160, %162 : vector<16x256xf32>
    %164 = arith.addf %0, %163 : vector<16x256xf32>
    %c0_54 = arith.constant 0 : index
    %c0_55 = arith.constant 0 : index
    %165 = vector.load %arg11[%c0_54, %c0_55] : memref<1x256xf32, #tpu.memory_space<vmem>>, vector<1x256xf32>
    %c0_56 = arith.constant 0 : index
    %c0_57 = arith.constant 0 : index
    %166 = vector.load %arg12[%c0_56, %c0_57] : memref<1x256xf32, #tpu.memory_space<vmem>>, vector<1x256xf32>
    %cst_58 = arith.constant dense<0.000000e+00> : vector<16xf32>
    %167 = vector.multi_reduction <add>, %164, %cst_58 [1] : vector<16x256xf32> to vector<16xf32>
    %168 = vector.shape_cast %167 : vector<16xf32> to vector<16x1xf32>
    %cst_59 = arith.constant 2.560000e+02 : f32
    %169 = vector.broadcast %cst_59 : f32 to vector<16x1xf32>
    %170 = arith.divf %168, %169 : vector<16x1xf32>
    %171 = vector.broadcast %170 : vector<16x1xf32> to vector<16x256xf32>
    %172 = arith.subf %164, %171 : vector<16x256xf32>
    %173 = arith.mulf %172, %172 : vector<16x256xf32>
    %cst_60 = arith.constant dense<0.000000e+00> : vector<16xf32>
    %174 = vector.multi_reduction <add>, %173, %cst_60 [1] : vector<16x256xf32> to vector<16xf32>
    %175 = vector.shape_cast %174 : vector<16xf32> to vector<16x1xf32>
    %cst_61 = arith.constant 2.560000e+02 : f32
    %176 = vector.broadcast %cst_61 : f32 to vector<16x1xf32>
    %177 = arith.divf %175, %176 : vector<16x1xf32>
    %178 = vector.broadcast %170 : vector<16x1xf32> to vector<16x256xf32>
    %179 = arith.subf %164, %178 : vector<16x256xf32>
    %cst_62 = arith.constant 9.99999974E-6 : f32
    %180 = vector.broadcast %cst_62 : f32 to vector<16x1xf32>
    %181 = arith.addf %177, %180 : vector<16x1xf32>
    %182 = math.rsqrt %181 : vector<16x1xf32>
    %183 = vector.broadcast %182 : vector<16x1xf32> to vector<16x256xf32>
    %184 = arith.mulf %179, %183 : vector<16x256xf32>
    %185 = vector.broadcast %165 : vector<1x256xf32> to vector<16x256xf32>
    %186 = arith.mulf %184, %185 : vector<16x256xf32>
    %187 = vector.broadcast %166 : vector<1x256xf32> to vector<16x256xf32>
    %188 = arith.addf %186, %187 : vector<16x256xf32>
    %189 = vector.shape_cast %188 : vector<16x256xf32> to vector<2x8x256xf32>
    %cst_63 = arith.constant dense<0.000000e+00> : vector<2x256xf32>
    %190 = vector.multi_reduction <add>, %189, %cst_63 [1] : vector<2x8x256xf32> to vector<2x256xf32>
    %cst_64 = arith.constant 8.000000e+00 : f32
    %191 = vector.broadcast %cst_64 : f32 to vector<2x256xf32>
    %192 = arith.divf %190, %191 : vector<2x256xf32>
    %cst_65 = arith.constant dense<0xFF800000> : vector<2x256xf32>
    %193 = vector.multi_reduction <maximumf>, %189, %cst_65 [1] : vector<2x8x256xf32> to vector<2x256xf32>
    %194 = arith.truncf %192 : vector<2x256xf32> to vector<2x256xbf16>
    %c0_66 = arith.constant 0 : index
    %c0_67 = arith.constant 0 : index
    %195 = vector.load %arg13[%c0_66, %c0_67] : memref<256x128xbf16, #tpu.memory_space<vmem>>, vector<256x128xbf16>
    %cst_68 = arith.constant dense<0.000000e+00> : vector<2x128xf32>
    %196 = tpu.matmul %194, %195, %cst_68 {dimension_numbers = #tpu.dot_dimension_numbers<[1], [0], [0], [1], [0, 0, 1, 1], [], []>} : vector<2x256xbf16>, vector<256x128xbf16>, vector<2x128xf32> -> vector<2x128xf32>
    %197 = arith.truncf %193 : vector<2x256xf32> to vector<2x256xbf16>
    %c0_69 = arith.constant 0 : index
    %c0_70 = arith.constant 0 : index
    %198 = vector.load %arg14[%c0_69, %c0_70] : memref<256x128xbf16, #tpu.memory_space<vmem>>, vector<256x128xbf16>
    %cst_71 = arith.constant dense<0.000000e+00> : vector<2x128xf32>
    %199 = tpu.matmul %197, %198, %cst_71 {dimension_numbers = #tpu.dot_dimension_numbers<[1], [0], [0], [1], [0, 0, 1, 1], [], []>} : vector<2x256xbf16>, vector<256x128xbf16>, vector<2x128xf32> -> vector<2x128xf32>
    %200 = arith.addf %196, %199 : vector<2x128xf32>
    %c0_72 = arith.constant 0 : index
    %c0_73 = arith.constant 0 : index
    %201 = vector.load %arg15[%c0_72, %c0_73] : memref<1x128xf32, #tpu.memory_space<vmem>>, vector<1x128xf32>
    %202 = vector.broadcast %201 : vector<1x128xf32> to vector<2x128xf32>
    %203 = arith.addf %200, %202 : vector<2x128xf32>
    %c0_74 = arith.constant 0 : index
    %c0_75 = arith.constant 0 : index
    %204 = vector.load %arg16[%c0_74, %c0_75] : memref<1x128xf32, #tpu.memory_space<vmem>>, vector<1x128xf32>
    %c0_76 = arith.constant 0 : index
    %c0_77 = arith.constant 0 : index
    %205 = vector.load %arg17[%c0_76, %c0_77] : memref<1x128xf32, #tpu.memory_space<vmem>>, vector<1x128xf32>
    %cst_78 = arith.constant dense<0.000000e+00> : vector<2xf32>
    %206 = vector.multi_reduction <add>, %203, %cst_78 [1] : vector<2x128xf32> to vector<2xf32>
    %207 = vector.shape_cast %206 : vector<2xf32> to vector<2x1xf32>
    %cst_79 = arith.constant 1.280000e+02 : f32
    %208 = vector.broadcast %cst_79 : f32 to vector<2x1xf32>
    %209 = arith.divf %207, %208 : vector<2x1xf32>
    %210 = vector.broadcast %209 : vector<2x1xf32> to vector<2x128xf32>
    %211 = arith.subf %203, %210 : vector<2x128xf32>
    %212 = arith.mulf %211, %211 : vector<2x128xf32>
    %cst_80 = arith.constant dense<0.000000e+00> : vector<2xf32>
    %213 = vector.multi_reduction <add>, %212, %cst_80 [1] : vector<2x128xf32> to vector<2xf32>
    %214 = vector.shape_cast %213 : vector<2xf32> to vector<2x1xf32>
    %cst_81 = arith.constant 1.280000e+02 : f32
    %215 = vector.broadcast %cst_81 : f32 to vector<2x1xf32>
    %216 = arith.divf %214, %215 : vector<2x1xf32>
    %217 = vector.broadcast %209 : vector<2x1xf32> to vector<2x128xf32>
    %218 = arith.subf %203, %217 : vector<2x128xf32>
    %cst_82 = arith.constant 9.99999974E-6 : f32
    %219 = vector.broadcast %cst_82 : f32 to vector<2x1xf32>
    %220 = arith.addf %216, %219 : vector<2x1xf32>
    %221 = math.rsqrt %220 : vector<2x1xf32>
    %222 = vector.broadcast %221 : vector<2x1xf32> to vector<2x128xf32>
    %223 = arith.mulf %218, %222 : vector<2x128xf32>
    %224 = vector.broadcast %204 : vector<1x128xf32> to vector<2x128xf32>
    %225 = arith.mulf %223, %224 : vector<2x128xf32>
    %226 = vector.broadcast %205 : vector<1x128xf32> to vector<2x128xf32>
    %227 = arith.addf %225, %226 : vector<2x128xf32>
    %cst_83 = arith.constant 5.000000e-01 : f32
    %228 = vector.broadcast %cst_83 : f32 to vector<2x128xf32>
    %229 = arith.mulf %228, %227 : vector<2x128xf32>
    %cst_84 = arith.constant 0.707106769 : f32
    %230 = vector.broadcast %cst_84 : f32 to vector<2x128xf32>
    %231 = arith.mulf %227, %230 : vector<2x128xf32>
    %cst_85 = arith.constant 0.000000e+00 : f32
    %232 = vector.broadcast %cst_85 : f32 to vector<2x128xf32>
    %233 = arith.cmpf oge, %231, %232 : vector<2x128xf32>
    %cst_86 = arith.constant 1.000000e+00 : f32
    %cst_87 = arith.constant -1.000000e+00 : f32
    %234 = vector.broadcast %cst_86 : f32 to vector<2x128xf32>
    %235 = vector.broadcast %cst_87 : f32 to vector<2x128xf32>
    %236 = arith.select %233, %234, %235 : vector<2x128xi1>, vector<2x128xf32>
    %237 = math.absf %231 : vector<2x128xf32>
    %cst_88 = arith.constant 0.327591091 : f32
    %238 = vector.broadcast %cst_88 : f32 to vector<2x128xf32>
    %239 = arith.mulf %238, %237 : vector<2x128xf32>
    %cst_89 = arith.constant 1.000000e+00 : f32
    %240 = vector.broadcast %cst_89 : f32 to vector<2x128xf32>
    %241 = arith.addf %240, %239 : vector<2x128xf32>
    %cst_90 = arith.constant 1.000000e+00 : f32
    %242 = vector.broadcast %cst_90 : f32 to vector<2x128xf32>
    %243 = arith.divf %242, %241 : vector<2x128xf32>
    %cst_91 = arith.constant 1.06140542 : f32
    %244 = vector.broadcast %cst_91 : f32 to vector<2x128xf32>
    %245 = arith.mulf %244, %243 : vector<2x128xf32>
    %cst_92 = arith.constant -1.45315206 : f32
    %246 = vector.broadcast %cst_92 : f32 to vector<2x128xf32>
    %247 = arith.addf %245, %246 : vector<2x128xf32>
    %248 = arith.mulf %247, %243 : vector<2x128xf32>
    %cst_93 = arith.constant 1.42141378 : f32
    %249 = vector.broadcast %cst_93 : f32 to vector<2x128xf32>
    %250 = arith.addf %248, %249 : vector<2x128xf32>
    %251 = arith.mulf %250, %243 : vector<2x128xf32>
    %cst_94 = arith.constant -0.284496725 : f32
    %252 = vector.broadcast %cst_94 : f32 to vector<2x128xf32>
    %253 = arith.addf %251, %252 : vector<2x128xf32>
    %254 = arith.mulf %253, %243 : vector<2x128xf32>
    %cst_95 = arith.constant 0.254829586 : f32
    %255 = vector.broadcast %cst_95 : f32 to vector<2x128xf32>
    %256 = arith.addf %254, %255 : vector<2x128xf32>
    %257 = arith.mulf %256, %243 : vector<2x128xf32>
    %cst_96 = arith.constant 0.000000e+00 : f32
    %258 = vector.broadcast %cst_96 : f32 to vector<2x128xf32>
    %259 = arith.subf %258, %237 : vector<2x128xf32>
    %260 = arith.mulf %259, %237 : vector<2x128xf32>
    %261 = math.exp %260 : vector<2x128xf32>
    %262 = arith.mulf %257, %261 : vector<2x128xf32>
    %cst_97 = arith.constant 1.000000e+00 : f32
    %263 = vector.broadcast %cst_97 : f32 to vector<2x128xf32>
    %264 = arith.subf %263, %262 : vector<2x128xf32>
    %265 = arith.mulf %236, %264 : vector<2x128xf32>
    %cst_98 = arith.constant 1.000000e+00 : f32
    %266 = vector.broadcast %cst_98 : f32 to vector<2x128xf32>
    %267 = arith.addf %266, %265 : vector<2x128xf32>
    %268 = arith.mulf %229, %267 : vector<2x128xf32>
    %269 = arith.truncf %268 : vector<2x128xf32> to vector<2x128xbf16>
    %c0_99 = arith.constant 0 : index
    %c0_100 = arith.constant 0 : index
    %270 = vector.load %arg18[%c0_99, %c0_100] : memref<128x128xbf16, #tpu.memory_space<vmem>>, vector<128x128xbf16>
    %cst_101 = arith.constant dense<0.000000e+00> : vector<2x128xf32>
    %271 = tpu.matmul %269, %270, %cst_101 {dimension_numbers = #tpu.dot_dimension_numbers<[1], [0], [0], [1], [0, 0, 1, 1], [], []>} : vector<2x128xbf16>, vector<128x128xbf16>, vector<2x128xf32> -> vector<2x128xf32>
    %c0_102 = arith.constant 0 : index
    %c0_103 = arith.constant 0 : index
    %272 = vector.load %arg19[%c0_102, %c0_103] : memref<1x128xf32, #tpu.memory_space<vmem>>, vector<1x128xf32>
    %273 = vector.broadcast %272 : vector<1x128xf32> to vector<2x128xf32>
    %274 = arith.addf %271, %273 : vector<2x128xf32>
    %c0_104 = arith.constant 0 : index
    %c0_105 = arith.constant 0 : index
    %275 = vector.load %arg20[%c0_104, %c0_105] : memref<2x128xf32, #tpu.memory_space<vmem>>, vector<2x128xf32>
    tpu.vector_store %arg20[%c0_104, %c0_105], %274 {strides = array<i32>} : memref<2x128xf32, #tpu.memory_space<vmem>>, vector<2x128xf32>,
    return
  }
  func.func @transform_0(%arg0: i32) -> (i32, i32) {
    %c0_i32 = arith.constant 0 : i32
    %c0_i32_0 = arith.constant 0 : i32
    return %arg0, %c0_i32 : i32, i32
  }
  func.func @transform_1(%arg0: i32) -> (i32, i32) {
    %c0_i32 = arith.constant 0 : i32
    %c0_i32_0 = arith.constant 0 : i32
    %c0_i32_1 = arith.constant 0 : i32
    return %c0_i32, %c0_i32_0 : i32, i32
  }
  func.func @transform_2(%arg0: i32) -> (i32, i32) {
    %c0_i32 = arith.constant 0 : i32
    %c0_i32_0 = arith.constant 0 : i32
    %c0_i32_1 = arith.constant 0 : i32
    return %c0_i32, %c0_i32_0 : i32, i32
  }
  func.func @transform_3(%arg0: i32) -> (i32, i32) {
    %c0_i32 = arith.constant 0 : i32
    %c0_i32_0 = arith.constant 0 : i32
    %c0_i32_1 = arith.constant 0 : i32
    return %c0_i32, %c0_i32_0 : i32, i32
  }
  func.func @transform_4(%arg0: i32) -> (i32, i32) {
    %c0_i32 = arith.constant 0 : i32
    %c0_i32_0 = arith.constant 0 : i32
    %c0_i32_1 = arith.constant 0 : i32
    return %c0_i32, %c0_i32_0 : i32, i32
  }
  func.func @transform_5(%arg0: i32) -> (i32, i32) {
    %c0_i32 = arith.constant 0 : i32
    %c0_i32_0 = arith.constant 0 : i32
    %c0_i32_1 = arith.constant 0 : i32
    return %c0_i32, %c0_i32_0 : i32, i32
  }
  func.func @transform_6(%arg0: i32) -> (i32, i32) {
    %c0_i32 = arith.constant 0 : i32
    %c0_i32_0 = arith.constant 0 : i32
    %c0_i32_1 = arith.constant 0 : i32
    return %c0_i32, %c0_i32_0 : i32, i32
  }
  func.func @transform_7(%arg0: i32) -> (i32, i32) {
    %c0_i32 = arith.constant 0 : i32
    %c0_i32_0 = arith.constant 0 : i32
    %c0_i32_1 = arith.constant 0 : i32
    return %c0_i32, %c0_i32_0 : i32, i32
  }
  func.func @transform_8(%arg0: i32) -> (i32, i32) {
    %c0_i32 = arith.constant 0 : i32
    %c0_i32_0 = arith.constant 0 : i32
    %c0_i32_1 = arith.constant 0 : i32
    return %c0_i32, %c0_i32_0 : i32, i32
  }
  func.func @transform_9(%arg0: i32) -> (i32, i32) {
    %c0_i32 = arith.constant 0 : i32
    %c0_i32_0 = arith.constant 0 : i32
    %c0_i32_1 = arith.constant 0 : i32
    return %c0_i32, %c0_i32_0 : i32, i32
  }
  func.func @transform_10(%arg0: i32) -> (i32, i32) {
    %c0_i32 = arith.constant 0 : i32
    %c0_i32_0 = arith.constant 0 : i32
    %c0_i32_1 = arith.constant 0 : i32
    return %c0_i32, %c0_i32_0 : i32, i32
  }
  func.func @transform_11(%arg0: i32) -> (i32, i32) {
    %c0_i32 = arith.constant 0 : i32
    %c0_i32_0 = arith.constant 0 : i32
    %c0_i32_1 = arith.constant 0 : i32
    return %c0_i32, %c0_i32_0 : i32, i32
  }
  func.func @transform_12(%arg0: i32) -> (i32, i32) {
    %c0_i32 = arith.constant 0 : i32
    %c0_i32_0 = arith.constant 0 : i32
    %c0_i32_1 = arith.constant 0 : i32
    return %c0_i32, %c0_i32_0 : i32, i32
  }
  func.func @transform_13(%arg0: i32) -> (i32, i32) {
    %c0_i32 = arith.constant 0 : i32
    %c0_i32_0 = arith.constant 0 : i32
    %c0_i32_1 = arith.constant 0 : i32
    return %c0_i32, %c0_i32_0 : i32, i32
  }
  func.func @transform_14(%arg0: i32) -> (i32, i32) {
    %c0_i32 = arith.constant 0 : i32
    %c0_i32_0 = arith.constant 0 : i32
    %c0_i32_1 = arith.constant 0 : i32
    return %c0_i32, %c0_i32_0 : i32, i32
  }
  func.func @transform_15(%arg0: i32) -> (i32, i32) {
    %c0_i32 = arith.constant 0 : i32
    %c0_i32_0 = arith.constant 0 : i32
    %c0_i32_1 = arith.constant 0 : i32
    return %c0_i32, %c0_i32_0 : i32, i32
  }
  func.func @transform_16(%arg0: i32) -> (i32, i32) {
    %c0_i32 = arith.constant 0 : i32
    %c0_i32_0 = arith.constant 0 : i32
    %c0_i32_1 = arith.constant 0 : i32
    return %c0_i32, %c0_i32_0 : i32, i32
  }
  func.func @transform_17(%arg0: i32) -> (i32, i32) {
    %c0_i32 = arith.constant 0 : i32
    %c0_i32_0 = arith.constant 0 : i32
    %c0_i32_1 = arith.constant 0 : i32
    return %c0_i32, %c0_i32_0 : i32, i32
  }
  func.func @transform_18(%arg0: i32) -> (i32, i32) {
    %c0_i32 = arith.constant 0 : i32
    %c0_i32_0 = arith.constant 0 : i32
    %c0_i32_1 = arith.constant 0 : i32
    return %c0_i32, %c0_i32_0 : i32, i32
  }
  func.func @transform_19(%arg0: i32) -> (i32, i32) {
    %c0_i32 = arith.constant 0 : i32
    %c0_i32_0 = arith.constant 0 : i32
    return %arg0, %c0_i32 : i32, i32
  }
}

</mosaic_0001>

<llo_original>
// kernel: tpu_custom_call.1
$region0: #{tpu_custom_call.1}
  #allocation0 [shape = 'u32[]', space=smem, size = 0x4, offset = 0x4, fixed_abs, tag = 'smem constant byte address 0x4 - core index']
  #allocation1 [shape = 'u32[144,128]{1,0:T(1,128)}', space=vmem, size = 0x12000, scoped, tag = 'internal scratch']
  %s0 = inlined_call_operand.hbm [shape: f32[16,256], index: 0, kind: input, shape index: {}]
  %s1 = inlined_call_operand.hbm [shape: f32[16,16], index: 1, kind: input, shape index: {}]
  %s2 = inlined_call_operand.hbm [shape: bf16[256,256], index: 2, kind: input, shape index: {}]
  %s3 = inlined_call_operand.hbm [shape: bf16[256,256], index: 3, kind: input, shape index: {}]
  %s4 = inlined_call_operand.hbm [shape: bf16[256,256], index: 4, kind: input, shape index: {}]
  %s5 = inlined_call_operand.hbm [shape: f32[1,256], index: 5, kind: input, shape index: {}]
  %s6 = inlined_call_operand.hbm [shape: f32[1,256], index: 6, kind: input, shape index: {}]
  %s7 = inlined_call_operand.hbm [shape: f32[1,256], index: 7, kind: input, shape index: {}]
  %s8 = inlined_call_operand.hbm [shape: bf16[256,256], index: 8, kind: input, shape index: {}]
  %s9 = inlined_call_operand.hbm [shape: f32[1,256], index: 9, kind: input, shape index: {}]
  %s10 = inlined_call_operand.hbm [shape: f32[1,256], index: 10, kind: input, shape index: {}]
  %s11 = inlined_call_operand.hbm [shape: f32[1,256], index: 11, kind: input, shape index: {}]
  %s12 = inlined_call_operand.hbm [shape: bf16[256,128], index: 12, kind: input, shape index: {}]
  %s13 = inlined_call_operand.hbm [shape: bf16[256,128], index: 13, kind: input, shape index: {}]
  %s14 = inlined_call_operand.hbm [shape: f32[1,128], index: 14, kind: input, shape index: {}]
  %s15 = inlined_call_operand.hbm [shape: f32[1,128], index: 15, kind: input, shape index: {}]
  %s16 = inlined_call_operand.hbm [shape: f32[1,128], index: 16, kind: input, shape index: {}]
  %s17 = inlined_call_operand.vmem [shape: bf16[128,128], index: 17, kind: input, shape index: {}]
  %s18 = inlined_call_operand.vmem [shape: f32[1,128], index: 18, kind: input, shape index: {}]
  %s19 = inlined_call_operand.hbm [shape: f32[2,128], index: 19, kind: output, shape index: {}]
  %s20 = sld [smem:[#allocation0]]
  $region154: #{tpu_custom_call.1} parent=0
    _
  %s22 = ssub.s32 1, %s20
  %s23 = scalar_select 0, %s22, %s20
  $region1: #{tpu_custom_call.1} parent=0
    #allocation2 [shape = 'u8[16384]{0}', space=vmem, size = 0x4000, scoped, tag = 'input window, operand 0, single buffered']
    #allocation3 [shape = 's32[1]{0}', space=sflag, size = 0x4, scoped, tag = 'scoped memory for tpu_custom_call.1']
    #allocation4 [shape = 's32[1]{0}', space=sflag, size = 0x4, scoped, tag = 'scoped memory for tpu_custom_call.1']
    #allocation5 [shape = 'u8[8192]{0}', space=vmem, size = 0x2000, scoped, tag = 'input window, operand 1, single buffered']
    #allocation6 [shape = 's32[1]{0}', space=sflag, size = 0x4, scoped, tag = 'scoped memory for tpu_custom_call.1']
    #allocation7 [shape = 'u8[131072]{0}', space=vmem, size = 0x20000, scoped, tag = 'input window, operand 2, single buffered']
    #allocation8 [shape = 'u8[131072]{0}', space=vmem, size = 0x20000, scoped, tag = 'input window, operand 3, single buffered']
    #allocation9 [shape = 's32[1]{0}', space=sflag, size = 0x4, scoped, tag = 'scoped memory for tpu_custom_call.1']
    #allocation10 [shape = 'u8[131072]{0}', space=vmem, size = 0x20000, scoped, tag = 'input window, operand 4, single buffered']
    #allocation11 [shape = 'u8[1024]{0}', space=vmem, size = 0x400, scoped, tag = 'input window, operand 5, single buffered']
    #allocation12 [shape = 's32[1]{0}', space=sflag, size = 0x4, scoped, tag = 'scoped memory for tpu_custom_call.1']
    #allocation13 [shape = 'u8[1024]{0}', space=vmem, size = 0x400, scoped, tag = 'input window, operand 6, single buffered']
    #allocation14 [shape = 'u8[1024]{0}', space=vmem, size = 0x400, scoped, tag = 'input window, operand 7, single buffered']
    #allocation15 [shape = 's32[1]{0}', space=sflag, size = 0x4, scoped, tag = 'scoped memory for tpu_custom_call.1']
    #allocation16 [shape = 'u8[131072]{0}', space=vmem, size = 0x20000, scoped, tag = 'input window, operand 8, single buffered']
    #allocation17 [shape = 'u8[1024]{0}', space=vmem, size = 0x400, scoped, tag = 'input window, operand 9, single buffered']
    #allocation18 [shape = 's32[1]{0}', space=sflag, size = 0x4, scoped, tag = 'scoped memory for tpu_custom_call.1']
    #allocation19 [shape = 'u8[1024]{0}', space=vmem, size = 0x400, scoped, tag = 'input window, operand 10, single buffered']
    #allocation20 [shape = 'u8[1024]{0}', space=vmem, size = 0x400, scoped, tag = 'input window, operand 11, single buffered']
    #allocation21 [shape = 's32[1]{0}', space=sflag, size = 0x4, scoped, tag = 'scoped memory for tpu_custom_call.1']
    #allocation22 [shape = 'u8[65536]{0}', space=vmem, size = 0x10000, scoped, tag = 'input window, operand 12, single buffered']
    #allocation23 [shape = 'u8[65536]{0}', space=vmem, size = 0x10000, scoped, tag = 'input window, operand 13, single buffered']
    #allocation24 [shape = 's32[1]{0}', space=sflag, size = 0x4, scoped, tag = 'scoped memory for tpu_custom_call.1']
    #allocation25 [shape = 'u8[512]{0}', space=vmem, size = 0x400, scoped, tag = 'input window, operand 14, single buffered']
    #allocation26 [shape = 'u8[512]{0}', space=vmem, size = 0x400, scoped, tag = 'input window, operand 15, single buffered']
    #allocation27 [shape = 's32[1]{0}', space=sflag, size = 0x4, scoped, tag = 'scoped memory for tpu_custom_call.1']
    #allocation28 [shape = 'u8[512]{0}', space=vmem, size = 0x400, scoped, tag = 'input window, operand 16, single buffered']
    #allocation29 [shape = 'u8[1024]{0}', space=vmem, size = 0x400, scoped, tag = 'output window, operand 0, single buffered']
    %24 = vsyncpa [#allocation3], 0
    %25 = vsyncpa [#allocation6], 0
    %26 = vsyncpa [#allocation9], 0
    %27 = vsyncpa [#allocation12], 0
    %28 = vsyncpa [#allocation15], 0
    %29 = vsyncpa [#allocation18], 0
    %30 = vsyncpa [#allocation21], 0
    %31 = vsyncpa [#allocation24], 0
    %32 = vsyncpa [#allocation27], 0
    %33 = vsyncpa [#allocation4], 0
    // Predicated region
    $region2: #{tpu_custom_call.1} parent=1 // pred_check
      _
    $region3: #{tpu_custom_call.1} parent=1 // pred_check_branch
      %35 = sbr.rel (0) target = $region5
    $region4: #{tpu_custom_call.1} parent=1 // pred_region
      %s37 = ssub.s32 512, 512
      %38 = vsyncadd [#allocation3], %s37
      %s39 = sshll.u32 [#allocation2], 4
      %s40 = int_to_ptr.vmem [resolvable:$true] %s39
      %45 = dma.hbm_to_vmem [thread:$0]  %s0, 512, %s40, [#allocation3], 256, 256, 16
    $region5: #{tpu_custom_call.1} parent=1 // pred_fallthru
      _
    // Predicated region
    $region6: #{tpu_custom_call.1} parent=1 // pred_check
      _
    $region7: #{tpu_custom_call.1} parent=1 // pred_check_branch
      %47 = sbr.rel (0) target = $region9
    $region8: #{tpu_custom_call.1} parent=1 // pred_region
      %s49 = ssub.s32 256, 256
      %50 = vsyncadd [#allocation6], %s49
      %s51 = sshll.u32 [#allocation5], 4
      %s52 = int_to_ptr.vmem [resolvable:$true] %s51
      %57 = dma.hbm_to_vmem [thread:$0]  %s1, 256, %s52, [#allocation6], 128, 128, 8
    $region9: #{tpu_custom_call.1} parent=1 // pred_fallthru
      _
    // Predicated region
    $region10: #{tpu_custom_call.1} parent=1 // pred_check
      _
    $region11: #{tpu_custom_call.1} parent=1 // pred_check_branch
      %59 = sbr.rel (0) target = $region13
    $region12: #{tpu_custom_call.1} parent=1 // pred_region
      %s61 = ssub.s32 4096, 4096
      %62 = vsyncadd [#allocation6], %s61
      %s63 = sshll.u32 [#allocation7], 4
      %s64 = int_to_ptr.vmem [resolvable:$true] %s63
      %69 = dma.hbm_to_vmem [thread:$0]  %s2, 4096, %s64, [#allocation6], 128, 128, 8
    $region13: #{tpu_custom_call.1} parent=1 // pred_fallthru
      _
    // Predicated region
    $region14: #{tpu_custom_call.1} parent=1 // pred_check
      _
    $region15: #{tpu_custom_call.1} parent=1 // pred_check_branch
      %71 = sbr.rel (0) target = $region17
    $region16: #{tpu_custom_call.1} parent=1 // pred_region
      %s73 = ssub.s32 4096, 4096
      %74 = vsyncadd [#allocation9], %s73
      %s75 = sshll.u32 [#allocation8], 4
      %s76 = int_to_ptr.vmem [resolvable:$true] %s75
      %81 = dma.hbm_to_vmem [thread:$0]  %s3, 4096, %s76, [#allocation9], 128, 128, 8
    $region17: #{tpu_custom_call.1} parent=1 // pred_fallthru
      _
    // Predicated region
    $region18: #{tpu_custom_call.1} parent=1 // pred_check
      _
    $region19: #{tpu_custom_call.1} parent=1 // pred_check_branch
      %83 = sbr.rel (0) target = $region21
    $region20: #{tpu_custom_call.1} parent=1 // pred_region
      %s85 = ssub.s32 4096, 4096
      %86 = vsyncadd [#allocation9], %s85
      %s87 = sshll.u32 [#allocation10], 4
      %s88 = int_to_ptr.vmem [resolvable:$true] %s87
      %93 = dma.hbm_to_vmem [thread:$0]  %s4, 4096, %s88, [#allocation9], 128, 128, 8
    $region21: #{tpu_custom_call.1} parent=1 // pred_fallthru
      _
    // Predicated region
    $region22: #{tpu_custom_call.1} parent=1 // pred_check
      _
    $region23: #{tpu_custom_call.1} parent=1 // pred_check_branch
      %95 = sbr.rel (0) target = $region25
    $region24: #{tpu_custom_call.1} parent=1 // pred_region
      %s97 = ssub.s32 32, 32
      %98 = vsyncadd [#allocation12], %s97
      %s100 = sshll.u32 [#allocation11], 4
      %s101 = int_to_ptr.vmem [resolvable:$true] %s100
      %103 = dma.hbm_to_vmem [thread:$0]  %s5, 32, %s101, [#allocation12]
    $region25: #{tpu_custom_call.1} parent=1 // pred_fallthru
      _
    // Predicated region
    $region26: #{tpu_custom_call.1} parent=1 // pred_check
      _
    $region27: #{tpu_custom_call.1} parent=1 // pred_check_branch
      %105 = sbr.rel (0) target = $region29
    $region28: #{tpu_custom_call.1} parent=1 // pred_region
      %s107 = ssub.s32 32, 32
      %108 = vsyncadd [#allocation12], %s107
      %s110 = sshll.u32 [#allocation13], 4
      %s111 = int_to_ptr.vmem [resolvable:$true] %s110
      %113 = dma.hbm_to_vmem [thread:$0]  %s6, 32, %s111, [#allocation12]
    $region29: #{tpu_custom_call.1} parent=1 // pred_fallthru
      _
    // Predicated region
    $region30: #{tpu_custom_call.1} parent=1 // pred_check
      _
    $region31: #{tpu_custom_call.1} parent=1 // pred_check_branch
      %115 = sbr.rel (0) target = $region33
    $region32: #{tpu_custom_call.1} parent=1 // pred_region
      %s117 = ssub.s32 32, 32
      %118 = vsyncadd [#allocation15], %s117
      %s120 = sshll.u32 [#allocation14], 4
      %s121 = int_to_ptr.vmem [resolvable:$true] %s120
      %123 = dma.hbm_to_vmem [thread:$0]  %s7, 32, %s121, [#allocation15]
    $region33: #{tpu_custom_call.1} parent=1 // pred_fallthru
      _
    // Predicated region
    $region34: #{tpu_custom_call.1} parent=1 // pred_check
      _
    $region35: #{tpu_custom_call.1} parent=1 // pred_check_branch
      %125 = sbr.rel (0) target = $region37
    $region36: #{tpu_custom_call.1} parent=1 // pred_region
      %s127 = ssub.s32 4096, 4096
      %128 = vsyncadd [#allocation15], %s127
      %s129 = sshll.u32 [#allocation16], 4
      %s130 = int_to_ptr.vmem [resolvable:$true] %s129
      %135 = dma.hbm_to_vmem [thread:$0]  %s8, 4096, %s130, [#allocation15], 128, 128, 8
    $region37: #{tpu_custom_call.1} parent=1 // pred_fallthru
      _
    // Predicated region
    $region38: #{tpu_custom_call.1} parent=1 // pred_check
      _
    $region39: #{tpu_custom_call.1} parent=1 // pred_check_branch
      %137 = sbr.rel (0) target = $region41
    $region40: #{tpu_custom_call.1} parent=1 // pred_region
      %s139 = ssub.s32 32, 32
      %140 = vsyncadd [#allocation18], %s139
      %s142 = sshll.u32 [#allocation17], 4
      %s143 = int_to_ptr.vmem [resolvable:$true] %s142
      %145 = dma.hbm_to_vmem [thread:$0]  %s9, 32, %s143, [#allocation18]
    $region41: #{tpu_custom_call.1} parent=1 // pred_fallthru
      _
    // Predicated region
    $region42: #{tpu_custom_call.1} parent=1 // pred_check
      _
    $region43: #{tpu_custom_call.1} parent=1 // pred_check_branch
      %147 = sbr.rel (0) target = $region45
    $region44: #{tpu_custom_call.1} parent=1 // pred_region
      %s149 = ssub.s32 32, 32
      %150 = vsyncadd [#allocation18], %s149
      %s152 = sshll.u32 [#allocation19], 4
      %s153 = int_to_ptr.vmem [resolvable:$true] %s152
      %155 = dma.hbm_to_vmem [thread:$0]  %s10, 32, %s153, [#allocation18]
    $region45: #{tpu_custom_call.1} parent=1 // pred_fallthru
      _
    // Predicated region
    $region46: #{tpu_custom_call.1} parent=1 // pred_check
      _
    $region47: #{tpu_custom_call.1} parent=1 // pred_check_branch
      %157 = sbr.rel (0) target = $region49
    $region48: #{tpu_custom_call.1} parent=1 // pred_region
      %s159 = ssub.s32 32, 32
      %160 = vsyncadd [#allocation21], %s159
      %s162 = sshll.u32 [#allocation20], 4
      %s163 = int_to_ptr.vmem [resolvable:$true] %s162
      %165 = dma.hbm_to_vmem [thread:$0]  %s11, 32, %s163, [#allocation21]
    $region49: #{tpu_custom_call.1} parent=1 // pred_fallthru
      _
    // Predicated region
    $region50: #{tpu_custom_call.1} parent=1 // pred_check
      _
    $region51: #{tpu_custom_call.1} parent=1 // pred_check_branch
      %167 = sbr.rel (0) target = $region53
    $region52: #{tpu_custom_call.1} parent=1 // pred_region
      %s169 = ssub.s32 2048, 2048
      %170 = vsyncadd [#allocation21], %s169
      %s171 = sshll.u32 [#allocation22], 4
      %s172 = int_to_ptr.vmem [resolvable:$true] %s171
      %177 = dma.hbm_to_vmem [thread:$0]  %s12, 2048, %s172, [#allocation21], 64, 64, 4
    $region53: #{tpu_custom_call.1} parent=1 // pred_fallthru
      _
    // Predicated region
    $region54: #{tpu_custom_call.1} parent=1 // pred_check
      _
    $region55: #{tpu_custom_call.1} parent=1 // pred_check_branch
      %179 = sbr.rel (0) target = $region57
    $region56: #{tpu_custom_call.1} parent=1 // pred_region
      %s181 = ssub.s32 2048, 2048
      %182 = vsyncadd [#allocation24], %s181
      %s183 = sshll.u32 [#allocation23], 4
      %s184 = int_to_ptr.vmem [resolvable:$true] %s183
      %189 = dma.hbm_to_vmem [thread:$0]  %s13, 2048, %s184, [#allocation24], 64, 64, 4
    $region57: #{tpu_custom_call.1} parent=1 // pred_fallthru
      _
    // Predicated region
    $region58: #{tpu_custom_call.1} parent=1 // pred_check
      _
    $region59: #{tpu_custom_call.1} parent=1 // pred_check_branch
      %191 = sbr.rel (0) target = $region61
    $region60: #{tpu_custom_call.1} parent=1 // pred_region
      %s193 = ssub.s32 16, 16
      %194 = vsyncadd [#allocation24], %s193
      %s196 = sshll.u32 [#allocation25], 4
      %s197 = int_to_ptr.vmem [resolvable:$true] %s196
      %199 = dma.hbm_to_vmem [thread:$0]  %s14, 16, %s197, [#allocation24]
    $region61: #{tpu_custom_call.1} parent=1 // pred_fallthru
      _
    // Predicated region
    $region62: #{tpu_custom_call.1} parent=1 // pred_check
      _
    $region63: #{tpu_custom_call.1} parent=1 // pred_check_branch
      %201 = sbr.rel (0) target = $region65
    $region64: #{tpu_custom_call.1} parent=1 // pred_region
      %s203 = ssub.s32 16, 16
      %204 = vsyncadd [#allocation27], %s203
      %s206 = sshll.u32 [#allocation26], 4
      %s207 = int_to_ptr.vmem [resolvable:$true] %s206
      %209 = dma.hbm_to_vmem [thread:$0]  %s15, 16, %s207, [#allocation27]
    $region65: #{tpu_custom_call.1} parent=1 // pred_fallthru
      _
    // Predicated region
    $region66: #{tpu_custom_call.1} parent=1 // pred_check
      _
    $region67: #{tpu_custom_call.1} parent=1 // pred_check_branch
      %211 = sbr.rel (0) target = $region69
    $region68: #{tpu_custom_call.1} parent=1 // pred_region
      %s213 = ssub.s32 16, 16
      %214 = vsyncadd [#allocation27], %s213
      %s216 = sshll.u32 [#allocation28], 4
      %s217 = int_to_ptr.vmem [resolvable:$true] %s216
      %219 = dma.hbm_to_vmem [thread:$0]  %s16, 16, %s217, [#allocation27]
    $region69: #{tpu_custom_call.1} parent=1 // pred_fallthru
      _
    // Predicated region
    $region70: #{tpu_custom_call.1} parent=1 // pred_check
      _
    $region71: #{tpu_custom_call.1} parent=1 // pred_check_branch
      %221 = sbr.rel (0) target = $region73
    $region72: #{tpu_custom_call.1} parent=1 // pred_region
      _
    $region73: #{tpu_custom_call.1} parent=1 // pred_fallthru
      _
    // Predicated region
    $region74: #{tpu_custom_call.1} parent=1 // pred_check
      _
    $region75: #{tpu_custom_call.1} parent=1 // pred_check_branch
      %223 = sbr.rel (0) target = $region77
    $region76: #{tpu_custom_call.1} parent=1 // pred_region
      _
    $region77: #{tpu_custom_call.1} parent=1 // pred_fallthru
      _
    // Predicated region
    $region78: #{tpu_custom_call.1} parent=1 // pred_check
      _
    $region79: #{tpu_custom_call.1} parent=1 // pred_check_branch
      %225 = sbr.rel (0) target = $region81
    $region80: #{tpu_custom_call.1} parent=1 // pred_region
      %226 = dma.done [#allocation3], 512
    $region81: #{tpu_custom_call.1} parent=1 // pred_fallthru
      _
    // Predicated region
    $region82: #{tpu_custom_call.1} parent=1 // pred_check
      _
    $region83: #{tpu_custom_call.1} parent=1 // pred_check_branch
      %228 = sbr.rel (0) target = $region85
    $region84: #{tpu_custom_call.1} parent=1 // pred_region
      %229 = dma.done [#allocation6], 256
    $region85: #{tpu_custom_call.1} parent=1 // pred_fallthru
      _
    // Predicated region
    $region86: #{tpu_custom_call.1} parent=1 // pred_check
      _
    $region87: #{tpu_custom_call.1} parent=1 // pred_check_branch
      %231 = sbr.rel (0) target = $region89
    $region88: #{tpu_custom_call.1} parent=1 // pred_region
      %232 = dma.done [#allocation6], 4096
    $region89: #{tpu_custom_call.1} parent=1 // pred_fallthru
      _
    // Predicated region
    $region90: #{tpu_custom_call.1} parent=1 // pred_check
      _
    $region91: #{tpu_custom_call.1} parent=1 // pred_check_branch
      %234 = sbr.rel (0) target = $region93
    $region92: #{tpu_custom_call.1} parent=1 // pred_region
      %235 = dma.done [#allocation9], 4096
    $region93: #{tpu_custom_call.1} parent=1 // pred_fallthru
      _
    // Predicated region
    $region94: #{tpu_custom_call.1} parent=1 // pred_check
      _
    $region95: #{tpu_custom_call.1} parent=1 // pred_check_branch
      %237 = sbr.rel (0) target = $region97
    $region96: #{tpu_custom_call.1} parent=1 // pred_region
      %238 = dma.done [#allocation9], 4096
    $region97: #{tpu_custom_call.1} parent=1 // pred_fallthru
      _
    // Predicated region
    $region98: #{tpu_custom_call.1} parent=1 // pred_check
      _
    $region99: #{tpu_custom_call.1} parent=1 // pred_check_branch
      %240 = sbr.rel (0) target = $region101
    $region100: #{tpu_custom_call.1} parent=1 // pred_region
      %241 = dma.done [#allocation12], 32
    $region101: #{tpu_custom_call.1} parent=1 // pred_fallthru
      _
    // Predicated region
    $region102: #{tpu_custom_call.1} parent=1 // pred_check
      _
    $region103: #{tpu_custom_call.1} parent=1 // pred_check_branch
      %243 = sbr.rel (0) target = $region105
    $region104: #{tpu_custom_call.1} parent=1 // pred_region
      %244 = dma.done [#allocation12], 32
    $region105: #{tpu_custom_call.1} parent=1 // pred_fallthru
      _
    // Predicated region
    $region106: #{tpu_custom_call.1} parent=1 // pred_check
      _
    $region107: #{tpu_custom_call.1} parent=1 // pred_check_branch
      %246 = sbr.rel (0) target = $region109
    $region108: #{tpu_custom_call.1} parent=1 // pred_region
      %247 = dma.done [#allocation15], 32
    $region109: #{tpu_custom_call.1} parent=1 // pred_fallthru
      _
    // Predicated region
    $region110: #{tpu_custom_call.1} parent=1 // pred_check
      _
    $region111: #{tpu_custom_call.1} parent=1 // pred_check_branch
      %249 = sbr.rel (0) target = $region113
    $region112: #{tpu_custom_call.1} parent=1 // pred_region
      %250 = dma.done [#allocation15], 4096
    $region113: #{tpu_custom_call.1} parent=1 // pred_fallthru
      _
    // Predicated region
    $region114: #{tpu_custom_call.1} parent=1 // pred_check
      _
    $region115: #{tpu_custom_call.1} parent=1 // pred_check_branch
      %252 = sbr.rel (0) target = $region117
    $region116: #{tpu_custom_call.1} parent=1 // pred_region
      %253 = dma.done [#allocation18], 32
    $region117: #{tpu_custom_call.1} parent=1 // pred_fallthru
      _
    // Predicated region
    $region118: #{tpu_custom_call.1} parent=1 // pred_check
      _
    $region119: #{tpu_custom_call.1} parent=1 // pred_check_branch
      %255 = sbr.rel (0) target = $region121
    $region120: #{tpu_custom_call.1} parent=1 // pred_region
      %256 = dma.done [#allocation18], 32
    $region121: #{tpu_custom_call.1} parent=1 // pred_fallthru
      _
    // Predicated region
    $region122: #{tpu_custom_call.1} parent=1 // pred_check
      _
    $region123: #{tpu_custom_call.1} parent=1 // pred_check_branch
      %258 = sbr.rel (0) target = $region125
    $region124: #{tpu_custom_call.1} parent=1 // pred_region
      %259 = dma.done [#allocation21], 32
    $region125: #{tpu_custom_call.1} parent=1 // pred_fallthru
      _
    // Predicated region
    $region126: #{tpu_custom_call.1} parent=1 // pred_check
      _
    $region127: #{tpu_custom_call.1} parent=1 // pred_check_branch
      %261 = sbr.rel (0) target = $region129
    $region128: #{tpu_custom_call.1} parent=1 // pred_region
      %262 = dma.done [#allocation21], 2048
    $region129: #{tpu_custom_call.1} parent=1 // pred_fallthru
      _
    // Predicated region
    $region130: #{tpu_custom_call.1} parent=1 // pred_check
      _
    $region131: #{tpu_custom_call.1} parent=1 // pred_check_branch
      %264 = sbr.rel (0) target = $region133
    $region132: #{tpu_custom_call.1} parent=1 // pred_region
      %265 = dma.done [#allocation24], 2048
    $region133: #{tpu_custom_call.1} parent=1 // pred_fallthru
      _
    // Predicated region
    $region134: #{tpu_custom_call.1} parent=1 // pred_check
      _
    $region135: #{tpu_custom_call.1} parent=1 // pred_check_branch
      %267 = sbr.rel (0) target = $region137
    $region136: #{tpu_custom_call.1} parent=1 // pred_region
      %268 = dma.done [#allocation24], 16
    $region137: #{tpu_custom_call.1} parent=1 // pred_fallthru
      _
    // Predicated region
    $region138: #{tpu_custom_call.1} parent=1 // pred_check
      _
    $region139: #{tpu_custom_call.1} parent=1 // pred_check_branch
      %270 = sbr.rel (0) target = $region141
    $region140: #{tpu_custom_call.1} parent=1 // pred_region
      %271 = dma.done [#allocation27], 16
    $region141: #{tpu_custom_call.1} parent=1 // pred_fallthru
      _
    // Predicated region
    $region142: #{tpu_custom_call.1} parent=1 // pred_check
      _
    $region143: #{tpu_custom_call.1} parent=1 // pred_check_branch
      %273 = sbr.rel (0) target = $region145
    $region144: #{tpu_custom_call.1} parent=1 // pred_region
      %274 = dma.done [#allocation27], 16
    $region145: #{tpu_custom_call.1} parent=1 // pred_fallthru
      _
    %v276 = vld [vmem:[#allocation2] sm:$0xff]
    %v277 = vld [vmem:[#allocation2 + $0x8] sm:$0xff]
    %v278 = vld [vmem:[#allocation2 + $0x10] sm:$0xff]
    %v279 = vld [vmem:[#allocation2 + $0x18] sm:$0xff]
    %v280 = vpack.c.bf16 %v278, %v276
    %v281 = vpack.c.bf16 %v279, %v277
    %v282 = vld [vmem:[#allocation5] sm:$0xff]
    %v283 = vld [vmem:[#allocation5 + $0x8] sm:$0xff]
    %v284 = vld [vmem:[#allocation7] sm:$0xff]
    %v285 = vld [vmem:[#allocation7 + $0x8] sm:$0xff]
    %v286 = vld [vmem:[#allocation7 + $0x10] sm:$0xff]
    %v287 = vld [vmem:[#allocation7 + $0x18] sm:$0xff]
    %v288 = vld [vmem:[#allocation7 + $0x20] sm:$0xff]
    %v289 = vld [vmem:[#allocation7 + $0x28] sm:$0xff]
    %v290 = vld [vmem:[#allocation7 + $0x30] sm:$0xff]
    %v291 = vld [vmem:[#allocation7 + $0x38] sm:$0xff]
    %v292 = vld [vmem:[#allocation7 + $0x40] sm:$0xff]
    %v293 = vld [vmem:[#allocation7 + $0x48] sm:$0xff]
    %v294 = vld [vmem:[#allocation7 + $0x50] sm:$0xff]
    %v295 = vld [vmem:[#allocation7 + $0x58] sm:$0xff]
    %v296 = vld [vmem:[#allocation7 + $0x60] sm:$0xff]
    %v297 = vld [vmem:[#allocation7 + $0x68] sm:$0xff]
    %v298 = vld [vmem:[#allocation7 + $0x70] sm:$0xff]
    %v299 = vld [vmem:[#allocation7 + $0x78] sm:$0xff]
    %v300 = vld [vmem:[#allocation7 + $0x80] sm:$0xff]
    %v301 = vld [vmem:[#allocation7 + $0x88] sm:$0xff]
    %v302 = vld [vmem:[#allocation7 + $0x90] sm:$0xff]
    %v303 = vld [vmem:[#allocation7 + $0x98] sm:$0xff]
    %v304 = vld [vmem:[#allocation7 + $0xa0] sm:$0xff]
    %v305 = vld [vmem:[#allocation7 + $0xa8] sm:$0xff]
    %v306 = vld [vmem:[#allocation7 + $0xb0] sm:$0xff]
    %v307 = vld [vmem:[#allocation7 + $0xb8] sm:$0xff]
    %v308 = vld [vmem:[#allocation7 + $0xc0] sm:$0xff]
    %v309 = vld [vmem:[#allocation7 + $0xc8] sm:$0xff]
    %v310 = vld [vmem:[#allocation7 + $0xd0] sm:$0xff]
    %v311 = vld [vmem:[#allocation7 + $0xd8] sm:$0xff]
    %v312 = vld [vmem:[#allocation7 + $0xe0] sm:$0xff]
    %v313 = vld [vmem:[#allocation7 + $0xe8] sm:$0xff]
    %v314 = vld [vmem:[#allocation7 + $0xf0] sm:$0xff]
    %v315 = vld [vmem:[#allocation7 + $0xf8] sm:$0xff]
    %v316 = vld [vmem:[#allocation11] sm:$0x3]
    %v318 = vlaneseq
    %v319 = vshrl.u32 %v318, 7
    %v320 = vsub.s32 0, %v319
    %v321 = vrot.slane %v316, %v320
    %v322 = vlaneseq
    %v323 = vshrl.u32 %v322, 7
    %v324 = vsub.s32 1, %v323
    %v325 = vrot.slane %v316, %v324
    %v360 = vunpack.c.l.b16 %v284
    %v361 = vunpack.c.h.b16 %v284
    %v362 = vunpack.c.l.b16 %v285
    %v363 = vunpack.c.h.b16 %v285
    %v364 = vunpack.c.l.b16 %v286
    %v365 = vunpack.c.h.b16 %v286
    %v366 = vunpack.c.l.b16 %v287
    %v367 = vunpack.c.h.b16 %v287
    %v368 = vunpack.c.l.b16 %v288
    %v369 = vunpack.c.h.b16 %v288
    %v370 = vunpack.c.l.b16 %v289
    %v371 = vunpack.c.h.b16 %v289
    %v372 = vunpack.c.l.b16 %v290
    %v373 = vunpack.c.h.b16 %v290
    %v374 = vunpack.c.l.b16 %v291
    %v375 = vunpack.c.h.b16 %v291
    %v376 = vunpack.c.l.b16 %v292
    %v377 = vunpack.c.h.b16 %v292
    %v378 = vunpack.c.l.b16 %v293
    %v379 = vunpack.c.h.b16 %v293
    %v380 = vunpack.c.l.b16 %v294
    %v381 = vunpack.c.h.b16 %v294
    %v382 = vunpack.c.l.b16 %v295
    %v383 = vunpack.c.h.b16 %v295
    %v384 = vunpack.c.l.b16 %v296
    %v385 = vunpack.c.h.b16 %v296
    %v386 = vunpack.c.l.b16 %v297
    %v387 = vunpack.c.h.b16 %v297
    %v388 = vunpack.c.l.b16 %v298
    %v389 = vunpack.c.h.b16 %v298
    %v390 = vunpack.c.l.b16 %v299
    %v391 = vunpack.c.h.b16 %v299
    %v392 = vunpack.c.l.b16 %v300
    %v393 = vunpack.c.h.b16 %v300
    %v394 = vunpack.c.l.b16 %v301
    %v395 = vunpack.c.h.b16 %v301
    %v396 = vunpack.c.l.b16 %v302
    %v397 = vunpack.c.h.b16 %v302
    %v398 = vunpack.c.l.b16 %v303
    %v399 = vunpack.c.h.b16 %v303
    %v400 = vunpack.c.l.b16 %v304
    %v401 = vunpack.c.h.b16 %v304
    %v402 = vunpack.c.l.b16 %v305
    %v403 = vunpack.c.h.b16 %v305
    %v404 = vunpack.c.l.b16 %v306
    %v405 = vunpack.c.h.b16 %v306
    %v406 = vunpack.c.l.b16 %v307
    %v407 = vunpack.c.h.b16 %v307
    %v408 = vunpack.c.l.b16 %v308
    %v409 = vunpack.c.h.b16 %v308
    %v410 = vunpack.c.l.b16 %v309
    %v411 = vunpack.c.h.b16 %v309
    %v412 = vunpack.c.l.b16 %v310
    %v413 = vunpack.c.h.b16 %v310
    %v414 = vunpack.c.l.b16 %v311
    %v415 = vunpack.c.h.b16 %v311
    %v416 = vunpack.c.l.b16 %v312
    %v417 = vunpack.c.h.b16 %v312
    %v418 = vunpack.c.l.b16 %v313
    %v419 = vunpack.c.h.b16 %v313
    %v420 = vunpack.c.l.b16 %v314
    %v421 = vunpack.c.h.b16 %v314
    %v422 = vunpack.c.l.b16 %v315
    %v423 = vunpack.c.h.b16 %v315
    %v424 = vpack.c.b16 %v362, %v360
    %v425 = vpack.c.b16 %v363, %v361
    %v426 = vpack.c.b16 %v366, %v364
    %v427 = vpack.c.b16 %v367, %v365
    %v428 = vpack.c.b16 %v370, %v368
    %v429 = vpack.c.b16 %v371, %v369
    %v430 = vpack.c.b16 %v374, %v372
    %v431 = vpack.c.b16 %v375, %v373
    %v432 = vpack.c.b16 %v378, %v376
    %v433 = vpack.c.b16 %v379, %v377
    %v434 = vpack.c.b16 %v382, %v380
    %v435 = vpack.c.b16 %v383, %v381
    %v436 = vpack.c.b16 %v386, %v384
    %v437 = vpack.c.b16 %v387, %v385
    %v438 = vpack.c.b16 %v390, %v388
    %v439 = vpack.c.b16 %v391, %v389
    %v440 = vpack.c.b16 %v394, %v392
    %v441 = vpack.c.b16 %v395, %v393
    %v442 = vpack.c.b16 %v398, %v396
    %v443 = vpack.c.b16 %v399, %v397
    %v444 = vpack.c.b16 %v402, %v400
    %v445 = vpack.c.b16 %v403, %v401
    %v446 = vpack.c.b16 %v406, %v404
    %v447 = vpack.c.b16 %v407, %v405
    %v448 = vpack.c.b16 %v410, %v408
    %v449 = vpack.c.b16 %v411, %v409
    %v450 = vpack.c.b16 %v414, %v412
    %v451 = vpack.c.b16 %v415, %v413
    %v452 = vpack.c.b16 %v418, %v416
    %v453 = vpack.c.b16 %v419, %v417
    %v454 = vpack.c.b16 %v422, %v420
    %v455 = vpack.c.b16 %v423, %v421
    %488 = vmatprep.subr.bf16.mxu0 %v425
    %489 = vmatpush1.bf16.msra.mxu0 %v424
    %490 = vmatprep.subr.bf16.mxu0 %v427
    %491 = vmatpush1.bf16.msra.mxu0 %v426
    %492 = vmatprep.subr.bf16.mxu0 %v429
    %493 = vmatpush1.bf16.msra.mxu0 %v428
    %494 = vmatprep.subr.bf16.mxu0 %v431
    %495 = vmatpush1.bf16.msra.mxu0 %v430
    %496 = vmatprep.subr.bf16.mxu0 %v433
    %497 = vmatpush1.bf16.msra.mxu0 %v432
    %498 = vmatprep.subr.bf16.mxu0 %v435
    %499 = vmatpush1.bf16.msra.mxu0 %v434
    %500 = vmatprep.subr.bf16.mxu0 %v437
    %501 = vmatpush1.bf16.msra.mxu0 %v436
    %502 = vmatprep.subr.bf16.mxu0 %v439
    %503 = vmatpush1.bf16.msra.mxu0 %v438
    %504 = vmatprep.subr.bf16.mxu0 %v441
    %505 = vmatpush1.bf16.msra.mxu0 %v440
    %506 = vmatprep.subr.bf16.mxu0 %v443
    %507 = vmatpush1.bf16.msra.mxu0 %v442
    %508 = vmatprep.subr.bf16.mxu0 %v445
    %509 = vmatpush1.bf16.msra.mxu0 %v444
    %510 = vmatprep.subr.bf16.mxu0 %v447
    %511 = vmatpush1.bf16.msra.mxu0 %v446
    %512 = vmatprep.subr.bf16.mxu0 %v449
    %513 = vmatpush1.bf16.msra.mxu0 %v448
    %514 = vmatprep.subr.bf16.mxu0 %v451
    %515 = vmatpush1.bf16.msra.mxu0 %v450
    %516 = vmatprep.subr.bf16.mxu0 %v453
    %517 = vmatpush1.bf16.msra.mxu0 %v452
    %518 = vmatprep.subr.bf16.mxu0 %v455
    %519 = vmatpush1.bf16.msra.mxu0 %v454
    %520 = vmatprep.mubr.bf16.mxu0 %v281
    %521 = vmatmul.mubr.bf16.gmra.mrb[0].mxu0 %v280
    %v522 = vpop.f32.mrb[0].mxu0
    %v523 = vadd.f32 %v321, %v522
    %v524 = vpop.f32.mrb[0].mxu0
    %v525 = vadd.f32 %v325, %v524
    %v526 = vpop.f32.mrb[0].mxu0
    %v527 = vadd.f32 %v321, %v526
    %v528 = vpop.f32.mrb[0].mxu0
    %v529 = vadd.f32 %v325, %v528
    %530 = vdwg.mxu0
    %v531 = vld [vmem:[#allocation8] sm:$0xff]
    %v532 = vld [vmem:[#allocation8 + $0x8] sm:$0xff]
    %v533 = vld [vmem:[#allocation8 + $0x10] sm:$0xff]
    %v534 = vld [vmem:[#allocation8 + $0x18] sm:$0xff]
    %v535 = vld [vmem:[#allocation8 + $0x20] sm:$0xff]
    %v536 = vld [vmem:[#allocation8 + $0x28] sm:$0xff]
    %v537 = vld [vmem:[#allocation8 + $0x30] sm:$0xff]
    %v538 = vld [vmem:[#allocation8 + $0x38] sm:$0xff]
    %v539 = vld [vmem:[#allocation8 + $0x40] sm:$0xff]
    %v540 = vld [vmem:[#allocation8 + $0x48] sm:$0xff]
    %v541 = vld [vmem:[#allocation8 + $0x50] sm:$0xff]
    %v542 = vld [vmem:[#allocation8 + $0x58] sm:$0xff]
    %v543 = vld [vmem:[#allocation8 + $0x60] sm:$0xff]
    %v544 = vld [vmem:[#allocation8 + $0x68] sm:$0xff]
    %v545 = vld [vmem:[#allocation8 + $0x70] sm:$0xff]
    %v546 = vld [vmem:[#allocation8 + $0x78] sm:$0xff]
    %v547 = vld [vmem:[#allocation8 + $0x80] sm:$0xff]
    %v548 = vld [vmem:[#allocation8 + $0x88] sm:$0xff]
    %v549 = vld [vmem:[#allocation8 + $0x90] sm:$0xff]
    %v550 = vld [vmem:[#allocation8 + $0x98] sm:$0xff]
    %v551 = vld [vmem:[#allocation8 + $0xa0] sm:$0xff]
    %v552 = vld [vmem:[#allocation8 + $0xa8] sm:$0xff]
    %v553 = vld [vmem:[#allocation8 + $0xb0] sm:$0xff]
    %v554 = vld [vmem:[#allocation8 + $0xb8] sm:$0xff]
    %v555 = vld [vmem:[#allocation8 + $0xc0] sm:$0xff]
    %v556 = vld [vmem:[#allocation8 + $0xc8] sm:$0xff]
    %v557 = vld [vmem:[#allocation8 + $0xd0] sm:$0xff]
    %v558 = vld [vmem:[#allocation8 + $0xd8] sm:$0xff]
    %v559 = vld [vmem:[#allocation8 + $0xe0] sm:$0xff]
    %v560 = vld [vmem:[#allocation8 + $0xe8] sm:$0xff]
    %v561 = vld [vmem:[#allocation8 + $0xf0] sm:$0xff]
    %v562 = vld [vmem:[#allocation8 + $0xf8] sm:$0xff]
    %v563 = vld [vmem:[#allocation13] sm:$0x3]
    %v565 = vlaneseq
    %v566 = vshrl.u32 %v565, 7
    %v567 = vsub.s32 0, %v566
    %v568 = vrot.slane %v563, %v567
    %v569 = vlaneseq
    %v570 = vshrl.u32 %v569, 7
    %v571 = vsub.s32 1, %v570
    %v572 = vrot.slane %v563, %v571
    %v607 = vunpack.c.l.b16 %v531
    %v608 = vunpack.c.h.b16 %v531
    %v609 = vunpack.c.l.b16 %v532
    %v610 = vunpack.c.h.b16 %v532
    %v611 = vunpack.c.l.b16 %v533
    %v612 = vunpack.c.h.b16 %v533
    %v613 = vunpack.c.l.b16 %v534
    %v614 = vunpack.c.h.b16 %v534
    %v615 = vunpack.c.l.b16 %v535
    %v616 = vunpack.c.h.b16 %v535
    %v617 = vunpack.c.l.b16 %v536
    %v618 = vunpack.c.h.b16 %v536
    %v619 = vunpack.c.l.b16 %v537
    %v620 = vunpack.c.h.b16 %v537
    %v621 = vunpack.c.l.b16 %v538
    %v622 = vunpack.c.h.b16 %v538
    %v623 = vunpack.c.l.b16 %v539
    %v624 = vunpack.c.h.b16 %v539
    %v625 = vunpack.c.l.b16 %v540
    %v626 = vunpack.c.h.b16 %v540
    %v627 = vunpack.c.l.b16 %v541
    %v628 = vunpack.c.h.b16 %v541
    %v629 = vunpack.c.l.b16 %v542
    %v630 = vunpack.c.h.b16 %v542
    %v631 = vunpack.c.l.b16 %v543
    %v632 = vunpack.c.h.b16 %v543
    %v633 = vunpack.c.l.b16 %v544
    %v634 = vunpack.c.h.b16 %v544
    %v635 = vunpack.c.l.b16 %v545
    %v636 = vunpack.c.h.b16 %v545
    %v637 = vunpack.c.l.b16 %v546
    %v638 = vunpack.c.h.b16 %v546
    %v639 = vunpack.c.l.b16 %v547
    %v640 = vunpack.c.h.b16 %v547
    %v641 = vunpack.c.l.b16 %v548
    %v642 = vunpack.c.h.b16 %v548
    %v643 = vunpack.c.l.b16 %v549
    %v644 = vunpack.c.h.b16 %v549
    %v645 = vunpack.c.l.b16 %v550
    %v646 = vunpack.c.h.b16 %v550
    %v647 = vunpack.c.l.b16 %v551
    %v648 = vunpack.c.h.b16 %v551
    %v649 = vunpack.c.l.b16 %v552
    %v650 = vunpack.c.h.b16 %v552
    %v651 = vunpack.c.l.b16 %v553
    %v652 = vunpack.c.h.b16 %v553
    %v653 = vunpack.c.l.b16 %v554
    %v654 = vunpack.c.h.b16 %v554
    %v655 = vunpack.c.l.b16 %v555
    %v656 = vunpack.c.h.b16 %v555
    %v657 = vunpack.c.l.b16 %v556
    %v658 = vunpack.c.h.b16 %v556
    %v659 = vunpack.c.l.b16 %v557
    %v660 = vunpack.c.h.b16 %v557
    %v661 = vunpack.c.l.b16 %v558
    %v662 = vunpack.c.h.b16 %v558
    %v663 = vunpack.c.l.b16 %v559
    %v664 = vunpack.c.h.b16 %v559
    %v665 = vunpack.c.l.b16 %v560
    %v666 = vunpack.c.h.b16 %v560
    %v667 = vunpack.c.l.b16 %v561
    %v668 = vunpack.c.h.b16 %v561
    %v669 = vunpack.c.l.b16 %v562
    %v670 = vunpack.c.h.b16 %v562
    %v671 = vpack.c.b16 %v609, %v607
    %v672 = vpack.c.b16 %v610, %v608
    %v673 = vpack.c.b16 %v613, %v611
    %v674 = vpack.c.b16 %v614, %v612
    %v675 = vpack.c.b16 %v617, %v615
    %v676 = vpack.c.b16 %v618, %v616
    %v677 = vpack.c.b16 %v621, %v619
    %v678 = vpack.c.b16 %v622, %v620
    %v679 = vpack.c.b16 %v625, %v623
    %v680 = vpack.c.b16 %v626, %v624
    %v681 = vpack.c.b16 %v629, %v627
    %v682 = vpack.c.b16 %v630, %v628
    %v683 = vpack.c.b16 %v633, %v631
    %v684 = vpack.c.b16 %v634, %v632
    %v685 = vpack.c.b16 %v637, %v635
    %v686 = vpack.c.b16 %v638, %v636
    %v687 = vpack.c.b16 %v641, %v639
    %v688 = vpack.c.b16 %v642, %v640
    %v689 = vpack.c.b16 %v645, %v643
    %v690 = vpack.c.b16 %v646, %v644
    %v691 = vpack.c.b16 %v649, %v647
    %v692 = vpack.c.b16 %v650, %v648
    %v693 = vpack.c.b16 %v653, %v651
    %v694 = vpack.c.b16 %v654, %v652
    %v695 = vpack.c.b16 %v657, %v655
    %v696 = vpack.c.b16 %v658, %v656
    %v697 = vpack.c.b16 %v661, %v659
    %v698 = vpack.c.b16 %v662, %v660
    %v699 = vpack.c.b16 %v665, %v663
    %v700 = vpack.c.b16 %v666, %v664
    %v701 = vpack.c.b16 %v669, %v667
    %v702 = vpack.c.b16 %v670, %v668
    %735 = vmatprep.subr.bf16.mxu0 %v672
    %736 = vmatpush1.bf16.msra.mxu0 %v671
    %737 = vmatprep.subr.bf16.mxu0 %v674
    %738 = vmatpush1.bf16.msra.mxu0 %v673
    %739 = vmatprep.subr.bf16.mxu0 %v676
    %740 = vmatpush1.bf16.msra.mxu0 %v675
    %741 = vmatprep.subr.bf16.mxu0 %v678
    %742 = vmatpush1.bf16.msra.mxu0 %v677
    %743 = vmatprep.subr.bf16.mxu0 %v680
    %744 = vmatpush1.bf16.msra.mxu0 %v679
    %745 = vmatprep.subr.bf16.mxu0 %v682
    %746 = vmatpush1.bf16.msra.mxu0 %v681
    %747 = vmatprep.subr.bf16.mxu0 %v684
    %748 = vmatpush1.bf16.msra.mxu0 %v683
    %749 = vmatprep.subr.bf16.mxu0 %v686
    %750 = vmatpush1.bf16.msra.mxu0 %v685
    %751 = vmatprep.subr.bf16.mxu0 %v688
    %752 = vmatpush1.bf16.msra.mxu0 %v687
    %753 = vmatprep.subr.bf16.mxu0 %v690
    %754 = vmatpush1.bf16.msra.mxu0 %v689
    %755 = vmatprep.subr.bf16.mxu0 %v692
    %756 = vmatpush1.bf16.msra.mxu0 %v691
    %757 = vmatprep.subr.bf16.mxu0 %v694
    %758 = vmatpush1.bf16.msra.mxu0 %v693
    %759 = vmatprep.subr.bf16.mxu0 %v696
    %760 = vmatpush1.bf16.msra.mxu0 %v695
    %761 = vmatprep.subr.bf16.mxu0 %v698
    %762 = vmatpush1.bf16.msra.mxu0 %v697
    %763 = vmatprep.subr.bf16.mxu0 %v700
    %764 = vmatpush1.bf16.msra.mxu0 %v699
    %765 = vmatprep.subr.bf16.mxu0 %v702
    %766 = vmatpush1.bf16.msra.mxu0 %v701
    %767 = vmatprep.mubr.bf16.mxu0 %v281
    %768 = vmatmul.mubr.bf16.gmra.mrb[0].mxu0 %v280
    %v769 = vpop.f32.mrb[0].mxu0
    %v770 = vadd.f32 %v568, %v769
    %v771 = vpop.f32.mrb[0].mxu0
    %v772 = vadd.f32 %v572, %v771
    %v773 = vpop.f32.mrb[0].mxu0
    %v774 = vadd.f32 %v568, %v773
    %v775 = vpop.f32.mrb[0].mxu0
    %v776 = vadd.f32 %v572, %v775
    %777 = vdwg.mxu0
    %v778 = vld [vmem:[#allocation10] sm:$0xff]
    %v779 = vld [vmem:[#allocation10 + $0x8] sm:$0xff]
    %v780 = vld [vmem:[#allocation10 + $0x10] sm:$0xff]
    %v781 = vld [vmem:[#allocation10 + $0x18] sm:$0xff]
    %v782 = vld [vmem:[#allocation10 + $0x20] sm:$0xff]
    %v783 = vld [vmem:[#allocation10 + $0x28] sm:$0xff]
    %v784 = vld [vmem:[#allocation10 + $0x30] sm:$0xff]
    %v785 = vld [vmem:[#allocation10 + $0x38] sm:$0xff]
    %v786 = vld [vmem:[#allocation10 + $0x40] sm:$0xff]
    %v787 = vld [vmem:[#allocation10 + $0x48] sm:$0xff]
    %v788 = vld [vmem:[#allocation10 + $0x50] sm:$0xff]
    %v789 = vld [vmem:[#allocation10 + $0x58] sm:$0xff]
    %v790 = vld [vmem:[#allocation10 + $0x60] sm:$0xff]
    %v791 = vld [vmem:[#allocation10 + $0x68] sm:$0xff]
    %v792 = vld [vmem:[#allocation10 + $0x70] sm:$0xff]
    %v793 = vld [vmem:[#allocation10 + $0x78] sm:$0xff]
    %v794 = vld [vmem:[#allocation10 + $0x80] sm:$0xff]
    %v795 = vld [vmem:[#allocation10 + $0x88] sm:$0xff]
    %v796 = vld [vmem:[#allocation10 + $0x90] sm:$0xff]
    %v797 = vld [vmem:[#allocation10 + $0x98] sm:$0xff]
    %v798 = vld [vmem:[#allocation10 + $0xa0] sm:$0xff]
    %v799 = vld [vmem:[#allocation10 + $0xa8] sm:$0xff]
    %v800 = vld [vmem:[#allocation10 + $0xb0] sm:$0xff]
    %v801 = vld [vmem:[#allocation10 + $0xb8] sm:$0xff]
    %v802 = vld [vmem:[#allocation10 + $0xc0] sm:$0xff]
    %v803 = vld [vmem:[#allocation10 + $0xc8] sm:$0xff]
    %v804 = vld [vmem:[#allocation10 + $0xd0] sm:$0xff]
    %v805 = vld [vmem:[#allocation10 + $0xd8] sm:$0xff]
    %v806 = vld [vmem:[#allocation10 + $0xe0] sm:$0xff]
    %v807 = vld [vmem:[#allocation10 + $0xe8] sm:$0xff]
    %v808 = vld [vmem:[#allocation10 + $0xf0] sm:$0xff]
    %v809 = vld [vmem:[#allocation10 + $0xf8] sm:$0xff]
    %v810 = vld [vmem:[#allocation14] sm:$0x3]
    %v812 = vlaneseq
    %v813 = vshrl.u32 %v812, 7
    %v814 = vsub.s32 0, %v813
    %v815 = vrot.slane %v810, %v814
    %v816 = vlaneseq
    %v817 = vshrl.u32 %v816, 7
    %v818 = vsub.s32 1, %v817
    %v819 = vrot.slane %v810, %v818
    %v854 = vunpack.c.l.b16 %v778
    %v855 = vunpack.c.h.b16 %v778
    %v856 = vunpack.c.l.b16 %v779
    %v857 = vunpack.c.h.b16 %v779
    %v858 = vunpack.c.l.b16 %v780
    %v859 = vunpack.c.h.b16 %v780
    %v860 = vunpack.c.l.b16 %v781
    %v861 = vunpack.c.h.b16 %v781
    %v862 = vunpack.c.l.b16 %v782
    %v863 = vunpack.c.h.b16 %v782
    %v864 = vunpack.c.l.b16 %v783
    %v865 = vunpack.c.h.b16 %v783
    %v866 = vunpack.c.l.b16 %v784
    %v867 = vunpack.c.h.b16 %v784
    %v868 = vunpack.c.l.b16 %v785
    %v869 = vunpack.c.h.b16 %v785
    %v870 = vunpack.c.l.b16 %v786
    %v871 = vunpack.c.h.b16 %v786
    %v872 = vunpack.c.l.b16 %v787
    %v873 = vunpack.c.h.b16 %v787
    %v874 = vunpack.c.l.b16 %v788
    %v875 = vunpack.c.h.b16 %v788
    %v876 = vunpack.c.l.b16 %v789
    %v877 = vunpack.c.h.b16 %v789
    %v878 = vunpack.c.l.b16 %v790
    %v879 = vunpack.c.h.b16 %v790
    %v880 = vunpack.c.l.b16 %v791
    %v881 = vunpack.c.h.b16 %v791
    %v882 = vunpack.c.l.b16 %v792
    %v883 = vunpack.c.h.b16 %v792
    %v884 = vunpack.c.l.b16 %v793
    %v885 = vunpack.c.h.b16 %v793
    %v886 = vunpack.c.l.b16 %v794
    %v887 = vunpack.c.h.b16 %v794
    %v888 = vunpack.c.l.b16 %v795
    %v889 = vunpack.c.h.b16 %v795
    %v890 = vunpack.c.l.b16 %v796
    %v891 = vunpack.c.h.b16 %v796
    %v892 = vunpack.c.l.b16 %v797
    %v893 = vunpack.c.h.b16 %v797
    %v894 = vunpack.c.l.b16 %v798
    %v895 = vunpack.c.h.b16 %v798
    %v896 = vunpack.c.l.b16 %v799
    %v897 = vunpack.c.h.b16 %v799
    %v898 = vunpack.c.l.b16 %v800
    %v899 = vunpack.c.h.b16 %v800
    %v900 = vunpack.c.l.b16 %v801
    %v901 = vunpack.c.h.b16 %v801
    %v902 = vunpack.c.l.b16 %v802
    %v903 = vunpack.c.h.b16 %v802
    %v904 = vunpack.c.l.b16 %v803
    %v905 = vunpack.c.h.b16 %v803
    %v906 = vunpack.c.l.b16 %v804
    %v907 = vunpack.c.h.b16 %v804
    %v908 = vunpack.c.l.b16 %v805
    %v909 = vunpack.c.h.b16 %v805
    %v910 = vunpack.c.l.b16 %v806
    %v911 = vunpack.c.h.b16 %v806
    %v912 = vunpack.c.l.b16 %v807
    %v913 = vunpack.c.h.b16 %v807
    %v914 = vunpack.c.l.b16 %v808
    %v915 = vunpack.c.h.b16 %v808
    %v916 = vunpack.c.l.b16 %v809
    %v917 = vunpack.c.h.b16 %v809
    %v918 = vpack.c.b16 %v856, %v854
    %v919 = vpack.c.b16 %v857, %v855
    %v920 = vpack.c.b16 %v860, %v858
    %v921 = vpack.c.b16 %v861, %v859
    %v922 = vpack.c.b16 %v864, %v862
    %v923 = vpack.c.b16 %v865, %v863
    %v924 = vpack.c.b16 %v868, %v866
    %v925 = vpack.c.b16 %v869, %v867
    %v926 = vpack.c.b16 %v872, %v870
    %v927 = vpack.c.b16 %v873, %v871
    %v928 = vpack.c.b16 %v876, %v874
    %v929 = vpack.c.b16 %v877, %v875
    %v930 = vpack.c.b16 %v880, %v878
    %v931 = vpack.c.b16 %v881, %v879
    %v932 = vpack.c.b16 %v884, %v882
    %v933 = vpack.c.b16 %v885, %v883
    %v934 = vpack.c.b16 %v888, %v886
    %v935 = vpack.c.b16 %v889, %v887
    %v936 = vpack.c.b16 %v892, %v890
    %v937 = vpack.c.b16 %v893, %v891
    %v938 = vpack.c.b16 %v896, %v894
    %v939 = vpack.c.b16 %v897, %v895
    %v940 = vpack.c.b16 %v900, %v898
    %v941 = vpack.c.b16 %v901, %v899
    %v942 = vpack.c.b16 %v904, %v902
    %v943 = vpack.c.b16 %v905, %v903
    %v944 = vpack.c.b16 %v908, %v906
    %v945 = vpack.c.b16 %v909, %v907
    %v946 = vpack.c.b16 %v912, %v910
    %v947 = vpack.c.b16 %v913, %v911
    %v948 = vpack.c.b16 %v916, %v914
    %v949 = vpack.c.b16 %v917, %v915
    %982 = vmatprep.subr.bf16.mxu0 %v919
    %983 = vmatpush1.bf16.msra.mxu0 %v918
    %984 = vmatprep.subr.bf16.mxu0 %v921
    %985 = vmatpush1.bf16.msra.mxu0 %v920
    %986 = vmatprep.subr.bf16.mxu0 %v923
    %987 = vmatpush1.bf16.msra.mxu0 %v922
    %988 = vmatprep.subr.bf16.mxu0 %v925
    %989 = vmatpush1.bf16.msra.mxu0 %v924
    %990 = vmatprep.subr.bf16.mxu0 %v927
    %991 = vmatpush1.bf16.msra.mxu0 %v926
    %992 = vmatprep.subr.bf16.mxu0 %v929
    %993 = vmatpush1.bf16.msra.mxu0 %v928
    %994 = vmatprep.subr.bf16.mxu0 %v931
    %995 = vmatpush1.bf16.msra.mxu0 %v930
    %996 = vmatprep.subr.bf16.mxu0 %v933
    %997 = vmatpush1.bf16.msra.mxu0 %v932
    %998 = vmatprep.subr.bf16.mxu0 %v935
    %999 = vmatpush1.bf16.msra.mxu0 %v934
    %1000 = vmatprep.subr.bf16.mxu0 %v937
    %1001 = vmatpush1.bf16.msra.mxu0 %v936
    %1002 = vmatprep.subr.bf16.mxu0 %v939
    %1003 = vmatpush1.bf16.msra.mxu0 %v938
    %1004 = vmatprep.subr.bf16.mxu0 %v941
    %1005 = vmatpush1.bf16.msra.mxu0 %v940
    %1006 = vmatprep.subr.bf16.mxu0 %v943
    %1007 = vmatpush1.bf16.msra.mxu0 %v942
    %1008 = vmatprep.subr.bf16.mxu0 %v945
    %1009 = vmatpush1.bf16.msra.mxu0 %v944
    %1010 = vmatprep.subr.bf16.mxu0 %v947
    %1011 = vmatpush1.bf16.msra.mxu0 %v946
    %1012 = vmatprep.subr.bf16.mxu0 %v949
    %1013 = vmatpush1.bf16.msra.mxu0 %v948
    %1014 = vmatprep.mubr.bf16.mxu0 %v281
    %1015 = vmatmul.mubr.bf16.gmra.mrb[0].mxu0 %v280
    %v1016 = vpop.f32.mrb[0].mxu0
    %v1017 = vadd.f32 %v815, %v1016
    %v1018 = vpop.f32.mrb[0].mxu0
    %v1019 = vadd.f32 %v819, %v1018
    %v1020 = vpop.f32.mrb[0].mxu0
    %v1021 = vadd.f32 %v815, %v1020
    %v1022 = vpop.f32.mrb[0].mxu0
    %v1023 = vadd.f32 %v819, %v1022
    %1024 = vdwg.mxu0
    %v1025 = vpack.c.bf16 %v527, %v523
    %v1026 = vpack.c.bf16 %v529, %v525
    %v1027 = vpack.c.bf16 %v774, %v770
    %v1028 = vpack.c.bf16 %v776, %v772
    %v1029 = vpack.c.bf16 %v1021, %v1017
    %v1030 = vpack.c.bf16 %v1023, %v1019
    %vm1031 = vcmask 261120
    %v1033 = vsel %vm1031, %v1025, 0
    %v1036 = vsel %vm1031, %v1027, 0
    %1038 = vmatprep.subr.bf16.mxu0 0
    %1039 = vmatpush1.bf16.xpose.msra.mxu0 %v1036
    %1040 = vmatprep.subr.bf16.mxu0 0
    %1041 = vmatpush1.bf16.xpose.msra.mxu0 0
    %1042 = vmatprep.subr.bf16.mxu0 0
    %1043 = vmatpush1.bf16.xpose.msra.mxu0 0
    %1044 = vmatprep.subr.bf16.mxu0 0
    %1045 = vmatpush1.bf16.xpose.msra.mxu0 0
    %1046 = vmatprep.subr.bf16.mxu0 0
    %1047 = vmatpush1.bf16.xpose.msra.mxu0 0
    %1048 = vmatprep.subr.bf16.mxu0 0
    %1049 = vmatpush1.bf16.xpose.msra.mxu0 0
    %1050 = vmatprep.subr.bf16.mxu0 0
    %1051 = vmatpush1.bf16.xpose.msra.mxu0 0
    %1052 = vmatprep.subr.bf16.mxu0 0
    %1053 = vmatpush1.bf16.xpose.msra.mxu0 0
    %1054 = vmatprep.subr.bf16.mxu0 0
    %1055 = vmatpush1.bf16.xpose.msra.mxu0 0
    %1056 = vmatprep.subr.bf16.mxu0 0
    %1057 = vmatpush1.bf16.xpose.msra.mxu0 0
    %1058 = vmatprep.subr.bf16.mxu0 0
    %1059 = vmatpush1.bf16.xpose.msra.mxu0 0
    %1060 = vmatprep.subr.bf16.mxu0 0
    %1061 = vmatpush1.bf16.xpose.msra.mxu0 0
    %1062 = vmatprep.subr.bf16.mxu0 0
    %1063 = vmatpush1.bf16.xpose.msra.mxu0 0
    %1064 = vmatprep.subr.bf16.mxu0 0
    %1065 = vmatpush1.bf16.xpose.msra.mxu0 0
    %1066 = vmatprep.subr.bf16.mxu0 0
    %1067 = vmatpush1.bf16.xpose.msra.mxu0 0
    %1068 = vmatprep.subr.bf16.mxu0 0
    %1069 = vmatpush1.bf16.xpose.msra.mxu0 0
    %1070 = vmatprep.mubr.bf16.mxu0 0
    %1071 = vmatmul.mubr.bf16.gmra.mrb[0].mxu0 %v1033
    %v1072 = vpop.f32.mrb[0].mxu0
    %v1073 = vadd.f32 %v282, %v1072
    %v1074 = vpop.f32.mrb[0].mxu0
    %v1075 = vpop.f32.mrb[0].mxu0
    %v1076 = vadd.f32 %v283, %v1075
    %v1077 = vpop.f32.mrb[0].mxu0
    %1078 = vdwg.mxu0
    %vm1079 = vcmask 130048
    %v1080 = vsel %vm1079, %v1073, -inf
    %1081 = vmax.xlane.f32.xlu0 %v1080
    %v1082 = vpop.xlane.xlu0 %1081
    %v1083 = vsel %vm1079, %v1076, -inf
    %1084 = vmax.xlane.f32.xlu0 %v1083
    %v1085 = vpop.xlane.xlu0 %1084
    %v1086 = vsub.f32 %v1073, %v1082
    %v1087 = vsub.f32 %v1076, %v1085
    %v1088 = vmul.f32 %v1086, 1.442695
    %v1089 = vpow.pop %v1088
    %v1090 = vmul.f32 %v1087, 1.442695
    %v1091 = vpow.pop %v1090
    %v1092 = vsel %vm1079, %v1089, 0.0
    %1093 = vadd.xlane.f32.xlu0 %v1092
    %v1094 = vpop.xlane.xlu0 %1093
    %v1095 = vsel %vm1079, %v1091, 0.0
    %1096 = vadd.xlane.f32.xlu0 %v1095
    %v1097 = vpop.xlane.xlu0 %1096
    %v1098 = vrcp.pop %v1094
    %v1099 = vrcp.pop %v1097
    %v1100 = vmul.f32 %v1089, %v1098
    %v1101 = vmul.f32 %v1091, %v1099
    %v1102 = vpack.c.bf16 %v1101, %v1100
    %v1104 = vsel %vm1079, %v1102, 0
    %1106 = vmatprep.subr.bf16.mxu0 0
    %1107 = vmatpush1.bf16.msra.mxu0 %v1029
    %1108 = vmatprep.subr.bf16.mxu0 0
    %1109 = vmatpush1.bf16.msra.mxu0 0
    %1110 = vmatprep.subr.bf16.mxu0 0
    %1111 = vmatpush1.bf16.msra.mxu0 0
    %1112 = vmatprep.subr.bf16.mxu0 0
    %1113 = vmatpush1.bf16.msra.mxu0 0
    %1114 = vmatprep.subr.bf16.mxu0 0
    %1115 = vmatpush1.bf16.msra.mxu0 0
    %1116 = vmatprep.subr.bf16.mxu0 0
    %1117 = vmatpush1.bf16.msra.mxu0 0
    %1118 = vmatprep.subr.bf16.mxu0 0
    %1119 = vmatpush1.bf16.msra.mxu0 0
    %1120 = vmatprep.subr.bf16.mxu0 0
    %1121 = vmatpush1.bf16.msra.mxu0 0
    %1122 = vmatprep.subr.bf16.mxu0 0
    %1123 = vmatpush1.bf16.msra.mxu0 0
    %1124 = vmatprep.subr.bf16.mxu0 0
    %1125 = vmatpush1.bf16.msra.mxu0 0
    %1126 = vmatprep.subr.bf16.mxu0 0
    %1127 = vmatpush1.bf16.msra.mxu0 0
    %1128 = vmatprep.subr.bf16.mxu0 0
    %1129 = vmatpush1.bf16.msra.mxu0 0
    %1130 = vmatprep.subr.bf16.mxu0 0
    %1131 = vmatpush1.bf16.msra.mxu0 0
    %1132 = vmatprep.subr.bf16.mxu0 0
    %1133 = vmatpush1.bf16.msra.mxu0 0
    %1134 = vmatprep.subr.bf16.mxu0 0
    %1135 = vmatpush1.bf16.msra.mxu0 0
    %1136 = vmatprep.subr.bf16.mxu0 0
    %1137 = vmatpush1.bf16.msra.mxu0 0
    %1138 = vmatprep.mubr.bf16.mxu0 0
    %1139 = vmatmul.mubr.bf16.gmra.mrb[0].mxu0 %v1104
    %v1140 = vpop.f32.mrb[0].mxu0
    %v1141 = vadd.f32 0.0, %v1140
    %v1142 = vpop.f32.mrb[0].mxu0
    %v1143 = vpop.f32.mrb[0].mxu0
    %v1144 = vadd.f32 0.0, %v1143
    %v1145 = vpop.f32.mrb[0].mxu0
    %1146 = vdwg.mxu0
    %1148 = vrot.lane.b32.xlu0 %v1025, 96
    %v1149 = vpop.permute.xlu0 %1148
    %1151 = vrot.lane.b32.xlu0 %v1027, 96
    %v1152 = vpop.permute.xlu0 %1151
    %v1154 = vsel %vm1031, %v1149, 0
    %v1157 = vsel %vm1031, %v1152, 0
    %1159 = vmatprep.subr.bf16.mxu0 0
    %1160 = vmatpush1.bf16.xpose.msra.mxu0 %v1157
    %1161 = vmatprep.subr.bf16.mxu0 0
    %1162 = vmatpush1.bf16.xpose.msra.mxu0 0
    %1163 = vmatprep.subr.bf16.mxu0 0
    %1164 = vmatpush1.bf16.xpose.msra.mxu0 0
    %1165 = vmatprep.subr.bf16.mxu0 0
    %1166 = vmatpush1.bf16.xpose.msra.mxu0 0
    %1167 = vmatprep.subr.bf16.mxu0 0
    %1168 = vmatpush1.bf16.xpose.msra.mxu0 0
    %1169 = vmatprep.subr.bf16.mxu0 0
    %1170 = vmatpush1.bf16.xpose.msra.mxu0 0
    %1171 = vmatprep.subr.bf16.mxu0 0
    %1172 = vmatpush1.bf16.xpose.msra.mxu0 0
    %1173 = vmatprep.subr.bf16.mxu0 0
    %1174 = vmatpush1.bf16.xpose.msra.mxu0 0
    %1175 = vmatprep.subr.bf16.mxu0 0
    %1176 = vmatpush1.bf16.xpose.msra.mxu0 0
    %1177 = vmatprep.subr.bf16.mxu0 0
    %1178 = vmatpush1.bf16.xpose.msra.mxu0 0
    %1179 = vmatprep.subr.bf16.mxu0 0
    %1180 = vmatpush1.bf16.xpose.msra.mxu0 0
    %1181 = vmatprep.subr.bf16.mxu0 0
    %1182 = vmatpush1.bf16.xpose.msra.mxu0 0
    %1183 = vmatprep.subr.bf16.mxu0 0
    %1184 = vmatpush1.bf16.xpose.msra.mxu0 0
    %1185 = vmatprep.subr.bf16.mxu0 0
    %1186 = vmatpush1.bf16.xpose.msra.mxu0 0
    %1187 = vmatprep.subr.bf16.mxu0 0
    %1188 = vmatpush1.bf16.xpose.msra.mxu0 0
    %1189 = vmatprep.subr.bf16.mxu0 0
    %1190 = vmatpush1.bf16.xpose.msra.mxu0 0
    %1191 = vmatprep.mubr.bf16.mxu0 0
    %1192 = vmatmul.mubr.bf16.gmra.mrb[0].mxu0 %v1154
    %v1193 = vpop.f32.mrb[0].mxu0
    %v1194 = vadd.f32 %v282, %v1193
    %v1195 = vpop.f32.mrb[0].mxu0
    %v1196 = vpop.f32.mrb[0].mxu0
    %v1197 = vadd.f32 %v283, %v1196
    %v1198 = vpop.f32.mrb[0].mxu0
    %1199 = vdwg.mxu0
    %v1200 = vsel %vm1079, %v1194, -inf
    %1201 = vmax.xlane.f32.xlu0 %v1200
    %v1202 = vpop.xlane.xlu0 %1201
    %v1203 = vsel %vm1079, %v1197, -inf
    %1204 = vmax.xlane.f32.xlu0 %v1203
    %v1205 = vpop.xlane.xlu0 %1204
    %v1206 = vsub.f32 %v1194, %v1202
    %v1207 = vsub.f32 %v1197, %v1205
    %v1208 = vmul.f32 %v1206, 1.442695
    %v1209 = vpow.pop %v1208
    %v1210 = vmul.f32 %v1207, 1.442695
    %v1211 = vpow.pop %v1210
    %v1212 = vsel %vm1079, %v1209, 0.0
    %1213 = vadd.xlane.f32.xlu0 %v1212
    %v1214 = vpop.xlane.xlu0 %1213
    %v1215 = vsel %vm1079, %v1211, 0.0
    %1216 = vadd.xlane.f32.xlu0 %v1215
    %v1217 = vpop.xlane.xlu0 %1216
    %v1218 = vrcp.pop %v1214
    %v1219 = vrcp.pop %v1217
    %v1220 = vmul.f32 %v1209, %v1218
    %v1221 = vmul.f32 %v1211, %v1219
    %v1222 = vpack.c.bf16 %v1221, %v1220
    %1224 = vrot.lane.b32.xlu0 %v1029, 96
    %v1225 = vpop.permute.xlu0 %1224
    %v1228 = vsel %vm1079, %v1222, 0
    %1230 = vmatprep.subr.bf16.mxu0 0
    %1231 = vmatpush1.bf16.msra.mxu0 %v1225
    %1232 = vmatprep.subr.bf16.mxu0 0
    %1233 = vmatpush1.bf16.msra.mxu0 0
    %1234 = vmatprep.subr.bf16.mxu0 0
    %1235 = vmatpush1.bf16.msra.mxu0 0
    %1236 = vmatprep.subr.bf16.mxu0 0
    %1237 = vmatpush1.bf16.msra.mxu0 0
    %1238 = vmatprep.subr.bf16.mxu0 0
    %1239 = vmatpush1.bf16.msra.mxu0 0
    %1240 = vmatprep.subr.bf16.mxu0 0
    %1241 = vmatpush1.bf16.msra.mxu0 0
    %1242 = vmatprep.subr.bf16.mxu0 0
    %1243 = vmatpush1.bf16.msra.mxu0 0
    %1244 = vmatprep.subr.bf16.mxu0 0
    %1245 = vmatpush1.bf16.msra.mxu0 0
    %1246 = vmatprep.subr.bf16.mxu0 0
    %1247 = vmatpush1.bf16.msra.mxu0 0
    %1248 = vmatprep.subr.bf16.mxu0 0
    %1249 = vmatpush1.bf16.msra.mxu0 0
    %1250 = vmatprep.subr.bf16.mxu0 0
    %1251 = vmatpush1.bf16.msra.mxu0 0
    %1252 = vmatprep.subr.bf16.mxu0 0
    %1253 = vmatpush1.bf16.msra.mxu0 0
    %1254 = vmatprep.subr.bf16.mxu0 0
    %1255 = vmatpush1.bf16.msra.mxu0 0
    %1256 = vmatprep.subr.bf16.mxu0 0
    %1257 = vmatpush1.bf16.msra.mxu0 0
    %1258 = vmatprep.subr.bf16.mxu0 0
    %1259 = vmatpush1.bf16.msra.mxu0 0
    %1260 = vmatprep.subr.bf16.mxu0 0
    %1261 = vmatpush1.bf16.msra.mxu0 0
    %1262 = vmatprep.mubr.bf16.mxu0 0
    %1263 = vmatmul.mubr.bf16.gmra.mrb[0].mxu0 %v1228
    %v1264 = vpop.f32.mrb[0].mxu0
    %v1265 = vadd.f32 0.0, %v1264
    %v1266 = vpop.f32.mrb[0].mxu0
    %v1267 = vpop.f32.mrb[0].mxu0
    %v1268 = vadd.f32 0.0, %v1267
    %v1269 = vpop.f32.mrb[0].mxu0
    %1270 = vdwg.mxu0
    %1271 = vrot.lane.b32.xlu0 %v1025, 64
    %v1272 = vpop.permute.xlu0 %1271
    %1273 = vrot.lane.b32.xlu0 %v1027, 64
    %v1274 = vpop.permute.xlu0 %1273
    %v1276 = vsel %vm1031, %v1272, 0
    %v1279 = vsel %vm1031, %v1274, 0
    %1281 = vmatprep.subr.bf16.mxu0 0
    %1282 = vmatpush1.bf16.xpose.msra.mxu0 %v1279
    %1283 = vmatprep.subr.bf16.mxu0 0
    %1284 = vmatpush1.bf16.xpose.msra.mxu0 0
    %1285 = vmatprep.subr.bf16.mxu0 0
    %1286 = vmatpush1.bf16.xpose.msra.mxu0 0
    %1287 = vmatprep.subr.bf16.mxu0 0
    %1288 = vmatpush1.bf16.xpose.msra.mxu0 0
    %1289 = vmatprep.subr.bf16.mxu0 0
    %1290 = vmatpush1.bf16.xpose.msra.mxu0 0
    %1291 = vmatprep.subr.bf16.mxu0 0
    %1292 = vmatpush1.bf16.xpose.msra.mxu0 0
    %1293 = vmatprep.subr.bf16.mxu0 0
    %1294 = vmatpush1.bf16.xpose.msra.mxu0 0
    %1295 = vmatprep.subr.bf16.mxu0 0
    %1296 = vmatpush1.bf16.xpose.msra.mxu0 0
    %1297 = vmatprep.subr.bf16.mxu0 0
    %1298 = vmatpush1.bf16.xpose.msra.mxu0 0
    %1299 = vmatprep.subr.bf16.mxu0 0
    %1300 = vmatpush1.bf16.xpose.msra.mxu0 0
    %1301 = vmatprep.subr.bf16.mxu0 0
    %1302 = vmatpush1.bf16.xpose.msra.mxu0 0
    %1303 = vmatprep.subr.bf16.mxu0 0
    %1304 = vmatpush1.bf16.xpose.msra.mxu0 0
    %1305 = vmatprep.subr.bf16.mxu0 0
    %1306 = vmatpush1.bf16.xpose.msra.mxu0 0
    %1307 = vmatprep.subr.bf16.mxu0 0
    %1308 = vmatpush1.bf16.xpose.msra.mxu0 0
    %1309 = vmatprep.subr.bf16.mxu0 0
    %1310 = vmatpush1.bf16.xpose.msra.mxu0 0
    %1311 = vmatprep.subr.bf16.mxu0 0
    %1312 = vmatpush1.bf16.xpose.msra.mxu0 0
    %1313 = vmatprep.mubr.bf16.mxu0 0
    %1314 = vmatmul.mubr.bf16.gmra.mrb[0].mxu0 %v1276
    %v1315 = vpop.f32.mrb[0].mxu0
    %v1316 = vadd.f32 %v282, %v1315
    %v1317 = vpop.f32.mrb[0].mxu0
    %v1318 = vpop.f32.mrb[0].mxu0
    %v1319 = vadd.f32 %v283, %v1318
    %v1320 = vpop.f32.mrb[0].mxu0
    %1321 = vdwg.mxu0
    %v1322 = vsel %vm1079, %v1316, -inf
    %1323 = vmax.xlane.f32.xlu0 %v1322
    %v1324 = vpop.xlane.xlu0 %1323
    %v1325 = vsel %vm1079, %v1319, -inf
    %1326 = vmax.xlane.f32.xlu0 %v1325
    %v1327 = vpop.xlane.xlu0 %1326
    %v1328 = vsub.f32 %v1316, %v1324
    %v1329 = vsub.f32 %v1319, %v1327
    %v1330 = vmul.f32 %v1328, 1.442695
    %v1331 = vpow.pop %v1330
    %v1332 = vmul.f32 %v1329, 1.442695
    %v1333 = vpow.pop %v1332
    %v1334 = vsel %vm1079, %v1331, 0.0
    %1335 = vadd.xlane.f32.xlu0 %v1334
    %v1336 = vpop.xlane.xlu0 %1335
    %v1337 = vsel %vm1079, %v1333, 0.0
    %1338 = vadd.xlane.f32.xlu0 %v1337
    %v1339 = vpop.xlane.xlu0 %1338
    %v1340 = vrcp.pop %v1336
    %v1341 = vrcp.pop %v1339
    %v1342 = vmul.f32 %v1331, %v1340
    %v1343 = vmul.f32 %v1333, %v1341
    %v1344 = vpack.c.bf16 %v1343, %v1342
    %1345 = vrot.lane.b32.xlu0 %v1029, 64
    %v1346 = vpop.permute.xlu0 %1345
    %v1349 = vsel %vm1079, %v1344, 0
    %1351 = vmatprep.subr.bf16.mxu0 0
    %1352 = vmatpush1.bf16.msra.mxu0 %v1346
    %1353 = vmatprep.subr.bf16.mxu0 0
    %1354 = vmatpush1.bf16.msra.mxu0 0
    %1355 = vmatprep.subr.bf16.mxu0 0
    %1356 = vmatpush1.bf16.msra.mxu0 0
    %1357 = vmatprep.subr.bf16.mxu0 0
    %1358 = vmatpush1.bf16.msra.mxu0 0
    %1359 = vmatprep.subr.bf16.mxu0 0
    %1360 = vmatpush1.bf16.msra.mxu0 0
    %1361 = vmatprep.subr.bf16.mxu0 0
    %1362 = vmatpush1.bf16.msra.mxu0 0
    %1363 = vmatprep.subr.bf16.mxu0 0
    %1364 = vmatpush1.bf16.msra.mxu0 0
    %1365 = vmatprep.subr.bf16.mxu0 0
    %1366 = vmatpush1.bf16.msra.mxu0 0
    %1367 = vmatprep.subr.bf16.mxu0 0
    %1368 = vmatpush1.bf16.msra.mxu0 0
    %1369 = vmatprep.subr.bf16.mxu0 0
    %1370 = vmatpush1.bf16.msra.mxu0 0
    %1371 = vmatprep.subr.bf16.mxu0 0
    %1372 = vmatpush1.bf16.msra.mxu0 0
    %1373 = vmatprep.subr.bf16.mxu0 0
    %1374 = vmatpush1.bf16.msra.mxu0 0
    %1375 = vmatprep.subr.bf16.mxu0 0
    %1376 = vmatpush1.bf16.msra.mxu0 0
    %1377 = vmatprep.subr.bf16.mxu0 0
    %1378 = vmatpush1.bf16.msra.mxu0 0
    %1379 = vmatprep.subr.bf16.mxu0 0
    %1380 = vmatpush1.bf16.msra.mxu0 0
    %1381 = vmatprep.subr.bf16.mxu0 0
    %1382 = vmatpush1.bf16.msra.mxu0 0
    %1383 = vmatprep.mubr.bf16.mxu0 0
    %1384 = vmatmul.mubr.bf16.gmra.mrb[0].mxu0 %v1349
    %v1385 = vpop.f32.mrb[0].mxu0
    %v1386 = vadd.f32 0.0, %v1385
    %v1387 = vpop.f32.mrb[0].mxu0
    %v1388 = vpop.f32.mrb[0].mxu0
    %v1389 = vadd.f32 0.0, %v1388
    %v1390 = vpop.f32.mrb[0].mxu0
    %1391 = vdwg.mxu0
    %1392 = vrot.lane.b32.xlu0 %v1025, 32
    %v1393 = vpop.permute.xlu0 %1392
    %1394 = vrot.lane.b32.xlu0 %v1027, 32
    %v1395 = vpop.permute.xlu0 %1394
    %v1397 = vsel %vm1031, %v1393, 0
    %v1400 = vsel %vm1031, %v1395, 0
    %1402 = vmatprep.subr.bf16.mxu0 0
    %1403 = vmatpush1.bf16.xpose.msra.mxu0 %v1400
    %1404 = vmatprep.subr.bf16.mxu0 0
    %1405 = vmatpush1.bf16.xpose.msra.mxu0 0
    %1406 = vmatprep.subr.bf16.mxu0 0
    %1407 = vmatpush1.bf16.xpose.msra.mxu0 0
    %1408 = vmatprep.subr.bf16.mxu0 0
    %1409 = vmatpush1.bf16.xpose.msra.mxu0 0
    %1410 = vmatprep.subr.bf16.mxu0 0
    %1411 = vmatpush1.bf16.xpose.msra.mxu0 0
    %1412 = vmatprep.subr.bf16.mxu0 0
    %1413 = vmatpush1.bf16.xpose.msra.mxu0 0
    %1414 = vmatprep.subr.bf16.mxu0 0
    %1415 = vmatpush1.bf16.xpose.msra.mxu0 0
    %1416 = vmatprep.subr.bf16.mxu0 0
    %1417 = vmatpush1.bf16.xpose.msra.mxu0 0
    %1418 = vmatprep.subr.bf16.mxu0 0
    %1419 = vmatpush1.bf16.xpose.msra.mxu0 0
    %1420 = vmatprep.subr.bf16.mxu0 0
    %1421 = vmatpush1.bf16.xpose.msra.mxu0 0
    %1422 = vmatprep.subr.bf16.mxu0 0
    %1423 = vmatpush1.bf16.xpose.msra.mxu0 0
    %1424 = vmatprep.subr.bf16.mxu0 0
    %1425 = vmatpush1.bf16.xpose.msra.mxu0 0
    %1426 = vmatprep.subr.bf16.mxu0 0
    %1427 = vmatpush1.bf16.xpose.msra.mxu0 0
    %1428 = vmatprep.subr.bf16.mxu0 0
    %1429 = vmatpush1.bf16.xpose.msra.mxu0 0
    %1430 = vmatprep.subr.bf16.mxu0 0
    %1431 = vmatpush1.bf16.xpose.msra.mxu0 0
    %1432 = vmatprep.subr.bf16.mxu0 0
    %1433 = vmatpush1.bf16.xpose.msra.mxu0 0
    %1434 = vmatprep.mubr.bf16.mxu0 0
    %1435 = vmatmul.mubr.bf16.gmra.mrb[0].mxu0 %v1397
    %v1436 = vpop.f32.mrb[0].mxu0
    %v1437 = vadd.f32 %v282, %v1436
    %v1438 = vpop.f32.mrb[0].mxu0
    %v1439 = vpop.f32.mrb[0].mxu0
    %v1440 = vadd.f32 %v283, %v1439
    %v1441 = vpop.f32.mrb[0].mxu0
    %1442 = vdwg.mxu0
    %v1443 = vsel %vm1079, %v1437, -inf
    %1444 = vmax.xlane.f32.xlu0 %v1443
    %v1445 = vpop.xlane.xlu0 %1444
    %v1446 = vsel %vm1079, %v1440, -inf
    %1447 = vmax.xlane.f32.xlu0 %v1446
    %v1448 = vpop.xlane.xlu0 %1447
    %v1449 = vsub.f32 %v1437, %v1445
    %v1450 = vsub.f32 %v1440, %v1448
    %v1451 = vmul.f32 %v1449, 1.442695
    %v1452 = vpow.pop %v1451
    %v1453 = vmul.f32 %v1450, 1.442695
    %v1454 = vpow.pop %v1453
    %v1455 = vsel %vm1079, %v1452, 0.0
    %1456 = vadd.xlane.f32.xlu0 %v1455
    %v1457 = vpop.xlane.xlu0 %1456
    %v1458 = vsel %vm1079, %v1454, 0.0
    %1459 = vadd.xlane.f32.xlu0 %v1458
    %v1460 = vpop.xlane.xlu0 %1459
    %v1461 = vrcp.pop %v1457
    %v1462 = vrcp.pop %v1460
    %v1463 = vmul.f32 %v1452, %v1461
    %v1464 = vmul.f32 %v1454, %v1462
    %v1465 = vpack.c.bf16 %v1464, %v1463
    %1466 = vrot.lane.b32.xlu0 %v1029, 32
    %v1467 = vpop.permute.xlu0 %1466
    %v1470 = vsel %vm1079, %v1465, 0
    %1472 = vmatprep.subr.bf16.mxu0 0
    %1473 = vmatpush1.bf16.msra.mxu0 %v1467
    %1474 = vmatprep.subr.bf16.mxu0 0
    %1475 = vmatpush1.bf16.msra.mxu0 0
    %1476 = vmatprep.subr.bf16.mxu0 0
    %1477 = vmatpush1.bf16.msra.mxu0 0
    %1478 = vmatprep.subr.bf16.mxu0 0
    %1479 = vmatpush1.bf16.msra.mxu0 0
    %1480 = vmatprep.subr.bf16.mxu0 0
    %1481 = vmatpush1.bf16.msra.mxu0 0
    %1482 = vmatprep.subr.bf16.mxu0 0
    %1483 = vmatpush1.bf16.msra.mxu0 0
    %1484 = vmatprep.subr.bf16.mxu0 0
    %1485 = vmatpush1.bf16.msra.mxu0 0
    %1486 = vmatprep.subr.bf16.mxu0 0
    %1487 = vmatpush1.bf16.msra.mxu0 0
    %1488 = vmatprep.subr.bf16.mxu0 0
    %1489 = vmatpush1.bf16.msra.mxu0 0
    %1490 = vmatprep.subr.bf16.mxu0 0
    %1491 = vmatpush1.bf16.msra.mxu0 0
    %1492 = vmatprep.subr.bf16.mxu0 0
    %1493 = vmatpush1.bf16.msra.mxu0 0
    %1494 = vmatprep.subr.bf16.mxu0 0
    %1495 = vmatpush1.bf16.msra.mxu0 0
    %1496 = vmatprep.subr.bf16.mxu0 0
    %1497 = vmatpush1.bf16.msra.mxu0 0
    %1498 = vmatprep.subr.bf16.mxu0 0
    %1499 = vmatpush1.bf16.msra.mxu0 0
    %1500 = vmatprep.subr.bf16.mxu0 0
    %1501 = vmatpush1.bf16.msra.mxu0 0
    %1502 = vmatprep.subr.bf16.mxu0 0
    %1503 = vmatpush1.bf16.msra.mxu0 0
    %1504 = vmatprep.mubr.bf16.mxu0 0
    %1505 = vmatmul.mubr.bf16.gmra.mrb[0].mxu0 %v1470
    %v1506 = vpop.f32.mrb[0].mxu0
    %v1507 = vadd.f32 0.0, %v1506
    %v1508 = vpop.f32.mrb[0].mxu0
    %v1509 = vpop.f32.mrb[0].mxu0
    %v1510 = vadd.f32 0.0, %v1509
    %v1511 = vpop.f32.mrb[0].mxu0
    %1512 = vdwg.mxu0
    %v1514 = vsel %vm1031, %v1026, 0
    %v1517 = vsel %vm1031, %v1028, 0
    %1519 = vmatprep.subr.bf16.mxu0 0
    %1520 = vmatpush1.bf16.xpose.msra.mxu0 %v1517
    %1521 = vmatprep.subr.bf16.mxu0 0
    %1522 = vmatpush1.bf16.xpose.msra.mxu0 0
    %1523 = vmatprep.subr.bf16.mxu0 0
    %1524 = vmatpush1.bf16.xpose.msra.mxu0 0
    %1525 = vmatprep.subr.bf16.mxu0 0
    %1526 = vmatpush1.bf16.xpose.msra.mxu0 0
    %1527 = vmatprep.subr.bf16.mxu0 0
    %1528 = vmatpush1.bf16.xpose.msra.mxu0 0
    %1529 = vmatprep.subr.bf16.mxu0 0
    %1530 = vmatpush1.bf16.xpose.msra.mxu0 0
    %1531 = vmatprep.subr.bf16.mxu0 0
    %1532 = vmatpush1.bf16.xpose.msra.mxu0 0
    %1533 = vmatprep.subr.bf16.mxu0 0
    %1534 = vmatpush1.bf16.xpose.msra.mxu0 0
    %1535 = vmatprep.subr.bf16.mxu0 0
    %1536 = vmatpush1.bf16.xpose.msra.mxu0 0
    %1537 = vmatprep.subr.bf16.mxu0 0
    %1538 = vmatpush1.bf16.xpose.msra.mxu0 0
    %1539 = vmatprep.subr.bf16.mxu0 0
    %1540 = vmatpush1.bf16.xpose.msra.mxu0 0
    %1541 = vmatprep.subr.bf16.mxu0 0
    %1542 = vmatpush1.bf16.xpose.msra.mxu0 0
    %1543 = vmatprep.subr.bf16.mxu0 0
    %1544 = vmatpush1.bf16.xpose.msra.mxu0 0
    %1545 = vmatprep.subr.bf16.mxu0 0
    %1546 = vmatpush1.bf16.xpose.msra.mxu0 0
    %1547 = vmatprep.subr.bf16.mxu0 0
    %1548 = vmatpush1.bf16.xpose.msra.mxu0 0
    %1549 = vmatprep.subr.bf16.mxu0 0
    %1550 = vmatpush1.bf16.xpose.msra.mxu0 0
    %1551 = vmatprep.mubr.bf16.mxu0 0
    %1552 = vmatmul.mubr.bf16.gmra.mrb[0].mxu0 %v1514
    %v1553 = vpop.f32.mrb[0].mxu0
    %v1554 = vadd.f32 %v282, %v1553
    %v1555 = vpop.f32.mrb[0].mxu0
    %v1556 = vpop.f32.mrb[0].mxu0
    %v1557 = vadd.f32 %v283, %v1556
    %v1558 = vpop.f32.mrb[0].mxu0
    %1559 = vdwg.mxu0
    %v1560 = vsel %vm1079, %v1554, -inf
    %1561 = vmax.xlane.f32.xlu0 %v1560
    %v1562 = vpop.xlane.xlu0 %1561
    %v1563 = vsel %vm1079, %v1557, -inf
    %1564 = vmax.xlane.f32.xlu0 %v1563
    %v1565 = vpop.xlane.xlu0 %1564
    %v1566 = vsub.f32 %v1554, %v1562
    %v1567 = vsub.f32 %v1557, %v1565
    %v1568 = vmul.f32 %v1566, 1.442695
    %v1569 = vpow.pop %v1568
    %v1570 = vmul.f32 %v1567, 1.442695
    %v1571 = vpow.pop %v1570
    %v1572 = vsel %vm1079, %v1569, 0.0
    %1573 = vadd.xlane.f32.xlu0 %v1572
    %v1574 = vpop.xlane.xlu0 %1573
    %v1575 = vsel %vm1079, %v1571, 0.0
    %1576 = vadd.xlane.f32.xlu0 %v1575
    %v1577 = vpop.xlane.xlu0 %1576
    %v1578 = vrcp.pop %v1574
    %v1579 = vrcp.pop %v1577
    %v1580 = vmul.f32 %v1569, %v1578
    %v1581 = vmul.f32 %v1571, %v1579
    %v1582 = vpack.c.bf16 %v1581, %v1580
    %v1584 = vsel %vm1079, %v1582, 0
    %1586 = vmatprep.subr.bf16.mxu0 0
    %1587 = vmatpush1.bf16.msra.mxu0 %v1030
    %1588 = vmatprep.subr.bf16.mxu0 0
    %1589 = vmatpush1.bf16.msra.mxu0 0
    %1590 = vmatprep.subr.bf16.mxu0 0
    %1591 = vmatpush1.bf16.msra.mxu0 0
    %1592 = vmatprep.subr.bf16.mxu0 0
    %1593 = vmatpush1.bf16.msra.mxu0 0
    %1594 = vmatprep.subr.bf16.mxu0 0
    %1595 = vmatpush1.bf16.msra.mxu0 0
    %1596 = vmatprep.subr.bf16.mxu0 0
    %1597 = vmatpush1.bf16.msra.mxu0 0
    %1598 = vmatprep.subr.bf16.mxu0 0
    %1599 = vmatpush1.bf16.msra.mxu0 0
    %1600 = vmatprep.subr.bf16.mxu0 0
    %1601 = vmatpush1.bf16.msra.mxu0 0
    %1602 = vmatprep.subr.bf16.mxu0 0
    %1603 = vmatpush1.bf16.msra.mxu0 0
    %1604 = vmatprep.subr.bf16.mxu0 0
    %1605 = vmatpush1.bf16.msra.mxu0 0
    %1606 = vmatprep.subr.bf16.mxu0 0
    %1607 = vmatpush1.bf16.msra.mxu0 0
    %1608 = vmatprep.subr.bf16.mxu0 0
    %1609 = vmatpush1.bf16.msra.mxu0 0
    %1610 = vmatprep.subr.bf16.mxu0 0
    %1611 = vmatpush1.bf16.msra.mxu0 0
    %1612 = vmatprep.subr.bf16.mxu0 0
    %1613 = vmatpush1.bf16.msra.mxu0 0
    %1614 = vmatprep.subr.bf16.mxu0 0
    %1615 = vmatpush1.bf16.msra.mxu0 0
    %1616 = vmatprep.subr.bf16.mxu0 0
    %1617 = vmatpush1.bf16.msra.mxu0 0
    %1618 = vmatprep.mubr.bf16.mxu0 0
    %1619 = vmatmul.mubr.bf16.gmra.mrb[0].mxu0 %v1584
    %v1620 = vpop.f32.mrb[0].mxu0
    %v1621 = vadd.f32 0.0, %v1620
    %v1622 = vpop.f32.mrb[0].mxu0
    %v1623 = vpop.f32.mrb[0].mxu0
    %v1624 = vadd.f32 0.0, %v1623
    %v1625 = vpop.f32.mrb[0].mxu0
    %1626 = vdwg.mxu0
    %1628 = vrot.lane.b32.xlu0 %v1026, 96
    %v1629 = vpop.permute.xlu0 %1628
    %1631 = vrot.lane.b32.xlu0 %v1028, 96
    %v1632 = vpop.permute.xlu0 %1631
    %v1634 = vsel %vm1031, %v1629, 0
    %v1637 = vsel %vm1031, %v1632, 0
    %1639 = vmatprep.subr.bf16.mxu0 0
    %1640 = vmatpush1.bf16.xpose.msra.mxu0 %v1637
    %1641 = vmatprep.subr.bf16.mxu0 0
    %1642 = vmatpush1.bf16.xpose.msra.mxu0 0
    %1643 = vmatprep.subr.bf16.mxu0 0
    %1644 = vmatpush1.bf16.xpose.msra.mxu0 0
    %1645 = vmatprep.subr.bf16.mxu0 0
    %1646 = vmatpush1.bf16.xpose.msra.mxu0 0
    %1647 = vmatprep.subr.bf16.mxu0 0
    %1648 = vmatpush1.bf16.xpose.msra.mxu0 0
    %1649 = vmatprep.subr.bf16.mxu0 0
    %1650 = vmatpush1.bf16.xpose.msra.mxu0 0
    %1651 = vmatprep.subr.bf16.mxu0 0
    %1652 = vmatpush1.bf16.xpose.msra.mxu0 0
    %1653 = vmatprep.subr.bf16.mxu0 0
    %1654 = vmatpush1.bf16.xpose.msra.mxu0 0
    %1655 = vmatprep.subr.bf16.mxu0 0
    %1656 = vmatpush1.bf16.xpose.msra.mxu0 0
    %1657 = vmatprep.subr.bf16.mxu0 0
    %1658 = vmatpush1.bf16.xpose.msra.mxu0 0
    %1659 = vmatprep.subr.bf16.mxu0 0
    %1660 = vmatpush1.bf16.xpose.msra.mxu0 0
    %1661 = vmatprep.subr.bf16.mxu0 0
    %1662 = vmatpush1.bf16.xpose.msra.mxu0 0
    %1663 = vmatprep.subr.bf16.mxu0 0
    %1664 = vmatpush1.bf16.xpose.msra.mxu0 0
    %1665 = vmatprep.subr.bf16.mxu0 0
    %1666 = vmatpush1.bf16.xpose.msra.mxu0 0
    %1667 = vmatprep.subr.bf16.mxu0 0
    %1668 = vmatpush1.bf16.xpose.msra.mxu0 0
    %1669 = vmatprep.subr.bf16.mxu0 0
    %1670 = vmatpush1.bf16.xpose.msra.mxu0 0
    %1671 = vmatprep.mubr.bf16.mxu0 0
    %1672 = vmatmul.mubr.bf16.gmra.mrb[0].mxu0 %v1634
    %v1673 = vpop.f32.mrb[0].mxu0
    %v1674 = vadd.f32 %v282, %v1673
    %v1675 = vpop.f32.mrb[0].mxu0
    %v1676 = vpop.f32.mrb[0].mxu0
    %v1677 = vadd.f32 %v283, %v1676
    %v1678 = vpop.f32.mrb[0].mxu0
    %1679 = vdwg.mxu0
    %v1680 = vsel %vm1079, %v1674, -inf
    %1681 = vmax.xlane.f32.xlu0 %v1680
    %v1682 = vpop.xlane.xlu0 %1681
    %v1683 = vsel %vm1079, %v1677, -inf
    %1684 = vmax.xlane.f32.xlu0 %v1683
    %v1685 = vpop.xlane.xlu0 %1684
    %v1686 = vsub.f32 %v1674, %v1682
    %v1687 = vsub.f32 %v1677, %v1685
    %v1688 = vmul.f32 %v1686, 1.442695
    %v1689 = vpow.pop %v1688
    %v1690 = vmul.f32 %v1687, 1.442695
    %v1691 = vpow.pop %v1690
    %v1692 = vsel %vm1079, %v1689, 0.0
    %1693 = vadd.xlane.f32.xlu0 %v1692
    %v1694 = vpop.xlane.xlu0 %1693
    %v1695 = vsel %vm1079, %v1691, 0.0
    %1696 = vadd.xlane.f32.xlu0 %v1695
    %v1697 = vpop.xlane.xlu0 %1696
    %v1698 = vrcp.pop %v1694
    %v1699 = vrcp.pop %v1697
    %v1700 = vmul.f32 %v1689, %v1698
    %v1701 = vmul.f32 %v1691, %v1699
    %v1702 = vpack.c.bf16 %v1701, %v1700
    %1704 = vrot.lane.b32.xlu0 %v1030, 96
    %v1705 = vpop.permute.xlu0 %1704
    %v1708 = vsel %vm1079, %v1702, 0
    %1710 = vmatprep.subr.bf16.mxu0 0
    %1711 = vmatpush1.bf16.msra.mxu0 %v1705
    %1712 = vmatprep.subr.bf16.mxu0 0
    %1713 = vmatpush1.bf16.msra.mxu0 0
    %1714 = vmatprep.subr.bf16.mxu0 0
    %1715 = vmatpush1.bf16.msra.mxu0 0
    %1716 = vmatprep.subr.bf16.mxu0 0
    %1717 = vmatpush1.bf16.msra.mxu0 0
    %1718 = vmatprep.subr.bf16.mxu0 0
    %1719 = vmatpush1.bf16.msra.mxu0 0
    %1720 = vmatprep.subr.bf16.mxu0 0
    %1721 = vmatpush1.bf16.msra.mxu0 0
    %1722 = vmatprep.subr.bf16.mxu0 0
    %1723 = vmatpush1.bf16.msra.mxu0 0
    %1724 = vmatprep.subr.bf16.mxu0 0
    %1725 = vmatpush1.bf16.msra.mxu0 0
    %1726 = vmatprep.subr.bf16.mxu0 0
    %1727 = vmatpush1.bf16.msra.mxu0 0
    %1728 = vmatprep.subr.bf16.mxu0 0
    %1729 = vmatpush1.bf16.msra.mxu0 0
    %1730 = vmatprep.subr.bf16.mxu0 0
    %1731 = vmatpush1.bf16.msra.mxu0 0
    %1732 = vmatprep.subr.bf16.mxu0 0
    %1733 = vmatpush1.bf16.msra.mxu0 0
    %1734 = vmatprep.subr.bf16.mxu0 0
    %1735 = vmatpush1.bf16.msra.mxu0 0
    %1736 = vmatprep.subr.bf16.mxu0 0
    %1737 = vmatpush1.bf16.msra.mxu0 0
    %1738 = vmatprep.subr.bf16.mxu0 0
    %1739 = vmatpush1.bf16.msra.mxu0 0
    %1740 = vmatprep.subr.bf16.mxu0 0
    %1741 = vmatpush1.bf16.msra.mxu0 0
    %1742 = vmatprep.mubr.bf16.mxu0 0
    %1743 = vmatmul.mubr.bf16.gmra.mrb[0].mxu0 %v1708
    %v1744 = vpop.f32.mrb[0].mxu0
    %v1745 = vadd.f32 0.0, %v1744
    %v1746 = vpop.f32.mrb[0].mxu0
    %v1747 = vpop.f32.mrb[0].mxu0
    %v1748 = vadd.f32 0.0, %v1747
    %v1749 = vpop.f32.mrb[0].mxu0
    %1750 = vdwg.mxu0
    %1751 = vrot.lane.b32.xlu0 %v1026, 64
    %v1752 = vpop.permute.xlu0 %1751
    %1753 = vrot.lane.b32.xlu0 %v1028, 64
    %v1754 = vpop.permute.xlu0 %1753
    %v1756 = vsel %vm1031, %v1752, 0
    %v1759 = vsel %vm1031, %v1754, 0
    %1761 = vmatprep.subr.bf16.mxu0 0
    %1762 = vmatpush1.bf16.xpose.msra.mxu0 %v1759
    %1763 = vmatprep.subr.bf16.mxu0 0
    %1764 = vmatpush1.bf16.xpose.msra.mxu0 0
    %1765 = vmatprep.subr.bf16.mxu0 0
    %1766 = vmatpush1.bf16.xpose.msra.mxu0 0
    %1767 = vmatprep.subr.bf16.mxu0 0
    %1768 = vmatpush1.bf16.xpose.msra.mxu0 0
    %1769 = vmatprep.subr.bf16.mxu0 0
    %1770 = vmatpush1.bf16.xpose.msra.mxu0 0
    %1771 = vmatprep.subr.bf16.mxu0 0
    %1772 = vmatpush1.bf16.xpose.msra.mxu0 0
    %1773 = vmatprep.subr.bf16.mxu0 0
    %1774 = vmatpush1.bf16.xpose.msra.mxu0 0
    %1775 = vmatprep.subr.bf16.mxu0 0
    %1776 = vmatpush1.bf16.xpose.msra.mxu0 0
    %1777 = vmatprep.subr.bf16.mxu0 0
    %1778 = vmatpush1.bf16.xpose.msra.mxu0 0
    %1779 = vmatprep.subr.bf16.mxu0 0
    %1780 = vmatpush1.bf16.xpose.msra.mxu0 0
    %1781 = vmatprep.subr.bf16.mxu0 0
    %1782 = vmatpush1.bf16.xpose.msra.mxu0 0
    %1783 = vmatprep.subr.bf16.mxu0 0
    %1784 = vmatpush1.bf16.xpose.msra.mxu0 0
    %1785 = vmatprep.subr.bf16.mxu0 0
    %1786 = vmatpush1.bf16.xpose.msra.mxu0 0
    %1787 = vmatprep.subr.bf16.mxu0 0
    %1788 = vmatpush1.bf16.xpose.msra.mxu0 0
    %1789 = vmatprep.subr.bf16.mxu0 0
    %1790 = vmatpush1.bf16.xpose.msra.mxu0 0
    %1791 = vmatprep.subr.bf16.mxu0 0
    %1792 = vmatpush1.bf16.xpose.msra.mxu0 0
    %1793 = vmatprep.mubr.bf16.mxu0 0
    %1794 = vmatmul.mubr.bf16.gmra.mrb[0].mxu0 %v1756
    %v1795 = vpop.f32.mrb[0].mxu0
    %v1796 = vadd.f32 %v282, %v1795
    %v1797 = vpop.f32.mrb[0].mxu0
    %v1798 = vpop.f32.mrb[0].mxu0
    %v1799 = vadd.f32 %v283, %v1798
    %v1800 = vpop.f32.mrb[0].mxu0
    %1801 = vdwg.mxu0
    %v1802 = vsel %vm1079, %v1796, -inf
    %1803 = vmax.xlane.f32.xlu0 %v1802
    %v1804 = vpop.xlane.xlu0 %1803
    %v1805 = vsel %vm1079, %v1799, -inf
    %1806 = vmax.xlane.f32.xlu0 %v1805
    %v1807 = vpop.xlane.xlu0 %1806
    %v1808 = vsub.f32 %v1796, %v1804
    %v1809 = vsub.f32 %v1799, %v1807
    %v1810 = vmul.f32 %v1808, 1.442695
    %v1811 = vpow.pop %v1810
    %v1812 = vmul.f32 %v1809, 1.442695
    %v1813 = vpow.pop %v1812
    %v1814 = vsel %vm1079, %v1811, 0.0
    %1815 = vadd.xlane.f32.xlu0 %v1814
    %v1816 = vpop.xlane.xlu0 %1815
    %v1817 = vsel %vm1079, %v1813, 0.0
    %1818 = vadd.xlane.f32.xlu0 %v1817
    %v1819 = vpop.xlane.xlu0 %1818
    %v1820 = vrcp.pop %v1816
    %v1821 = vrcp.pop %v1819
    %v1822 = vmul.f32 %v1811, %v1820
    %v1823 = vmul.f32 %v1813, %v1821
    %v1824 = vpack.c.bf16 %v1823, %v1822
    %1825 = vrot.lane.b32.xlu0 %v1030, 64
    %v1826 = vpop.permute.xlu0 %1825
    %v1829 = vsel %vm1079, %v1824, 0
    %1831 = vmatprep.subr.bf16.mxu0 0
    %1832 = vmatpush1.bf16.msra.mxu0 %v1826
    %1833 = vmatprep.subr.bf16.mxu0 0
    %1834 = vmatpush1.bf16.msra.mxu0 0
    %1835 = vmatprep.subr.bf16.mxu0 0
    %1836 = vmatpush1.bf16.msra.mxu0 0
    %1837 = vmatprep.subr.bf16.mxu0 0
    %1838 = vmatpush1.bf16.msra.mxu0 0
    %1839 = vmatprep.subr.bf16.mxu0 0
    %1840 = vmatpush1.bf16.msra.mxu0 0
    %1841 = vmatprep.subr.bf16.mxu0 0
    %1842 = vmatpush1.bf16.msra.mxu0 0
    %1843 = vmatprep.subr.bf16.mxu0 0
    %1844 = vmatpush1.bf16.msra.mxu0 0
    %1845 = vmatprep.subr.bf16.mxu0 0
    %1846 = vmatpush1.bf16.msra.mxu0 0
    %1847 = vmatprep.subr.bf16.mxu0 0
    %1848 = vmatpush1.bf16.msra.mxu0 0
    %1849 = vmatprep.subr.bf16.mxu0 0
    %1850 = vmatpush1.bf16.msra.mxu0 0
    %1851 = vmatprep.subr.bf16.mxu0 0
    %1852 = vmatpush1.bf16.msra.mxu0 0
    %1853 = vmatprep.subr.bf16.mxu0 0
    %1854 = vmatpush1.bf16.msra.mxu0 0
    %1855 = vmatprep.subr.bf16.mxu0 0
    %1856 = vmatpush1.bf16.msra.mxu0 0
    %1857 = vmatprep.subr.bf16.mxu0 0
    %1858 = vmatpush1.bf16.msra.mxu0 0
    %1859 = vmatprep.subr.bf16.mxu0 0
    %1860 = vmatpush1.bf16.msra.mxu0 0
    %1861 = vmatprep.subr.bf16.mxu0 0
    %1862 = vmatpush1.bf16.msra.mxu0 0
    %1863 = vmatprep.mubr.bf16.mxu0 0
    %1864 = vmatmul.mubr.bf16.gmra.mrb[0].mxu0 %v1829
    %v1865 = vpop.f32.mrb[0].mxu0
    %v1866 = vadd.f32 0.0, %v1865
    %v1867 = vpop.f32.mrb[0].mxu0
    %v1868 = vpop.f32.mrb[0].mxu0
    %v1869 = vadd.f32 0.0, %v1868
    %v1870 = vpop.f32.mrb[0].mxu0
    %1871 = vdwg.mxu0
    %1872 = vrot.lane.b32.xlu0 %v1026, 32
    %v1873 = vpop.permute.xlu0 %1872
    %1874 = vrot.lane.b32.xlu0 %v1028, 32
    %v1875 = vpop.permute.xlu0 %1874
    %v1877 = vsel %vm1031, %v1873, 0
    %v1880 = vsel %vm1031, %v1875, 0
    %1882 = vmatprep.subr.bf16.mxu0 0
    %1883 = vmatpush1.bf16.xpose.msra.mxu0 %v1880
    %1884 = vmatprep.subr.bf16.mxu0 0
    %1885 = vmatpush1.bf16.xpose.msra.mxu0 0
    %1886 = vmatprep.subr.bf16.mxu0 0
    %1887 = vmatpush1.bf16.xpose.msra.mxu0 0
    %1888 = vmatprep.subr.bf16.mxu0 0
    %1889 = vmatpush1.bf16.xpose.msra.mxu0 0
    %1890 = vmatprep.subr.bf16.mxu0 0
    %1891 = vmatpush1.bf16.xpose.msra.mxu0 0
    %1892 = vmatprep.subr.bf16.mxu0 0
    %1893 = vmatpush1.bf16.xpose.msra.mxu0 0
    %1894 = vmatprep.subr.bf16.mxu0 0
    %1895 = vmatpush1.bf16.xpose.msra.mxu0 0
    %1896 = vmatprep.subr.bf16.mxu0 0
    %1897 = vmatpush1.bf16.xpose.msra.mxu0 0
    %1898 = vmatprep.subr.bf16.mxu0 0
    %1899 = vmatpush1.bf16.xpose.msra.mxu0 0
    %1900 = vmatprep.subr.bf16.mxu0 0
    %1901 = vmatpush1.bf16.xpose.msra.mxu0 0
    %1902 = vmatprep.subr.bf16.mxu0 0
    %1903 = vmatpush1.bf16.xpose.msra.mxu0 0
    %1904 = vmatprep.subr.bf16.mxu0 0
    %1905 = vmatpush1.bf16.xpose.msra.mxu0 0
    %1906 = vmatprep.subr.bf16.mxu0 0
    %1907 = vmatpush1.bf16.xpose.msra.mxu0 0
    %1908 = vmatprep.subr.bf16.mxu0 0
    %1909 = vmatpush1.bf16.xpose.msra.mxu0 0
    %1910 = vmatprep.subr.bf16.mxu0 0
    %1911 = vmatpush1.bf16.xpose.msra.mxu0 0
    %1912 = vmatprep.subr.bf16.mxu0 0
    %1913 = vmatpush1.bf16.xpose.msra.mxu0 0
    %1914 = vmatprep.mubr.bf16.mxu0 0
    %1915 = vmatmul.mubr.bf16.gmra.mrb[0].mxu0 %v1877
    %v1916 = vpop.f32.mrb[0].mxu0
    %v1917 = vadd.f32 %v282, %v1916
    %v1918 = vpop.f32.mrb[0].mxu0
    %v1919 = vpop.f32.mrb[0].mxu0
    %v1920 = vadd.f32 %v283, %v1919
    %v1921 = vpop.f32.mrb[0].mxu0
    %1922 = vdwg.mxu0
    %v1923 = vsel %vm1079, %v1917, -inf
    %1924 = vmax.xlane.f32.xlu0 %v1923
    %v1925 = vpop.xlane.xlu0 %1924
    %v1926 = vsel %vm1079, %v1920, -inf
    %1927 = vmax.xlane.f32.xlu0 %v1926
    %v1928 = vpop.xlane.xlu0 %1927
    %v1929 = vsub.f32 %v1917, %v1925
    %v1930 = vsub.f32 %v1920, %v1928
    %v1931 = vmul.f32 %v1929, 1.442695
    %v1932 = vpow.pop %v1931
    %v1933 = vmul.f32 %v1930, 1.442695
    %v1934 = vpow.pop %v1933
    %v1935 = vsel %vm1079, %v1932, 0.0
    %1936 = vadd.xlane.f32.xlu0 %v1935
    %v1937 = vpop.xlane.xlu0 %1936
    %v1938 = vsel %vm1079, %v1934, 0.0
    %1939 = vadd.xlane.f32.xlu0 %v1938
    %v1940 = vpop.xlane.xlu0 %1939
    %v1941 = vrcp.pop %v1937
    %v1942 = vrcp.pop %v1940
    %v1943 = vmul.f32 %v1932, %v1941
    %v1944 = vmul.f32 %v1934, %v1942
    %v1945 = vpack.c.bf16 %v1944, %v1943
    %1946 = vrot.lane.b32.xlu0 %v1030, 32
    %v1947 = vpop.permute.xlu0 %1946
    %v1950 = vsel %vm1079, %v1945, 0
    %1952 = vmatprep.subr.bf16.mxu0 0
    %1953 = vmatpush1.bf16.msra.mxu0 %v1947
    %1954 = vmatprep.subr.bf16.mxu0 0
    %1955 = vmatpush1.bf16.msra.mxu0 0
    %1956 = vmatprep.subr.bf16.mxu0 0
    %1957 = vmatpush1.bf16.msra.mxu0 0
    %1958 = vmatprep.subr.bf16.mxu0 0
    %1959 = vmatpush1.bf16.msra.mxu0 0
    %1960 = vmatprep.subr.bf16.mxu0 0
    %1961 = vmatpush1.bf16.msra.mxu0 0
    %1962 = vmatprep.subr.bf16.mxu0 0
    %1963 = vmatpush1.bf16.msra.mxu0 0
    %1964 = vmatprep.subr.bf16.mxu0 0
    %1965 = vmatpush1.bf16.msra.mxu0 0
    %1966 = vmatprep.subr.bf16.mxu0 0
    %1967 = vmatpush1.bf16.msra.mxu0 0
    %1968 = vmatprep.subr.bf16.mxu0 0
    %1969 = vmatpush1.bf16.msra.mxu0 0
    %1970 = vmatprep.subr.bf16.mxu0 0
    %1971 = vmatpush1.bf16.msra.mxu0 0
    %1972 = vmatprep.subr.bf16.mxu0 0
    %1973 = vmatpush1.bf16.msra.mxu0 0
    %1974 = vmatprep.subr.bf16.mxu0 0
    %1975 = vmatpush1.bf16.msra.mxu0 0
    %1976 = vmatprep.subr.bf16.mxu0 0
    %1977 = vmatpush1.bf16.msra.mxu0 0
    %1978 = vmatprep.subr.bf16.mxu0 0
    %1979 = vmatpush1.bf16.msra.mxu0 0
    %1980 = vmatprep.subr.bf16.mxu0 0
    %1981 = vmatpush1.bf16.msra.mxu0 0
    %1982 = vmatprep.subr.bf16.mxu0 0
    %1983 = vmatpush1.bf16.msra.mxu0 0
    %1984 = vmatprep.mubr.bf16.mxu0 0
    %1985 = vmatmul.mubr.bf16.gmra.mrb[0].mxu0 %v1950
    %v1986 = vpop.f32.mrb[0].mxu0
    %v1987 = vadd.f32 0.0, %v1986
    %v1988 = vpop.f32.mrb[0].mxu0
    %v1989 = vpop.f32.mrb[0].mxu0
    %v1990 = vadd.f32 0.0, %v1989
    %v1991 = vpop.f32.mrb[0].mxu0
    %1992 = vdwg.mxu0
    %1995 = vrot.lane.b32.xlu0 %v1265, 32
    %v1996 = vpop.permute.xlu0 %1995
    %1997 = vrot.lane.b32.xlu0 %v1268, 32
    %v1998 = vpop.permute.xlu0 %1997
    %2003 = vrot.lane.b32.xlu0 %v1386, 64
    %v2004 = vpop.permute.xlu0 %2003
    %2005 = vrot.lane.b32.xlu0 %v1389, 64
    %v2006 = vpop.permute.xlu0 %2005
    %2011 = vrot.lane.b32.xlu0 %v1507, 96
    %v2012 = vpop.permute.xlu0 %2011
    %2013 = vrot.lane.b32.xlu0 %v1510, 96
    %v2014 = vpop.permute.xlu0 %2013
    %2019 = vrot.lane.b32.xlu0 %v1745, 32
    %v2020 = vpop.permute.xlu0 %2019
    %2021 = vrot.lane.b32.xlu0 %v1748, 32
    %v2022 = vpop.permute.xlu0 %2021
    %2027 = vrot.lane.b32.xlu0 %v1866, 64
    %v2028 = vpop.permute.xlu0 %2027
    %2029 = vrot.lane.b32.xlu0 %v1869, 64
    %v2030 = vpop.permute.xlu0 %2029
    %2035 = vrot.lane.b32.xlu0 %v1987, 96
    %v2036 = vpop.permute.xlu0 %2035
    %2037 = vrot.lane.b32.xlu0 %v1990, 96
    %v2038 = vpop.permute.xlu0 %2037
    %v2041 = vsel %vm1031, %v1141, %v1996
    %v2042 = vsel %vm1031, %v1144, %v1998
    %vm2043 = vcmask 523264
    %v2044 = vsel %vm2043, %v2041, %v2004
    %v2045 = vsel %vm2043, %v2042, %v2006
    %vm2046 = vcmask 785408
    %v2047 = vsel %vm2046, %v2044, %v2012
    %v2048 = vsel %vm2046, %v2045, %v2014
    %v2049 = vsel %vm1031, %v1621, %v2020
    %v2050 = vsel %vm1031, %v1624, %v2022
    %v2051 = vsel %vm2043, %v2049, %v2028
    %v2052 = vsel %vm2043, %v2050, %v2030
    %v2053 = vsel %vm2046, %v2051, %v2036
    %v2054 = vsel %vm2046, %v2052, %v2038
    %v2055 = vpack.c.bf16 %v2048, %v2047
    %v2056 = vpack.c.bf16 %v2054, %v2053
    %v2057 = vld [vmem:[#allocation16] sm:$0xff]
    %v2058 = vld [vmem:[#allocation16 + $0x8] sm:$0xff]
    %v2059 = vld [vmem:[#allocation16 + $0x10] sm:$0xff]
    %v2060 = vld [vmem:[#allocation16 + $0x18] sm:$0xff]
    %v2061 = vld [vmem:[#allocation16 + $0x20] sm:$0xff]
    %v2062 = vld [vmem:[#allocation16 + $0x28] sm:$0xff]
    %v2063 = vld [vmem:[#allocation16 + $0x30] sm:$0xff]
    %v2064 = vld [vmem:[#allocation16 + $0x38] sm:$0xff]
    %v2065 = vld [vmem:[#allocation16 + $0x40] sm:$0xff]
    %v2066 = vld [vmem:[#allocation16 + $0x48] sm:$0xff]
    %v2067 = vld [vmem:[#allocation16 + $0x50] sm:$0xff]
    %v2068 = vld [vmem:[#allocation16 + $0x58] sm:$0xff]
    %v2069 = vld [vmem:[#allocation16 + $0x60] sm:$0xff]
    %v2070 = vld [vmem:[#allocation16 + $0x68] sm:$0xff]
    %v2071 = vld [vmem:[#allocation16 + $0x70] sm:$0xff]
    %v2072 = vld [vmem:[#allocation16 + $0x78] sm:$0xff]
    %v2073 = vld [vmem:[#allocation16 + $0x80] sm:$0xff]
    %v2074 = vld [vmem:[#allocation16 + $0x88] sm:$0xff]
    %v2075 = vld [vmem:[#allocation16 + $0x90] sm:$0xff]
    %v2076 = vld [vmem:[#allocation16 + $0x98] sm:$0xff]
    %v2077 = vld [vmem:[#allocation16 + $0xa0] sm:$0xff]
    %v2078 = vld [vmem:[#allocation16 + $0xa8] sm:$0xff]
    %v2079 = vld [vmem:[#allocation16 + $0xb0] sm:$0xff]
    %v2080 = vld [vmem:[#allocation16 + $0xb8] sm:$0xff]
    %v2081 = vld [vmem:[#allocation16 + $0xc0] sm:$0xff]
    %v2082 = vld [vmem:[#allocation16 + $0xc8] sm:$0xff]
    %v2083 = vld [vmem:[#allocation16 + $0xd0] sm:$0xff]
    %v2084 = vld [vmem:[#allocation16 + $0xd8] sm:$0xff]
    %v2085 = vld [vmem:[#allocation16 + $0xe0] sm:$0xff]
    %v2086 = vld [vmem:[#allocation16 + $0xe8] sm:$0xff]
    %v2087 = vld [vmem:[#allocation16 + $0xf0] sm:$0xff]
    %v2088 = vld [vmem:[#allocation16 + $0xf8] sm:$0xff]
    %v2089 = vld [vmem:[#allocation17] sm:$0x3]
    %v2091 = vlaneseq
    %v2092 = vshrl.u32 %v2091, 7
    %v2093 = vsub.s32 0, %v2092
    %v2094 = vrot.slane %v2089, %v2093
    %v2095 = vlaneseq
    %v2096 = vshrl.u32 %v2095, 7
    %v2097 = vsub.s32 1, %v2096
    %v2098 = vrot.slane %v2089, %v2097
    %v2133 = vunpack.c.l.b16 %v2057
    %v2134 = vunpack.c.h.b16 %v2057
    %v2135 = vunpack.c.l.b16 %v2058
    %v2136 = vunpack.c.h.b16 %v2058
    %v2137 = vunpack.c.l.b16 %v2059
    %v2138 = vunpack.c.h.b16 %v2059
    %v2139 = vunpack.c.l.b16 %v2060
    %v2140 = vunpack.c.h.b16 %v2060
    %v2141 = vunpack.c.l.b16 %v2061
    %v2142 = vunpack.c.h.b16 %v2061
    %v2143 = vunpack.c.l.b16 %v2062
    %v2144 = vunpack.c.h.b16 %v2062
    %v2145 = vunpack.c.l.b16 %v2063
    %v2146 = vunpack.c.h.b16 %v2063
    %v2147 = vunpack.c.l.b16 %v2064
    %v2148 = vunpack.c.h.b16 %v2064
    %v2149 = vunpack.c.l.b16 %v2065
    %v2150 = vunpack.c.h.b16 %v2065
    %v2151 = vunpack.c.l.b16 %v2066
    %v2152 = vunpack.c.h.b16 %v2066
    %v2153 = vunpack.c.l.b16 %v2067
    %v2154 = vunpack.c.h.b16 %v2067
    %v2155 = vunpack.c.l.b16 %v2068
    %v2156 = vunpack.c.h.b16 %v2068
    %v2157 = vunpack.c.l.b16 %v2069
    %v2158 = vunpack.c.h.b16 %v2069
    %v2159 = vunpack.c.l.b16 %v2070
    %v2160 = vunpack.c.h.b16 %v2070
    %v2161 = vunpack.c.l.b16 %v2071
    %v2162 = vunpack.c.h.b16 %v2071
    %v2163 = vunpack.c.l.b16 %v2072
    %v2164 = vunpack.c.h.b16 %v2072
    %v2165 = vunpack.c.l.b16 %v2073
    %v2166 = vunpack.c.h.b16 %v2073
    %v2167 = vunpack.c.l.b16 %v2074
    %v2168 = vunpack.c.h.b16 %v2074
    %v2169 = vunpack.c.l.b16 %v2075
    %v2170 = vunpack.c.h.b16 %v2075
    %v2171 = vunpack.c.l.b16 %v2076
    %v2172 = vunpack.c.h.b16 %v2076
    %v2173 = vunpack.c.l.b16 %v2077
    %v2174 = vunpack.c.h.b16 %v2077
    %v2175 = vunpack.c.l.b16 %v2078
    %v2176 = vunpack.c.h.b16 %v2078
    %v2177 = vunpack.c.l.b16 %v2079
    %v2178 = vunpack.c.h.b16 %v2079
    %v2179 = vunpack.c.l.b16 %v2080
    %v2180 = vunpack.c.h.b16 %v2080
    %v2181 = vunpack.c.l.b16 %v2081
    %v2182 = vunpack.c.h.b16 %v2081
    %v2183 = vunpack.c.l.b16 %v2082
    %v2184 = vunpack.c.h.b16 %v2082
    %v2185 = vunpack.c.l.b16 %v2083
    %v2186 = vunpack.c.h.b16 %v2083
    %v2187 = vunpack.c.l.b16 %v2084
    %v2188 = vunpack.c.h.b16 %v2084
    %v2189 = vunpack.c.l.b16 %v2085
    %v2190 = vunpack.c.h.b16 %v2085
    %v2191 = vunpack.c.l.b16 %v2086
    %v2192 = vunpack.c.h.b16 %v2086
    %v2193 = vunpack.c.l.b16 %v2087
    %v2194 = vunpack.c.h.b16 %v2087
    %v2195 = vunpack.c.l.b16 %v2088
    %v2196 = vunpack.c.h.b16 %v2088
    %v2197 = vpack.c.b16 %v2135, %v2133
    %v2198 = vpack.c.b16 %v2136, %v2134
    %v2199 = vpack.c.b16 %v2139, %v2137
    %v2200 = vpack.c.b16 %v2140, %v2138
    %v2201 = vpack.c.b16 %v2143, %v2141
    %v2202 = vpack.c.b16 %v2144, %v2142
    %v2203 = vpack.c.b16 %v2147, %v2145
    %v2204 = vpack.c.b16 %v2148, %v2146
    %v2205 = vpack.c.b16 %v2151, %v2149
    %v2206 = vpack.c.b16 %v2152, %v2150
    %v2207 = vpack.c.b16 %v2155, %v2153
    %v2208 = vpack.c.b16 %v2156, %v2154
    %v2209 = vpack.c.b16 %v2159, %v2157
    %v2210 = vpack.c.b16 %v2160, %v2158
    %v2211 = vpack.c.b16 %v2163, %v2161
    %v2212 = vpack.c.b16 %v2164, %v2162
    %v2213 = vpack.c.b16 %v2167, %v2165
    %v2214 = vpack.c.b16 %v2168, %v2166
    %v2215 = vpack.c.b16 %v2171, %v2169
    %v2216 = vpack.c.b16 %v2172, %v2170
    %v2217 = vpack.c.b16 %v2175, %v2173
    %v2218 = vpack.c.b16 %v2176, %v2174
    %v2219 = vpack.c.b16 %v2179, %v2177
    %v2220 = vpack.c.b16 %v2180, %v2178
    %v2221 = vpack.c.b16 %v2183, %v2181
    %v2222 = vpack.c.b16 %v2184, %v2182
    %v2223 = vpack.c.b16 %v2187, %v2185
    %v2224 = vpack.c.b16 %v2188, %v2186
    %v2225 = vpack.c.b16 %v2191, %v2189
    %v2226 = vpack.c.b16 %v2192, %v2190
    %v2227 = vpack.c.b16 %v2195, %v2193
    %v2228 = vpack.c.b16 %v2196, %v2194
    %2261 = vmatprep.subr.bf16.mxu0 %v2198
    %2262 = vmatpush1.bf16.msra.mxu0 %v2197
    %2263 = vmatprep.subr.bf16.mxu0 %v2200
    %2264 = vmatpush1.bf16.msra.mxu0 %v2199
    %2265 = vmatprep.subr.bf16.mxu0 %v2202
    %2266 = vmatpush1.bf16.msra.mxu0 %v2201
    %2267 = vmatprep.subr.bf16.mxu0 %v2204
    %2268 = vmatpush1.bf16.msra.mxu0 %v2203
    %2269 = vmatprep.subr.bf16.mxu0 %v2206
    %2270 = vmatpush1.bf16.msra.mxu0 %v2205
    %2271 = vmatprep.subr.bf16.mxu0 %v2208
    %2272 = vmatpush1.bf16.msra.mxu0 %v2207
    %2273 = vmatprep.subr.bf16.mxu0 %v2210
    %2274 = vmatpush1.bf16.msra.mxu0 %v2209
    %2275 = vmatprep.subr.bf16.mxu0 %v2212
    %2276 = vmatpush1.bf16.msra.mxu0 %v2211
    %2277 = vmatprep.subr.bf16.mxu0 %v2214
    %2278 = vmatpush1.bf16.msra.mxu0 %v2213
    %2279 = vmatprep.subr.bf16.mxu0 %v2216
    %2280 = vmatpush1.bf16.msra.mxu0 %v2215
    %2281 = vmatprep.subr.bf16.mxu0 %v2218
    %2282 = vmatpush1.bf16.msra.mxu0 %v2217
    %2283 = vmatprep.subr.bf16.mxu0 %v2220
    %2284 = vmatpush1.bf16.msra.mxu0 %v2219
    %2285 = vmatprep.subr.bf16.mxu0 %v2222
    %2286 = vmatpush1.bf16.msra.mxu0 %v2221
    %2287 = vmatprep.subr.bf16.mxu0 %v2224
    %2288 = vmatpush1.bf16.msra.mxu0 %v2223
    %2289 = vmatprep.subr.bf16.mxu0 %v2226
    %2290 = vmatpush1.bf16.msra.mxu0 %v2225
    %2291 = vmatprep.subr.bf16.mxu0 %v2228
    %2292 = vmatpush1.bf16.msra.mxu0 %v2227
    %2293 = vmatprep.mubr.bf16.mxu0 %v2056
    %2294 = vmatmul.mubr.bf16.gmra.mrb[0].mxu0 %v2055
    %v2295 = vpop.f32.mrb[0].mxu0
    %v2296 = vadd.f32 %v2094, %v2295
    %v2297 = vpop.f32.mrb[0].mxu0
    %v2298 = vadd.f32 %v2098, %v2297
    %v2299 = vpop.f32.mrb[0].mxu0
    %v2300 = vadd.f32 %v2094, %v2299
    %v2301 = vpop.f32.mrb[0].mxu0
    %v2302 = vadd.f32 %v2098, %v2301
    %2303 = vdwg.mxu0
    %v2304 = vadd.f32 %v276, %v2296
    %v2305 = vadd.f32 %v277, %v2298
    %v2306 = vadd.f32 %v278, %v2300
    %v2307 = vadd.f32 %v279, %v2302
    %v2308 = vld [vmem:[#allocation19] sm:$0x3]
    %v2309 = vld [vmem:[#allocation20] sm:$0x3]
    %v2310 = vadd.f32 %v2304, %v2305
    %2311 = vadd.xlane.f32.xlu0 %v2310
    %v2312 = vpop.xlane.xlu0 %2311
    %v2313 = vadd.f32 %v2306, %v2307
    %2314 = vadd.xlane.f32.xlu0 %v2313
    %v2315 = vpop.xlane.xlu0 %2314
    %v2316 = vrcp.pop 256.0
    %v2317 = vmul.f32 %v2312, %v2316
    %v2318 = vmul.f32 %v2315, %v2316
    %v2319 = vsub.f32 %v2304, %v2317
    %v2320 = vsub.f32 %v2305, %v2317
    %v2321 = vsub.f32 %v2306, %v2318
    %v2322 = vsub.f32 %v2307, %v2318
    %v2323 = vmul.f32 %v2319, %v2319
    %v2324 = vmul.f32 %v2320, %v2320
    %v2325 = vmul.f32 %v2321, %v2321
    %v2326 = vmul.f32 %v2322, %v2322
    %v2327 = vadd.f32 %v2323, %v2324
    %2328 = vadd.xlane.f32.xlu0 %v2327
    %v2329 = vpop.xlane.xlu0 %2328
    %v2330 = vadd.f32 %v2325, %v2326
    %2331 = vadd.xlane.f32.xlu0 %v2330
    %v2332 = vpop.xlane.xlu0 %2331
    %v2333 = vmul.f32 %v2329, %v2316
    %v2334 = vmul.f32 %v2332, %v2316
    %v2335 = vadd.f32 %v2333, 1e-05
    %v2336 = vadd.f32 %v2334, 1e-05
    %v2337 = vrsqrt.pop %v2335
    %v2338 = vrsqrt.pop %v2336
    %v2339 = vmul.f32 %v2319, %v2337
    %v2340 = vmul.f32 %v2320, %v2337
    %v2341 = vmul.f32 %v2321, %v2338
    %v2342 = vmul.f32 %v2322, %v2338
    %v2344 = vlaneseq
    %v2345 = vshrl.u32 %v2344, 7
    %v2346 = vsub.s32 0, %v2345
    %v2347 = vrot.slane %v2308, %v2346
    %v2348 = vlaneseq
    %v2349 = vshrl.u32 %v2348, 7
    %v2350 = vsub.s32 1, %v2349
    %v2351 = vrot.slane %v2308, %v2350
    %v2354 = vmul.f32 %v2339, %v2347
    %v2355 = vmul.f32 %v2340, %v2351
    %v2356 = vmul.f32 %v2341, %v2347
    %v2357 = vmul.f32 %v2342, %v2351
    %v2359 = vlaneseq
    %v2360 = vshrl.u32 %v2359, 7
    %v2361 = vsub.s32 0, %v2360
    %v2362 = vrot.slane %v2309, %v2361
    %v2363 = vlaneseq
    %v2364 = vshrl.u32 %v2363, 7
    %v2365 = vsub.s32 1, %v2364
    %v2366 = vrot.slane %v2309, %v2365
    %v2369 = vadd.f32 %v2354, %v2362
    %v2370 = vadd.f32 %v2355, %v2366
    %v2371 = vadd.f32 %v2356, %v2362
    %v2372 = vadd.f32 %v2357, %v2366
    %v2373 = vrot.slane %v2369, 4
    %v2374 = vadd.f32 %v2369, %v2373
    %v2375 = vrot.slane %v2374, 2
    %v2376 = vadd.f32 %v2374, %v2375
    %v2377 = vrot.slane %v2376, 1
    %v2378 = vadd.f32 %v2376, %v2377
    %v2379 = vrot.slane %v2370, 4
    %v2380 = vadd.f32 %v2370, %v2379
    %v2381 = vrot.slane %v2380, 2
    %v2382 = vadd.f32 %v2380, %v2381
    %v2383 = vrot.slane %v2382, 1
    %v2384 = vadd.f32 %v2382, %v2383
    %v2385 = vrot.slane %v2371, 4
    %v2386 = vadd.f32 %v2371, %v2385
    %v2387 = vrot.slane %v2386, 2
    %v2388 = vadd.f32 %v2386, %v2387
    %v2389 = vrot.slane %v2388, 1
    %v2390 = vadd.f32 %v2388, %v2389
    %v2391 = vrot.slane %v2372, 4
    %v2392 = vadd.f32 %v2372, %v2391
    %v2393 = vrot.slane %v2392, 2
    %v2394 = vadd.f32 %v2392, %v2393
    %v2395 = vrot.slane %v2394, 1
    %v2396 = vadd.f32 %v2394, %v2395
    %v2397 = vrcp.pop 8.0
    %v2398 = vmul.f32 %v2378, %v2397
    %v2399 = vmul.f32 %v2384, %v2397
    %v2400 = vmul.f32 %v2390, %v2397
    %v2401 = vmul.f32 %v2396, %v2397
    %v2402 = vrot.slane %v2369, 4
    %v2403 = vmax.f32 %v2369, %v2402
    %v2404 = vrot.slane %v2403, 2
    %v2405 = vmax.f32 %v2403, %v2404
    %v2406 = vrot.slane %v2405, 1
    %v2407 = vmax.f32 %v2405, %v2406
    %v2408 = vrot.slane %v2370, 4
    %v2409 = vmax.f32 %v2370, %v2408
    %v2410 = vrot.slane %v2409, 2
    %v2411 = vmax.f32 %v2409, %v2410
    %v2412 = vrot.slane %v2411, 1
    %v2413 = vmax.f32 %v2411, %v2412
    %v2414 = vrot.slane %v2371, 4
    %v2415 = vmax.f32 %v2371, %v2414
    %v2416 = vrot.slane %v2415, 2
    %v2417 = vmax.f32 %v2415, %v2416
    %v2418 = vrot.slane %v2417, 1
    %v2419 = vmax.f32 %v2417, %v2418
    %v2420 = vrot.slane %v2372, 4
    %v2421 = vmax.f32 %v2372, %v2420
    %v2422 = vrot.slane %v2421, 2
    %v2423 = vmax.f32 %v2421, %v2422
    %v2424 = vrot.slane %v2423, 1
    %v2425 = vmax.f32 %v2423, %v2424
    %v2426 = vpack.c.bf16 %v2398, %v2398
    %v2427 = vpack.c.bf16 %v2399, %v2399
    %v2428 = vpack.c.bf16 %v2400, %v2400
    %v2429 = vpack.c.bf16 %v2401, %v2401
    %v2430 = vld [vmem:[#allocation22] sm:$0xf]
    %v2431 = vld [vmem:[#allocation22 + $0x4] sm:$0xf]
    %v2432 = vld [vmem:[#allocation22 + $0x8] sm:$0xf]
    %v2433 = vld [vmem:[#allocation22 + $0xc] sm:$0xf]
    %v2434 = vld [vmem:[#allocation22 + $0x10] sm:$0xf]
    %v2435 = vld [vmem:[#allocation22 + $0x14] sm:$0xf]
    %v2436 = vld [vmem:[#allocation22 + $0x18] sm:$0xf]
    %v2437 = vld [vmem:[#allocation22 + $0x1c] sm:$0xf]
    %v2438 = vld [vmem:[#allocation22 + $0x20] sm:$0xf]
    %v2439 = vld [vmem:[#allocation22 + $0x24] sm:$0xf]
    %v2440 = vld [vmem:[#allocation22 + $0x28] sm:$0xf]
    %v2441 = vld [vmem:[#allocation22 + $0x2c] sm:$0xf]
    %v2442 = vld [vmem:[#allocation22 + $0x30] sm:$0xf]
    %v2443 = vld [vmem:[#allocation22 + $0x34] sm:$0xf]
    %v2444 = vld [vmem:[#allocation22 + $0x38] sm:$0xf]
    %v2445 = vld [vmem:[#allocation22 + $0x3c] sm:$0xf]
    %v2446 = vld [vmem:[#allocation22 + $0x40] sm:$0xf]
    %v2447 = vld [vmem:[#allocation22 + $0x44] sm:$0xf]
    %v2448 = vld [vmem:[#allocation22 + $0x48] sm:$0xf]
    %v2449 = vld [vmem:[#allocation22 + $0x4c] sm:$0xf]
    %v2450 = vld [vmem:[#allocation22 + $0x50] sm:$0xf]
    %v2451 = vld [vmem:[#allocation22 + $0x54] sm:$0xf]
    %v2452 = vld [vmem:[#allocation22 + $0x58] sm:$0xf]
    %v2453 = vld [vmem:[#allocation22 + $0x5c] sm:$0xf]
    %v2454 = vld [vmem:[#allocation22 + $0x60] sm:$0xf]
    %v2455 = vld [vmem:[#allocation22 + $0x64] sm:$0xf]
    %v2456 = vld [vmem:[#allocation22 + $0x68] sm:$0xf]
    %v2457 = vld [vmem:[#allocation22 + $0x6c] sm:$0xf]
    %v2458 = vld [vmem:[#allocation22 + $0x70] sm:$0xf]
    %v2459 = vld [vmem:[#allocation22 + $0x74] sm:$0xf]
    %v2460 = vld [vmem:[#allocation22 + $0x78] sm:$0xf]
    %v2461 = vld [vmem:[#allocation22 + $0x7c] sm:$0xf]
    %v2462 = vpack.c.bf16 %v2407, %v2407
    %v2463 = vpack.c.bf16 %v2413, %v2413
    %v2464 = vpack.c.bf16 %v2419, %v2419
    %v2465 = vpack.c.bf16 %v2425, %v2425
    %v2466 = vld [vmem:[#allocation23] sm:$0xf]
    %v2467 = vld [vmem:[#allocation23 + $0x4] sm:$0xf]
    %v2468 = vld [vmem:[#allocation23 + $0x8] sm:$0xf]
    %v2469 = vld [vmem:[#allocation23 + $0xc] sm:$0xf]
    %v2470 = vld [vmem:[#allocation23 + $0x10] sm:$0xf]
    %v2471 = vld [vmem:[#allocation23 + $0x14] sm:$0xf]
    %v2472 = vld [vmem:[#allocation23 + $0x18] sm:$0xf]
    %v2473 = vld [vmem:[#allocation23 + $0x1c] sm:$0xf]
    %v2474 = vld [vmem:[#allocation23 + $0x20] sm:$0xf]
    %v2475 = vld [vmem:[#allocation23 + $0x24] sm:$0xf]
    %v2476 = vld [vmem:[#allocation23 + $0x28] sm:$0xf]
    %v2477 = vld [vmem:[#allocation23 + $0x2c] sm:$0xf]
    %v2478 = vld [vmem:[#allocation23 + $0x30] sm:$0xf]
    %v2479 = vld [vmem:[#allocation23 + $0x34] sm:$0xf]
    %v2480 = vld [vmem:[#allocation23 + $0x38] sm:$0xf]
    %v2481 = vld [vmem:[#allocation23 + $0x3c] sm:$0xf]
    %v2482 = vld [vmem:[#allocation23 + $0x40] sm:$0xf]
    %v2483 = vld [vmem:[#allocation23 + $0x44] sm:$0xf]
    %v2484 = vld [vmem:[#allocation23 + $0x48] sm:$0xf]
    %v2485 = vld [vmem:[#allocation23 + $0x4c] sm:$0xf]
    %v2486 = vld [vmem:[#allocation23 + $0x50] sm:$0xf]
    %v2487 = vld [vmem:[#allocation23 + $0x54] sm:$0xf]
    %v2488 = vld [vmem:[#allocation23 + $0x58] sm:$0xf]
    %v2489 = vld [vmem:[#allocation23 + $0x5c] sm:$0xf]
    %v2490 = vld [vmem:[#allocation23 + $0x60] sm:$0xf]
    %v2491 = vld [vmem:[#allocation23 + $0x64] sm:$0xf]
    %v2492 = vld [vmem:[#allocation23 + $0x68] sm:$0xf]
    %v2493 = vld [vmem:[#allocation23 + $0x6c] sm:$0xf]
    %v2494 = vld [vmem:[#allocation23 + $0x70] sm:$0xf]
    %v2495 = vld [vmem:[#allocation23 + $0x74] sm:$0xf]
    %v2496 = vld [vmem:[#allocation23 + $0x78] sm:$0xf]
    %v2497 = vld [vmem:[#allocation23 + $0x7c] sm:$0xf]
    %v2502 = vunpack.c.l.b16 %v2462
    %v2503 = vunpack.c.l.b16 %v2463
    %v2504 = vunpack.c.l.b16 %v2464
    %v2505 = vunpack.c.l.b16 %v2465
    %vm2506 = vcmask 1041409
    %v2507 = vsel %vm2506, %v2504, %v2502
    %v2508 = vsel %vm2506, %v2505, %v2503
    %v2509 = vpack.c.b16 %v2507, %v2507
    %v2510 = vpack.c.b16 %v2508, %v2508
    %v2545 = vunpack.c.l.b16 %v2466
    %v2546 = vunpack.c.l.b16 %v2467
    %v2547 = vunpack.c.l.b16 %v2468
    %v2548 = vunpack.c.l.b16 %v2469
    %v2549 = vunpack.c.l.b16 %v2470
    %v2550 = vunpack.c.l.b16 %v2471
    %v2551 = vunpack.c.l.b16 %v2472
    %v2552 = vunpack.c.l.b16 %v2473
    %v2553 = vunpack.c.l.b16 %v2474
    %v2554 = vunpack.c.l.b16 %v2475
    %v2555 = vunpack.c.l.b16 %v2476
    %v2556 = vunpack.c.l.b16 %v2477
    %v2557 = vunpack.c.l.b16 %v2478
    %v2558 = vunpack.c.l.b16 %v2479
    %v2559 = vunpack.c.l.b16 %v2480
    %v2560 = vunpack.c.l.b16 %v2481
    %v2561 = vunpack.c.l.b16 %v2482
    %v2562 = vunpack.c.l.b16 %v2483
    %v2563 = vunpack.c.l.b16 %v2484
    %v2564 = vunpack.c.l.b16 %v2485
    %v2565 = vunpack.c.l.b16 %v2486
    %v2566 = vunpack.c.l.b16 %v2487
    %v2567 = vunpack.c.l.b16 %v2488
    %v2568 = vunpack.c.l.b16 %v2489
    %v2569 = vunpack.c.l.b16 %v2490
    %v2570 = vunpack.c.l.b16 %v2491
    %v2571 = vunpack.c.l.b16 %v2492
    %v2572 = vunpack.c.l.b16 %v2493
    %v2573 = vunpack.c.l.b16 %v2494
    %v2574 = vunpack.c.l.b16 %v2495
    %v2575 = vunpack.c.l.b16 %v2496
    %v2576 = vunpack.c.l.b16 %v2497
    %v2577 = vpack.c.b16 %v2546, %v2545
    %v2578 = vpack.c.b16 %v2548, %v2547
    %v2579 = vpack.c.b16 %v2550, %v2549
    %v2580 = vpack.c.b16 %v2552, %v2551
    %v2581 = vpack.c.b16 %v2554, %v2553
    %v2582 = vpack.c.b16 %v2556, %v2555
    %v2583 = vpack.c.b16 %v2558, %v2557
    %v2584 = vpack.c.b16 %v2560, %v2559
    %v2585 = vpack.c.b16 %v2562, %v2561
    %v2586 = vpack.c.b16 %v2564, %v2563
    %v2587 = vpack.c.b16 %v2566, %v2565
    %v2588 = vpack.c.b16 %v2568, %v2567
    %v2589 = vpack.c.b16 %v2570, %v2569
    %v2590 = vpack.c.b16 %v2572, %v2571
    %v2591 = vpack.c.b16 %v2574, %v2573
    %v2592 = vpack.c.b16 %v2576, %v2575
    %2609 = vmatprep.subr.bf16.mxu0 0
    %2610 = vmatpush1.bf16.msra.mxu0 %v2577
    %2611 = vmatprep.subr.bf16.mxu0 0
    %2612 = vmatpush1.bf16.msra.mxu0 %v2578
    %2613 = vmatprep.subr.bf16.mxu0 0
    %2614 = vmatpush1.bf16.msra.mxu0 %v2579
    %2615 = vmatprep.subr.bf16.mxu0 0
    %2616 = vmatpush1.bf16.msra.mxu0 %v2580
    %2617 = vmatprep.subr.bf16.mxu0 0
    %2618 = vmatpush1.bf16.msra.mxu0 %v2581
    %2619 = vmatprep.subr.bf16.mxu0 0
    %2620 = vmatpush1.bf16.msra.mxu0 %v2582
    %2621 = vmatprep.subr.bf16.mxu0 0
    %2622 = vmatpush1.bf16.msra.mxu0 %v2583
    %2623 = vmatprep.subr.bf16.mxu0 0
    %2624 = vmatpush1.bf16.msra.mxu0 %v2584
    %2625 = vmatprep.subr.bf16.mxu0 0
    %2626 = vmatpush1.bf16.msra.mxu0 %v2585
    %2627 = vmatprep.subr.bf16.mxu0 0
    %2628 = vmatpush1.bf16.msra.mxu0 %v2586
    %2629 = vmatprep.subr.bf16.mxu0 0
    %2630 = vmatpush1.bf16.msra.mxu0 %v2587
    %2631 = vmatprep.subr.bf16.mxu0 0
    %2632 = vmatpush1.bf16.msra.mxu0 %v2588
    %2633 = vmatprep.subr.bf16.mxu0 0
    %2634 = vmatpush1.bf16.msra.mxu0 %v2589
    %2635 = vmatprep.subr.bf16.mxu0 0
    %2636 = vmatpush1.bf16.msra.mxu0 %v2590
    %2637 = vmatprep.subr.bf16.mxu0 0
    %2638 = vmatpush1.bf16.msra.mxu0 %v2591
    %2639 = vmatprep.subr.bf16.mxu0 0
    %2640 = vmatpush1.bf16.msra.mxu0 %v2592
    %2641 = vmatprep.mubr.bf16.mxu0 %v2510
    %2642 = vmatmul.mubr.bf16.gmra.mrb[0].mxu0 %v2509
    %v2643 = vpop.f32.mrb[0].mxu0
    %v2644 = vadd.f32 0.0, %v2643
    %v2645 = vpop.f32.mrb[0].mxu0
    %v2646 = vpop.f32.mrb[0].mxu0
    %v2647 = vpop.f32.mrb[0].mxu0
    %2648 = vdwg.mxu0
    %v2653 = vunpack.c.l.b16 %v2426
    %v2654 = vunpack.c.l.b16 %v2427
    %v2655 = vunpack.c.l.b16 %v2428
    %v2656 = vunpack.c.l.b16 %v2429
    %v2657 = vsel %vm2506, %v2655, %v2653
    %v2658 = vsel %vm2506, %v2656, %v2654
    %v2659 = vpack.c.b16 %v2657, %v2657
    %v2660 = vpack.c.b16 %v2658, %v2658
    %v2695 = vunpack.c.l.b16 %v2430
    %v2696 = vunpack.c.l.b16 %v2431
    %v2697 = vunpack.c.l.b16 %v2432
    %v2698 = vunpack.c.l.b16 %v2433
    %v2699 = vunpack.c.l.b16 %v2434
    %v2700 = vunpack.c.l.b16 %v2435
    %v2701 = vunpack.c.l.b16 %v2436
    %v2702 = vunpack.c.l.b16 %v2437
    %v2703 = vunpack.c.l.b16 %v2438
    %v2704 = vunpack.c.l.b16 %v2439
    %v2705 = vunpack.c.l.b16 %v2440
    %v2706 = vunpack.c.l.b16 %v2441
    %v2707 = vunpack.c.l.b16 %v2442
    %v2708 = vunpack.c.l.b16 %v2443
    %v2709 = vunpack.c.l.b16 %v2444
    %v2710 = vunpack.c.l.b16 %v2445
    %v2711 = vunpack.c.l.b16 %v2446
    %v2712 = vunpack.c.l.b16 %v2447
    %v2713 = vunpack.c.l.b16 %v2448
    %v2714 = vunpack.c.l.b16 %v2449
    %v2715 = vunpack.c.l.b16 %v2450
    %v2716 = vunpack.c.l.b16 %v2451
    %v2717 = vunpack.c.l.b16 %v2452
    %v2718 = vunpack.c.l.b16 %v2453
    %v2719 = vunpack.c.l.b16 %v2454
    %v2720 = vunpack.c.l.b16 %v2455
    %v2721 = vunpack.c.l.b16 %v2456
    %v2722 = vunpack.c.l.b16 %v2457
    %v2723 = vunpack.c.l.b16 %v2458
    %v2724 = vunpack.c.l.b16 %v2459
    %v2725 = vunpack.c.l.b16 %v2460
    %v2726 = vunpack.c.l.b16 %v2461
    %v2727 = vpack.c.b16 %v2696, %v2695
    %v2728 = vpack.c.b16 %v2698, %v2697
    %v2729 = vpack.c.b16 %v2700, %v2699
    %v2730 = vpack.c.b16 %v2702, %v2701
    %v2731 = vpack.c.b16 %v2704, %v2703
    %v2732 = vpack.c.b16 %v2706, %v2705
    %v2733 = vpack.c.b16 %v2708, %v2707
    %v2734 = vpack.c.b16 %v2710, %v2709
    %v2735 = vpack.c.b16 %v2712, %v2711
    %v2736 = vpack.c.b16 %v2714, %v2713
    %v2737 = vpack.c.b16 %v2716, %v2715
    %v2738 = vpack.c.b16 %v2718, %v2717
    %v2739 = vpack.c.b16 %v2720, %v2719
    %v2740 = vpack.c.b16 %v2722, %v2721
    %v2741 = vpack.c.b16 %v2724, %v2723
    %v2742 = vpack.c.b16 %v2726, %v2725
    %2759 = vmatprep.subr.bf16.mxu0 0
    %2760 = vmatpush1.bf16.msra.mxu0 %v2727
    %2761 = vmatprep.subr.bf16.mxu0 0
    %2762 = vmatpush1.bf16.msra.mxu0 %v2728
    %2763 = vmatprep.subr.bf16.mxu0 0
    %2764 = vmatpush1.bf16.msra.mxu0 %v2729
    %2765 = vmatprep.subr.bf16.mxu0 0
    %2766 = vmatpush1.bf16.msra.mxu0 %v2730
    %2767 = vmatprep.subr.bf16.mxu0 0
    %2768 = vmatpush1.bf16.msra.mxu0 %v2731
    %2769 = vmatprep.subr.bf16.mxu0 0
    %2770 = vmatpush1.bf16.msra.mxu0 %v2732
    %2771 = vmatprep.subr.bf16.mxu0 0
    %2772 = vmatpush1.bf16.msra.mxu0 %v2733
    %2773 = vmatprep.subr.bf16.mxu0 0
    %2774 = vmatpush1.bf16.msra.mxu0 %v2734
    %2775 = vmatprep.subr.bf16.mxu0 0
    %2776 = vmatpush1.bf16.msra.mxu0 %v2735
    %2777 = vmatprep.subr.bf16.mxu0 0
    %2778 = vmatpush1.bf16.msra.mxu0 %v2736
    %2779 = vmatprep.subr.bf16.mxu0 0
    %2780 = vmatpush1.bf16.msra.mxu0 %v2737
    %2781 = vmatprep.subr.bf16.mxu0 0
    %2782 = vmatpush1.bf16.msra.mxu0 %v2738
    %2783 = vmatprep.subr.bf16.mxu0 0
    %2784 = vmatpush1.bf16.msra.mxu0 %v2739
    %2785 = vmatprep.subr.bf16.mxu0 0
    %2786 = vmatpush1.bf16.msra.mxu0 %v2740
    %2787 = vmatprep.subr.bf16.mxu0 0
    %2788 = vmatpush1.bf16.msra.mxu0 %v2741
    %2789 = vmatprep.subr.bf16.mxu0 0
    %2790 = vmatpush1.bf16.msra.mxu0 %v2742
    %2791 = vmatprep.mubr.bf16.mxu0 %v2660
    %2792 = vmatmul.mubr.bf16.gmra.mrb[0].mxu0 %v2659
    %v2793 = vpop.f32.mrb[0].mxu0
    %v2794 = vadd.f32 %v2644, %v2793
    %v2795 = vpop.f32.mrb[0].mxu0
    %v2796 = vpop.f32.mrb[0].mxu0
    %v2797 = vpop.f32.mrb[0].mxu0
    %2798 = vdwg.mxu0
    %v2799 = vld [vmem:[#allocation25] sm:$0x1]
    %v2801 = vlaneseq
    %v2802 = vshrl.u32 %v2801, 7
    %v2803 = vsub.s32 0, %v2802
    %v2804 = vrot.slane %v2799, %v2803
    %v2806 = vadd.f32 %v2794, %v2804
    %v2807 = vld [vmem:[#allocation26] sm:$0x1]
    %v2808 = vld [vmem:[#allocation28] sm:$0x1]
    %vm2809 = vcmask 1041408
    %v2810 = vsel %vm2809, %v2806, 0.0
    %2811 = vadd.xlane.f32.xlu0 %v2810
    %v2812 = vpop.xlane.xlu0 %2811
    %v2813 = vrcp.pop 128.0
    %v2814 = vmul.f32 %v2812, %v2813
    %v2815 = vsub.f32 %v2806, %v2814
    %v2816 = vmul.f32 %v2815, %v2815
    %v2817 = vsel %vm2809, %v2816, 0.0
    %2818 = vadd.xlane.f32.xlu0 %v2817
    %v2819 = vpop.xlane.xlu0 %2818
    %v2820 = vmul.f32 %v2819, %v2813
    %v2821 = vadd.f32 %v2820, 1e-05
    %v2822 = vrsqrt.pop %v2821
    %v2823 = vmul.f32 %v2815, %v2822
    %v2825 = vlaneseq
    %v2826 = vshrl.u32 %v2825, 7
    %v2827 = vsub.s32 0, %v2826
    %v2828 = vrot.slane %v2807, %v2827
    %v2830 = vmul.f32 %v2823, %v2828
    %v2832 = vlaneseq
    %v2833 = vshrl.u32 %v2832, 7
    %v2834 = vsub.s32 0, %v2833
    %v2835 = vrot.slane %v2808, %v2834
    %v2837 = vadd.f32 %v2830, %v2835
    %v2838 = vmul.f32 %v2837, 0.5
    %v2839 = vmul.f32 %v2837, 0.70710677
    %vm2840 = vcmp.ge.f32.partialorder %v2839, 0.0
    %v2841 = vsel %vm2840, 1.0, -1.0
    %v2842 = vand.u32 2147483647, %v2839
    %v2843 = vmul.f32 %v2842, 0.3275911
    %v2844 = vadd.f32 %v2843, 1.0
    %v2845 = vrcp.pop %v2844
    %v2846 = vmul.f32 1.0, %v2845
    %v2847 = vmul.f32 %v2846, 1.0614054
    %v2848 = vadd.f32 %v2847, -1.4531521
    %v2849 = vmul.f32 %v2848, %v2846
    %v2850 = vadd.f32 %v2849, 1.4214138
    %v2851 = vmul.f32 %v2850, %v2846
    %v2852 = vadd.f32 %v2851, -0.28449672
    %v2853 = vmul.f32 %v2852, %v2846
    %v2854 = vadd.f32 %v2853, 0.2548296
    %v2855 = vmul.f32 %v2854, %v2846
    %v2856 = vsub.f32 0.0, %v2842
    %v2857 = vmul.f32 %v2856, %v2842
    %v2858 = vmul.f32 %v2857, 1.442695
    %v2859 = vpow.pop %v2858
    %v2860 = vmul.f32 %v2855, %v2859
    %v2861 = vsub.f32 1.0, %v2860
    %v2862 = vmul.f32 %v2841, %v2861
    %v2863 = vadd.f32 %v2862, 1.0
    %v2864 = vmul.f32 %v2838, %v2863
    %v2865 = vpack.c.bf16 %v2864, %v2864
    %v2866 = vld [vmem:[%s17] sm:$0xf]
    %v2867 = vld [vmem:[%s17 + $0x4] sm:$0xf]
    %v2868 = vld [vmem:[%s17 + $0x8] sm:$0xf]
    %v2869 = vld [vmem:[%s17 + $0xc] sm:$0xf]
    %v2870 = vld [vmem:[%s17 + $0x10] sm:$0xf]
    %v2871 = vld [vmem:[%s17 + $0x14] sm:$0xf]
    %v2872 = vld [vmem:[%s17 + $0x18] sm:$0xf]
    %v2873 = vld [vmem:[%s17 + $0x1c] sm:$0xf]
    %v2874 = vld [vmem:[%s17 + $0x20] sm:$0xf]
    %v2875 = vld [vmem:[%s17 + $0x24] sm:$0xf]
    %v2876 = vld [vmem:[%s17 + $0x28] sm:$0xf]
    %v2877 = vld [vmem:[%s17 + $0x2c] sm:$0xf]
    %v2878 = vld [vmem:[%s17 + $0x30] sm:$0xf]
    %v2879 = vld [vmem:[%s17 + $0x34] sm:$0xf]
    %v2880 = vld [vmem:[%s17 + $0x38] sm:$0xf]
    %v2881 = vld [vmem:[%s17 + $0x3c] sm:$0xf]
    %v2882 = vld [vmem:[%s18] sm:$0x1]
    %v2884 = vlaneseq
    %v2885 = vshrl.u32 %v2884, 7
    %v2886 = vsub.s32 0, %v2885
    %v2887 = vrot.slane %v2882, %v2886
    %v2905 = vunpack.c.l.b16 %v2866
    %v2906 = vunpack.c.l.b16 %v2867
    %v2907 = vunpack.c.l.b16 %v2868
    %v2908 = vunpack.c.l.b16 %v2869
    %v2909 = vunpack.c.l.b16 %v2870
    %v2910 = vunpack.c.l.b16 %v2871
    %v2911 = vunpack.c.l.b16 %v2872
    %v2912 = vunpack.c.l.b16 %v2873
    %v2913 = vunpack.c.l.b16 %v2874
    %v2914 = vunpack.c.l.b16 %v2875
    %v2915 = vunpack.c.l.b16 %v2876
    %v2916 = vunpack.c.l.b16 %v2877
    %v2917 = vunpack.c.l.b16 %v2878
    %v2918 = vunpack.c.l.b16 %v2879
    %v2919 = vunpack.c.l.b16 %v2880
    %v2920 = vunpack.c.l.b16 %v2881
    %v2921 = vpack.c.b16 %v2906, %v2905
    %v2922 = vpack.c.b16 %v2908, %v2907
    %v2923 = vpack.c.b16 %v2910, %v2909
    %v2924 = vpack.c.b16 %v2912, %v2911
    %v2925 = vpack.c.b16 %v2914, %v2913
    %v2926 = vpack.c.b16 %v2916, %v2915
    %v2927 = vpack.c.b16 %v2918, %v2917
    %v2928 = vpack.c.b16 %v2920, %v2919
    %2937 = vmatprep.subr.bf16.mxu0 0
    %2938 = vmatpush1.bf16.msra.mxu0 %v2921
    %2939 = vmatprep.subr.bf16.mxu0 0
    %2940 = vmatpush1.bf16.msra.mxu0 %v2922
    %2941 = vmatprep.subr.bf16.mxu0 0
    %2942 = vmatpush1.bf16.msra.mxu0 %v2923
    %2943 = vmatprep.subr.bf16.mxu0 0
    %2944 = vmatpush1.bf16.msra.mxu0 %v2924
    %2945 = vmatprep.subr.bf16.mxu0 0
    %2946 = vmatpush1.bf16.msra.mxu0 %v2925
    %2947 = vmatprep.subr.bf16.mxu0 0
    %2948 = vmatpush1.bf16.msra.mxu0 %v2926
    %2949 = vmatprep.subr.bf16.mxu0 0
    %2950 = vmatpush1.bf16.msra.mxu0 %v2927
    %2951 = vmatprep.subr.bf16.mxu0 0
    %2952 = vmatpush1.bf16.msra.mxu0 %v2928
    %2953 = vmatprep.subr.bf16.mxu0 0
    %2954 = vmatpush1.bf16.msra.mxu0 0
    %2955 = vmatprep.subr.bf16.mxu0 0
    %2956 = vmatpush1.bf16.msra.mxu0 0
    %2957 = vmatprep.subr.bf16.mxu0 0
    %2958 = vmatpush1.bf16.msra.mxu0 0
    %2959 = vmatprep.subr.bf16.mxu0 0
    %2960 = vmatpush1.bf16.msra.mxu0 0
    %2961 = vmatprep.subr.bf16.mxu0 0
    %2962 = vmatpush1.bf16.msra.mxu0 0
    %2963 = vmatprep.subr.bf16.mxu0 0
    %2964 = vmatpush1.bf16.msra.mxu0 0
    %2965 = vmatprep.subr.bf16.mxu0 0
    %2966 = vmatpush1.bf16.msra.mxu0 0
    %2967 = vmatprep.subr.bf16.mxu0 0
    %2968 = vmatpush1.bf16.msra.mxu0 0
    %2969 = vmatprep.mubr.bf16.mxu0 0
    %2970 = vmatmul.mubr.bf16.gmra.mrb[0].mxu0 %v2865
    %v2971 = vpop.f32.mrb[0].mxu0
    %v2972 = vadd.f32 %v2887, %v2971
    %v2973 = vpop.f32.mrb[0].mxu0
    %v2974 = vpop.f32.mrb[0].mxu0
    %v2975 = vpop.f32.mrb[0].mxu0
    %2976 = vdwg.mxu0
    %2977 = vst [vmem:[#allocation29] sm:$0x3] %v2972
    // Predicated region
    $region146: #{tpu_custom_call.1} parent=1 // pred_check
      _
    $region147: #{tpu_custom_call.1} parent=1 // pred_check_branch
      %2979 = sbr.rel (0) target = $region149
    $region148: #{tpu_custom_call.1} parent=1 // pred_region
      %s2981 = ssub.s32 32, 32
      %2982 = vsyncadd [#allocation4], %s2981
      %s2984 = sshll.u32 [#allocation29], 4
      %s2985 = int_to_ptr.vmem [resolvable:$true] %s2984
      %2987 = dma.vmem_to_hbm [thread:$0]  %s2985, 32, %s19, [#allocation4]
    $region149: #{tpu_custom_call.1} parent=1 // pred_fallthru
      _
    // Predicated region
    $region150: #{tpu_custom_call.1} parent=1 // pred_check
      _
    $region151: #{tpu_custom_call.1} parent=1 // pred_check_branch
      %2989 = sbr.rel (0) target = $region153
    $region152: #{tpu_custom_call.1} parent=1 // pred_region
      %2990 = dma.done [#allocation4], 32
    $region153: #{tpu_custom_call.1} parent=1 // pred_fallthru
      _
    %2991 = vsyncpa [#allocation3], 1
    %2992 = vsyncpa [#allocation6], 1
    %2993 = vsyncpa [#allocation9], 1
    %2994 = vsyncpa [#allocation12], 1
    %2995 = vsyncpa [#allocation15], 1
    %2996 = vsyncpa [#allocation18], 1
    %2997 = vsyncpa [#allocation21], 1
    %2998 = vsyncpa [#allocation24], 1
    %2999 = vsyncpa [#allocation27], 1
    %3000 = vsyncpa [#allocation4], 1

</llo_original>
